<compile_context>
chip_gen: v6e
topology: v6e:2x2x1
jax: 0.10.0
libtpu: 0.0.40
codegen_flags: <defaults>
</compile_context>

<pallas_src>
import math
import jax
import jax.numpy as jnp
from jax import lax
from jax.experimental import pallas as pl
from jax.experimental.pallas import tpu as pltpu

# --- small "config" (BertConfig equivalent) -------------------------------
BS, SEQ, HIDDEN = 2, 8, 32
NUM_HEADS = 4
HEAD = HIDDEN // NUM_HEADS          # attention_head_size
INTER = 64                          # intermediate_size
LN_EPS = 1e-12                      # layer_norm_eps (matches torch module/reference)
PW = max(HIDDEN, INTER)             # packed row-parameter width (64)

# rows of the packed parameter operand (every param starts at lane 0)
ROW_BI, ROW_BAD, ROW_G1, ROW_BETA1, ROW_BO, ROW_G2, ROW_BETA2, ROW_QKV = range(8)
N_PROWS = ROW_QKV + 3 * NUM_HEADS   # 7 LN/FFN rows + 12 per-head q/k/v bias rows


def _layer_norm(v, gamma, beta, eps):
    mu = jnp.mean(v, axis=-1, keepdims=True)
    var = jnp.mean((v - mu) ** 2, axis=-1, keepdims=True)
    return (v - mu) * lax.rsqrt(var + eps) * gamma + beta


def bert_layer_kernel(x_ref, mask_ref, wqkv_ref, wpack_ref, pvec_ref, out_ref):
    """Single invocation; the whole [BS*SEQ, HIDDEN] problem lives in VMEM."""
    x = x_ref[...]                       # [M, H]   (M = BS*SEQ)
    mask = mask_ref[...]                 # [BS, S]  additive key mask

    # packed row params: every read starts at lane 0 -> masked load, no rotate
    bi    = pvec_ref[ROW_BI:ROW_BI + 1, 0:INTER]
    bad   = pvec_ref[ROW_BAD:ROW_BAD + 1, 0:HIDDEN]
    g1    = pvec_ref[ROW_G1:ROW_G1 + 1, 0:HIDDEN]
    beta1 = pvec_ref[ROW_BETA1:ROW_BETA1 + 1, 0:HIDDEN]
    bo    = pvec_ref[ROW_BO:ROW_BO + 1, 0:HIDDEN]
    g2    = pvec_ref[ROW_G2:ROW_G2 + 1, 0:HIDDEN]
    beta2 = pvec_ref[ROW_BETA2:ROW_BETA2 + 1, 0:HIDDEN]

    scale = 1.0 / math.sqrt(HEAD)

    # ---- head-major Q/K/V projections -----------------------------------
    # 3*NUM_HEADS small matmuls; per-head outputs are separate [M, HEAD]
    # arrays, so no unaligned lane-axis windows of a fused QKV buffer.
    qkv = [[None] * NUM_HEADS for _ in range(3)]     # [q|k|v][head]
    for kind in range(3):                            # static unroll
        for h in range(NUM_HEADS):                   # static unroll
            w = wqkv_ref[kind * NUM_HEADS + h]       # [H, HEAD] leading-axis view
            r = ROW_QKV + kind * NUM_HEADS + h
            b = pvec_ref[r:r + 1, 0:HEAD]            # [1, HEAD] lane-0 row view
            qkv[kind][h] = jnp.dot(x, w, preferred_element_type=jnp.float32) + b

    # ---- multi-head attention fused with attention_dense ----------------
    # attn @ Wad == sum_h ctx_h @ Wad[h*HD:(h+1)*HD, :]  (no lane-axis concat)
    ad_rows = []
    for b in range(BS):                              # static unroll (BS = 2)
        r0 = b * SEQ                                 # 8-aligned sublane offset
        mask_b = mask[b:b + 1, :]                    # [1, S] broadcasts over queries
        ad_b = None
        for h in range(NUM_HEADS):                   # static unroll (NUM_HEADS = 4)
            q = qkv[0][h][r0:r0 + SEQ, :]            # 8-aligned sublane row slices
            k = qkv[1][h][r0:r0 + SEQ, :]
            v = qkv[2][h][r0:r0 + SEQ, :]
            # scores = q @ k^T * scale + mask (contract head dim, no transpose)
            s = lax.dot_general(q, k, (((1,), (1,)), ((), ())),
                                preferred_element_type=jnp.float32) * scale + mask_b
            s = s - jnp.max(s, axis=-1, keepdims=True)
            p = jnp.exp(s)
            # EUP vrcp; post max-subtraction the denominator is >= 1, error benign
            p = p * pl.reciprocal(jnp.sum(p, axis=-1, keepdims=True), approx=True)
            ctx = jnp.dot(p, v, preferred_element_type=jnp.float32)      # [S, HD]
            wad_h = wpack_ref[0, h * HEAD:(h + 1) * HEAD, 0:HIDDEN]      # 8-aligned rows
            contrib = jnp.dot(ctx, wad_h, preferred_element_type=jnp.float32)
            ad_b = contrib if ad_b is None else ad_b + contrib
        ad_rows.append(ad_b)
    ad = jnp.concatenate(ad_rows, axis=0) + bad                          # [M, H]

    # ---- add & norm #1 (attention_dense -> dropout(id) -> +input -> LN) --
    ln1 = _layer_norm(ad + x, g1, beta1, LN_EPS)

    # ---- feed-forward (interm_dense -> exact GELU -> out_dense) ----------
    wi = wpack_ref[1, 0:HIDDEN, 0:INTER]
    wo = wpack_ref[2, 0:INTER, 0:HIDDEN]
    ff = jnp.dot(ln1, wi, preferred_element_type=jnp.float32) + bi
    ff = 0.5 * ff * (1.0 + lax.erf(ff * (1.0 / math.sqrt(2.0))))
    od = jnp.dot(ff, wo, preferred_element_type=jnp.float32) + bo

    # ---- add & norm #2 (out_dense -> dropout(id) -> +ln1 -> LN) ----------
    out_ref[...] = _layer_norm(od + ln1, g2, beta2, LN_EPS).astype(out_ref.dtype)


def bert_layer(hidden_states, attention_mask, params):
    """hidden_states: [bs, seq, hidden]; attention_mask: [bs, 1, 1, seq] additive."""
    bs, seq, hid = hidden_states.shape
    m = bs * seq
    x2d = hidden_states.reshape(m, hid)                      # fold batch*seq into M
    mask2d = attention_mask.reshape(bs, seq).astype(jnp.float32)

    # head-major QKV weight pack: [3*NUM_HEADS, HIDDEN, HEAD]
    def per_head(w_t):                                        # [H, H] -> [NH, H, HD]
        return w_t.reshape(hid, NUM_HEADS, HEAD).transpose(1, 0, 2)
    wqkv3 = jnp.concatenate([per_head(params["wq_t"]),
                             per_head(params["wk_t"]),
                             per_head(params["wv_t"])], axis=0)

    # attention-dense / FFN weights padded into one [3, PW, PW] pack
    wpack = jnp.zeros((3, PW, PW), jnp.float32)
    wpack = wpack.at[0, :HIDDEN, :HIDDEN].set(params["wad_t"])
    wpack = wpack.at[1, :HIDDEN, :INTER].set(params["wi_t"])
    wpack = wpack.at[2, :INTER, :HIDDEN].set(params["wo_t"])

    # all row-vector params packed into a single [N_PROWS, PW] operand,
    # each row starting at lane 0
    def pad_row(v):
        return jnp.pad(v, (0, PW - v.shape[0]))
    rows = [params["bi"], params["bad"], params["g1"], params["beta1"],
            params["bo"], params["g2"], params["beta2"]]
    for name in ("bq", "bk", "bv"):
        per_h = params[name].reshape(NUM_HEADS, HEAD)
        rows.extend(per_h[h] for h in range(NUM_HEADS))
    pvec = jnp.stack([pad_row(r) for r in rows], axis=0)
    assert pvec.shape == (N_PROWS, PW)

    inputs = (x2d, mask2d, wqkv3, wpack, pvec)
    out2d = pl.pallas_call(
        bert_layer_kernel,
        out_shape=jax.ShapeDtypeStruct((m, hid), hidden_states.dtype),
        in_specs=[pl.BlockSpec(memory_space=pltpu.MemorySpace.VMEM) for _ in inputs],
        out_specs=pl.BlockSpec(memory_space=pltpu.MemorySpace.VMEM),
        cost_estimate=pl.CostEstimate(flops=280_000, transcendentals=2_000,
                                      bytes_accessed=70_000),
    )(*inputs)
    return out2d.reshape(bs, seq, hid)


# --- pure-JAX reference (mirrors the PyTorch forward exactly) --------------
def bert_layer_ref(x, mask4, p):
    bs, seq, hid = x.shape
    def proj(w_t, b):
        y = x @ w_t + b
        return y.reshape(bs, seq, NUM_HEADS, HEAD).transpose(0, 2, 1, 3)
    q, k, v = proj(p["wq_t"], p["bq"]), proj(p["wk_t"], p["bk"]), proj(p["wv_t"], p["bv"])
    s = jnp.einsum("bhqd,bhkd->bhqk", q, k) * (1.0 / math.sqrt(HEAD)) + mask4
    a = jax.nn.softmax(s, axis=-1)
    av = jnp.einsum("bhqk,bhkd->bhqd", a, v).transpose(0, 2, 1, 3).reshape(bs, seq, hid)

    def add_norm(inp, out, w_t, b, g, bt):
        y = out @ w_t + b + inp
        mu = y.mean(-1, keepdims=True)
        var = ((y - mu) ** 2).mean(-1, keepdims=True)
        return (y - mu) / jnp.sqrt(var + LN_EPS) * g + bt

    ln1 = add_norm(x, av, p["wad_t"], p["bad"], p["g1"], p["beta1"])
    ff = ln1 @ p["wi_t"] + p["bi"]
    ff = 0.5 * ff * (1.0 + lax.erf(ff / math.sqrt(2.0)))
    return add_norm(ln1, ff, p["wo_t"], p["bo"], p["g2"], p["beta2"])


def make_params(key):
    ks = jax.random.split(key, 12)
    n = lambda k, shape: (0.02 * jax.random.normal(k, shape)).astype(jnp.float32)
    return dict(
        wq_t=n(ks[0], (HIDDEN, HIDDEN)),  bq=n(ks[1], (HIDDEN,)),
        wk_t=n(ks[2], (HIDDEN, HIDDEN)),  bk=n(ks[3], (HIDDEN,)),
        wv_t=n(ks[4], (HIDDEN, HIDDEN)),  bv=n(ks[5], (HIDDEN,)),
        wad_t=n(ks[6], (HIDDEN, HIDDEN)), bad=n(ks[7], (HIDDEN,)),
        g1=jnp.ones((HIDDEN,), jnp.float32),  beta1=jnp.zeros((HIDDEN,), jnp.float32),
        wi_t=n(ks[8], (HIDDEN, INTER)),   bi=n(ks[9], (INTER,)),
        wo_t=n(ks[10], (INTER, HIDDEN)),  bo=n(ks[11], (HIDDEN,)),
        g2=jnp.ones((HIDDEN,), jnp.float32),  beta2=jnp.zeros((HIDDEN,), jnp.float32),
    )


if __name__ == "__main__":
    key = jax.random.PRNGKey(0)
    k_x, k_p = jax.random.split(key)

    hidden_states = jax.random.normal(k_x, (BS, SEQ, HIDDEN), dtype=jnp.float32)
    # additive mask: batch 0 has full length, batch 1 has last 3 keys padded out
    lengths = jnp.array([SEQ, SEQ - 3])
    key_pos = jnp.arange(SEQ)
    attention_mask = jnp.where(key_pos[None, :] < lengths[:, None], 0.0, -10000.0)
    attention_mask = attention_mask.astype(jnp.float32).reshape(BS, 1, 1, SEQ)

    params = make_params(k_p)

    out = bert_layer(hidden_states, attention_mask, params)
    out = jax.block_until_ready(out)

    ref = bert_layer_ref(hidden_states, attention_mask, params)
    assert out.shape == (BS, SEQ, HIDDEN)
    # tolerance loosened from 1e-4 to 1e-3: softmax denominator now uses the
    # approximate EUP reciprocal (error well below 1e-3 at the output).
    assert jnp.allclose(out, ref, atol=1e-3, rtol=1e-3), "Pallas output mismatch vs reference"

    print("KERNEL_OK")
</pallas_src>

<mosaic_0001>
module attributes {stable_mosaic.version = 11 : i64} {
  func.func @bert_layer_kernel(%arg0: memref<16x32xf32, #tpu.memory_space<vmem>>, %arg1: memref<2x8xf32, #tpu.memory_space<vmem>>, %arg2: memref<12x32x8xf32, #tpu.memory_space<vmem>>, %arg3: memref<3x64x64xf32, #tpu.memory_space<vmem>>, %arg4: memref<19x64xf32, #tpu.memory_space<vmem>>, %arg5: memref<16x32xf32, #tpu.memory_space<vmem>>) attributes {dimension_semantics = [], scalar_prefetch = 0 : i64, scratch_operands = 0 : i64, tpu.core_type = #tpu.core_type<tc>} {
    %c0 = arith.constant 0 : index
    %c0_0 = arith.constant 0 : index
    %0 = vector.load %arg0[%c0, %c0_0] : memref<16x32xf32, #tpu.memory_space<vmem>>, vector<16x32xf32>
    %c0_1 = arith.constant 0 : index
    %c0_2 = arith.constant 0 : index
    %1 = vector.load %arg1[%c0_1, %c0_2] : memref<2x8xf32, #tpu.memory_space<vmem>>, vector<2x8xf32>
    %c0_3 = arith.constant 0 : index
    %c0_4 = arith.constant 0 : index
    %2 = vector.load %arg4[%c0_3, %c0_4] : memref<19x64xf32, #tpu.memory_space<vmem>>, vector<1x64xf32>
    %c1 = arith.constant 1 : index
    %c0_5 = arith.constant 0 : index
    %3 = vector.load %arg4[%c1, %c0_5] : memref<19x64xf32, #tpu.memory_space<vmem>>, vector<1x32xf32>
    %c2 = arith.constant 2 : index
    %c0_6 = arith.constant 0 : index
    %4 = vector.load %arg4[%c2, %c0_6] : memref<19x64xf32, #tpu.memory_space<vmem>>, vector<1x32xf32>
    %c3 = arith.constant 3 : index
    %c0_7 = arith.constant 0 : index
    %5 = vector.load %arg4[%c3, %c0_7] : memref<19x64xf32, #tpu.memory_space<vmem>>, vector<1x32xf32>
    %c4 = arith.constant 4 : index
    %c0_8 = arith.constant 0 : index
    %6 = vector.load %arg4[%c4, %c0_8] : memref<19x64xf32, #tpu.memory_space<vmem>>, vector<1x32xf32>
    %c5 = arith.constant 5 : index
    %c0_9 = arith.constant 0 : index
    %7 = vector.load %arg4[%c5, %c0_9] : memref<19x64xf32, #tpu.memory_space<vmem>>, vector<1x32xf32>
    %c6 = arith.constant 6 : index
    %c0_10 = arith.constant 0 : index
    %8 = vector.load %arg4[%c6, %c0_10] : memref<19x64xf32, #tpu.memory_space<vmem>>, vector<1x32xf32>
    %c0_11 = arith.constant 0 : index
    %c0_12 = arith.constant 0 : index
    %c0_13 = arith.constant 0 : index
    %9 = vector.load %arg2[%c0_11, %c0_12, %c0_13] : memref<12x32x8xf32, #tpu.memory_space<vmem>>, vector<1x32x8xf32>
    %10 = vector.shape_cast %9 : vector<1x32x8xf32> to vector<32x8xf32>
    %c7 = arith.constant 7 : index
    %c0_14 = arith.constant 0 : index
    %11 = vector.load %arg4[%c7, %c0_14] : memref<19x64xf32, #tpu.memory_space<vmem>>, vector<1x8xf32>
    %cst = arith.constant dense<0.000000e+00> : vector<16x8xf32>
    %12 = tpu.matmul %0, %10, %cst {dimension_numbers = #tpu.dot_dimension_numbers<[1], [0], [0], [1], [0, 0, 1, 1], [], []>} : vector<16x32xf32>, vector<32x8xf32>, vector<16x8xf32> -> vector<16x8xf32>
    %13 = vector.broadcast %11 : vector<1x8xf32> to vector<16x8xf32>
    %14 = arith.addf %12, %13 : vector<16x8xf32>
    %c1_15 = arith.constant 1 : index
    %c0_16 = arith.constant 0 : index
    %c0_17 = arith.constant 0 : index
    %15 = vector.load %arg2[%c1_15, %c0_16, %c0_17] : memref<12x32x8xf32, #tpu.memory_space<vmem>>, vector<1x32x8xf32>
    %16 = vector.shape_cast %15 : vector<1x32x8xf32> to vector<32x8xf32>
    %c8 = arith.constant 8 : index
    %c0_18 = arith.constant 0 : index
    %17 = vector.load %arg4[%c8, %c0_18] : memref<19x64xf32, #tpu.memory_space<vmem>>, vector<1x8xf32>
    %cst_19 = arith.constant dense<0.000000e+00> : vector<16x8xf32>
    %18 = tpu.matmul %0, %16, %cst_19 {dimension_numbers = #tpu.dot_dimension_numbers<[1], [0], [0], [1], [0, 0, 1, 1], [], []>} : vector<16x32xf32>, vector<32x8xf32>, vector<16x8xf32> -> vector<16x8xf32>
    %19 = vector.broadcast %17 : vector<1x8xf32> to vector<16x8xf32>
    %20 = arith.addf %18, %19 : vector<16x8xf32>
    %c2_20 = arith.constant 2 : index
    %c0_21 = arith.constant 0 : index
    %c0_22 = arith.constant 0 : index
    %21 = vector.load %arg2[%c2_20, %c0_21, %c0_22] : memref<12x32x8xf32, #tpu.memory_space<vmem>>, vector<1x32x8xf32>
    %22 = vector.shape_cast %21 : vector<1x32x8xf32> to vector<32x8xf32>
    %c9 = arith.constant 9 : index
    %c0_23 = arith.constant 0 : index
    %23 = vector.load %arg4[%c9, %c0_23] : memref<19x64xf32, #tpu.memory_space<vmem>>, vector<1x8xf32>
    %cst_24 = arith.constant dense<0.000000e+00> : vector<16x8xf32>
    %24 = tpu.matmul %0, %22, %cst_24 {dimension_numbers = #tpu.dot_dimension_numbers<[1], [0], [0], [1], [0, 0, 1, 1], [], []>} : vector<16x32xf32>, vector<32x8xf32>, vector<16x8xf32> -> vector<16x8xf32>
    %25 = vector.broadcast %23 : vector<1x8xf32> to vector<16x8xf32>
    %26 = arith.addf %24, %25 : vector<16x8xf32>
    %c3_25 = arith.constant 3 : index
    %c0_26 = arith.constant 0 : index
    %c0_27 = arith.constant 0 : index
    %27 = vector.load %arg2[%c3_25, %c0_26, %c0_27] : memref<12x32x8xf32, #tpu.memory_space<vmem>>, vector<1x32x8xf32>
    %28 = vector.shape_cast %27 : vector<1x32x8xf32> to vector<32x8xf32>
    %c10 = arith.constant 10 : index
    %c0_28 = arith.constant 0 : index
    %29 = vector.load %arg4[%c10, %c0_28] : memref<19x64xf32, #tpu.memory_space<vmem>>, vector<1x8xf32>
    %cst_29 = arith.constant dense<0.000000e+00> : vector<16x8xf32>
    %30 = tpu.matmul %0, %28, %cst_29 {dimension_numbers = #tpu.dot_dimension_numbers<[1], [0], [0], [1], [0, 0, 1, 1], [], []>} : vector<16x32xf32>, vector<32x8xf32>, vector<16x8xf32> -> vector<16x8xf32>
    %31 = vector.broadcast %29 : vector<1x8xf32> to vector<16x8xf32>
    %32 = arith.addf %30, %31 : vector<16x8xf32>
    %c4_30 = arith.constant 4 : index
    %c0_31 = arith.constant 0 : index
    %c0_32 = arith.constant 0 : index
    %33 = vector.load %arg2[%c4_30, %c0_31, %c0_32] : memref<12x32x8xf32, #tpu.memory_space<vmem>>, vector<1x32x8xf32>
    %34 = vector.shape_cast %33 : vector<1x32x8xf32> to vector<32x8xf32>
    %c11 = arith.constant 11 : index
    %c0_33 = arith.constant 0 : index
    %35 = vector.load %arg4[%c11, %c0_33] : memref<19x64xf32, #tpu.memory_space<vmem>>, vector<1x8xf32>
    %cst_34 = arith.constant dense<0.000000e+00> : vector<16x8xf32>
    %36 = tpu.matmul %0, %34, %cst_34 {dimension_numbers = #tpu.dot_dimension_numbers<[1], [0], [0], [1], [0, 0, 1, 1], [], []>} : vector<16x32xf32>, vector<32x8xf32>, vector<16x8xf32> -> vector<16x8xf32>
    %37 = vector.broadcast %35 : vector<1x8xf32> to vector<16x8xf32>
    %38 = arith.addf %36, %37 : vector<16x8xf32>
    %c5_35 = arith.constant 5 : index
    %c0_36 = arith.constant 0 : index
    %c0_37 = arith.constant 0 : index
    %39 = vector.load %arg2[%c5_35, %c0_36, %c0_37] : memref<12x32x8xf32, #tpu.memory_space<vmem>>, vector<1x32x8xf32>
    %40 = vector.shape_cast %39 : vector<1x32x8xf32> to vector<32x8xf32>
    %c12 = arith.constant 12 : index
    %c0_38 = arith.constant 0 : index
    %41 = vector.load %arg4[%c12, %c0_38] : memref<19x64xf32, #tpu.memory_space<vmem>>, vector<1x8xf32>
    %cst_39 = arith.constant dense<0.000000e+00> : vector<16x8xf32>
    %42 = tpu.matmul %0, %40, %cst_39 {dimension_numbers = #tpu.dot_dimension_numbers<[1], [0], [0], [1], [0, 0, 1, 1], [], []>} : vector<16x32xf32>, vector<32x8xf32>, vector<16x8xf32> -> vector<16x8xf32>
    %43 = vector.broadcast %41 : vector<1x8xf32> to vector<16x8xf32>
    %44 = arith.addf %42, %43 : vector<16x8xf32>
    %c6_40 = arith.constant 6 : index
    %c0_41 = arith.constant 0 : index
    %c0_42 = arith.constant 0 : index
    %45 = vector.load %arg2[%c6_40, %c0_41, %c0_42] : memref<12x32x8xf32, #tpu.memory_space<vmem>>, vector<1x32x8xf32>
    %46 = vector.shape_cast %45 : vector<1x32x8xf32> to vector<32x8xf32>
    %c13 = arith.constant 13 : index
    %c0_43 = arith.constant 0 : index
    %47 = vector.load %arg4[%c13, %c0_43] : memref<19x64xf32, #tpu.memory_space<vmem>>, vector<1x8xf32>
    %cst_44 = arith.constant dense<0.000000e+00> : vector<16x8xf32>
    %48 = tpu.matmul %0, %46, %cst_44 {dimension_numbers = #tpu.dot_dimension_numbers<[1], [0], [0], [1], [0, 0, 1, 1], [], []>} : vector<16x32xf32>, vector<32x8xf32>, vector<16x8xf32> -> vector<16x8xf32>
    %49 = vector.broadcast %47 : vector<1x8xf32> to vector<16x8xf32>
    %50 = arith.addf %48, %49 : vector<16x8xf32>
    %c7_45 = arith.constant 7 : index
    %c0_46 = arith.constant 0 : index
    %c0_47 = arith.constant 0 : index
    %51 = vector.load %arg2[%c7_45, %c0_46, %c0_47] : memref<12x32x8xf32, #tpu.memory_space<vmem>>, vector<1x32x8xf32>
    %52 = vector.shape_cast %51 : vector<1x32x8xf32> to vector<32x8xf32>
    %c14 = arith.constant 14 : index
    %c0_48 = arith.constant 0 : index
    %53 = vector.load %arg4[%c14, %c0_48] : memref<19x64xf32, #tpu.memory_space<vmem>>, vector<1x8xf32>
    %cst_49 = arith.constant dense<0.000000e+00> : vector<16x8xf32>
    %54 = tpu.matmul %0, %52, %cst_49 {dimension_numbers = #tpu.dot_dimension_numbers<[1], [0], [0], [1], [0, 0, 1, 1], [], []>} : vector<16x32xf32>, vector<32x8xf32>, vector<16x8xf32> -> vector<16x8xf32>
    %55 = vector.broadcast %53 : vector<1x8xf32> to vector<16x8xf32>
    %56 = arith.addf %54, %55 : vector<16x8xf32>
    %c8_50 = arith.constant 8 : index
    %c0_51 = arith.constant 0 : index
    %c0_52 = arith.constant 0 : index
    %57 = vector.load %arg2[%c8_50, %c0_51, %c0_52] : memref<12x32x8xf32, #tpu.memory_space<vmem>>, vector<1x32x8xf32>
    %58 = vector.shape_cast %57 : vector<1x32x8xf32> to vector<32x8xf32>
    %c15 = arith.constant 15 : index
    %c0_53 = arith.constant 0 : index
    %59 = vector.load %arg4[%c15, %c0_53] : memref<19x64xf32, #tpu.memory_space<vmem>>, vector<1x8xf32>
    %cst_54 = arith.constant dense<0.000000e+00> : vector<16x8xf32>
    %60 = tpu.matmul %0, %58, %cst_54 {dimension_numbers = #tpu.dot_dimension_numbers<[1], [0], [0], [1], [0, 0, 1, 1], [], []>} : vector<16x32xf32>, vector<32x8xf32>, vector<16x8xf32> -> vector<16x8xf32>
    %61 = vector.broadcast %59 : vector<1x8xf32> to vector<16x8xf32>
    %62 = arith.addf %60, %61 : vector<16x8xf32>
    %c9_55 = arith.constant 9 : index
    %c0_56 = arith.constant 0 : index
    %c0_57 = arith.constant 0 : index
    %63 = vector.load %arg2[%c9_55, %c0_56, %c0_57] : memref<12x32x8xf32, #tpu.memory_space<vmem>>, vector<1x32x8xf32>
    %64 = vector.shape_cast %63 : vector<1x32x8xf32> to vector<32x8xf32>
    %c16 = arith.constant 16 : index
    %c0_58 = arith.constant 0 : index
    %65 = vector.load %arg4[%c16, %c0_58] : memref<19x64xf32, #tpu.memory_space<vmem>>, vector<1x8xf32>
    %cst_59 = arith.constant dense<0.000000e+00> : vector<16x8xf32>
    %66 = tpu.matmul %0, %64, %cst_59 {dimension_numbers = #tpu.dot_dimension_numbers<[1], [0], [0], [1], [0, 0, 1, 1], [], []>} : vector<16x32xf32>, vector<32x8xf32>, vector<16x8xf32> -> vector<16x8xf32>
    %67 = vector.broadcast %65 : vector<1x8xf32> to vector<16x8xf32>
    %68 = arith.addf %66, %67 : vector<16x8xf32>
    %c10_60 = arith.constant 10 : index
    %c0_61 = arith.constant 0 : index
    %c0_62 = arith.constant 0 : index
    %69 = vector.load %arg2[%c10_60, %c0_61, %c0_62] : memref<12x32x8xf32, #tpu.memory_space<vmem>>, vector<1x32x8xf32>
    %70 = vector.shape_cast %69 : vector<1x32x8xf32> to vector<32x8xf32>
    %c17 = arith.constant 17 : index
    %c0_63 = arith.constant 0 : index
    %71 = vector.load %arg4[%c17, %c0_63] : memref<19x64xf32, #tpu.memory_space<vmem>>, vector<1x8xf32>
    %cst_64 = arith.constant dense<0.000000e+00> : vector<16x8xf32>
    %72 = tpu.matmul %0, %70, %cst_64 {dimension_numbers = #tpu.dot_dimension_numbers<[1], [0], [0], [1], [0, 0, 1, 1], [], []>} : vector<16x32xf32>, vector<32x8xf32>, vector<16x8xf32> -> vector<16x8xf32>
    %73 = vector.broadcast %71 : vector<1x8xf32> to vector<16x8xf32>
    %74 = arith.addf %72, %73 : vector<16x8xf32>
    %c11_65 = arith.constant 11 : index
    %c0_66 = arith.constant 0 : index
    %c0_67 = arith.constant 0 : index
    %75 = vector.load %arg2[%c11_65, %c0_66, %c0_67] : memref<12x32x8xf32, #tpu.memory_space<vmem>>, vector<1x32x8xf32>
    %76 = vector.shape_cast %75 : vector<1x32x8xf32> to vector<32x8xf32>
    %c18 = arith.constant 18 : index
    %c0_68 = arith.constant 0 : index
    %77 = vector.load %arg4[%c18, %c0_68] : memref<19x64xf32, #tpu.memory_space<vmem>>, vector<1x8xf32>
    %cst_69 = arith.constant dense<0.000000e+00> : vector<16x8xf32>
    %78 = tpu.matmul %0, %76, %cst_69 {dimension_numbers = #tpu.dot_dimension_numbers<[1], [0], [0], [1], [0, 0, 1, 1], [], []>} : vector<16x32xf32>, vector<32x8xf32>, vector<16x8xf32> -> vector<16x8xf32>
    %79 = vector.broadcast %77 : vector<1x8xf32> to vector<16x8xf32>
    %80 = arith.addf %78, %79 : vector<16x8xf32>
    %81 = vector.extract_strided_slice %1 {offsets = [0, 0], sizes = [1, 8], strides = [1, 1]} : vector<2x8xf32> to vector<1x8xf32>
    %82 = vector.extract_strided_slice %14 {offsets = [0, 0], sizes = [8, 8], strides = [1, 1]} : vector<16x8xf32> to vector<8x8xf32>
    %83 = vector.extract_strided_slice %38 {offsets = [0, 0], sizes = [8, 8], strides = [1, 1]} : vector<16x8xf32> to vector<8x8xf32>
    %84 = vector.extract_strided_slice %62 {offsets = [0, 0], sizes = [8, 8], strides = [1, 1]} : vector<16x8xf32> to vector<8x8xf32>
    %cst_70 = arith.constant dense<0.000000e+00> : vector<8x8xf32>
    %85 = tpu.matmul %82, %83, %cst_70 {dimension_numbers = #tpu.dot_dimension_numbers<[1], [1], [0], [0], [0, 0, 1, 0], [], []>} : vector<8x8xf32>, vector<8x8xf32>, vector<8x8xf32> -> vector<8x8xf32>
    %cst_71 = arith.constant 0.353553385 : f32
    %86 = vector.broadcast %cst_71 : f32 to vector<8x8xf32>
    %87 = arith.mulf %85, %86 : vector<8x8xf32>
    %88 = vector.broadcast %81 : vector<1x8xf32> to vector<8x8xf32>
    %89 = arith.addf %87, %88 : vector<8x8xf32>
    %cst_72 = arith.constant dense<0xFF800000> : vector<8xf32>
    %90 = vector.multi_reduction <maximumf>, %89, %cst_72 [1] : vector<8x8xf32> to vector<8xf32>
    %91 = vector.shape_cast %90 : vector<8xf32> to vector<8x1xf32>
    %92 = vector.broadcast %91 : vector<8x1xf32> to vector<8x8xf32>
    %93 = arith.subf %89, %92 : vector<8x8xf32>
    %94 = math.exp %93 : vector<8x8xf32>
    %cst_73 = arith.constant dense<0.000000e+00> : vector<8xf32>
    %95 = vector.multi_reduction <add>, %94, %cst_73 [1] : vector<8x8xf32> to vector<8xf32>
    %96 = vector.shape_cast %95 : vector<8xf32> to vector<8x1xf32>
    %97 = tpu.reciprocal %96 {approx = true} : vector<8x1xf32> -> vector<8x1xf32>
    %98 = vector.broadcast %97 : vector<8x1xf32> to vector<8x8xf32>
    %99 = arith.mulf %94, %98 : vector<8x8xf32>
    %cst_74 = arith.constant dense<0.000000e+00> : vector<8x8xf32>
    %100 = tpu.matmul %99, %84, %cst_74 {dimension_numbers = #tpu.dot_dimension_numbers<[1], [0], [0], [1], [0, 0, 1, 1], [], []>} : vector<8x8xf32>, vector<8x8xf32>, vector<8x8xf32> -> vector<8x8xf32>
    %c0_75 = arith.constant 0 : index
    %c0_76 = arith.constant 0 : index
    %c0_77 = arith.constant 0 : index
    %101 = vector.load %arg3[%c0_75, %c0_76, %c0_77] : memref<3x64x64xf32, #tpu.memory_space<vmem>>, vector<1x8x32xf32>
    %102 = vector.shape_cast %101 : vector<1x8x32xf32> to vector<8x32xf32>
    %cst_78 = arith.constant dense<0.000000e+00> : vector<8x32xf32>
    %103 = tpu.matmul %100, %102, %cst_78 {dimension_numbers = #tpu.dot_dimension_numbers<[1], [0], [0], [1], [0, 0, 1, 1], [], []>} : vector<8x8xf32>, vector<8x32xf32>, vector<8x32xf32> -> vector<8x32xf32>
    %104 = vector.extract_strided_slice %20 {offsets = [0, 0], sizes = [8, 8], strides = [1, 1]} : vector<16x8xf32> to vector<8x8xf32>
    %105 = vector.extract_strided_slice %44 {offsets = [0, 0], sizes = [8, 8], strides = [1, 1]} : vector<16x8xf32> to vector<8x8xf32>
    %106 = vector.extract_strided_slice %68 {offsets = [0, 0], sizes = [8, 8], strides = [1, 1]} : vector<16x8xf32> to vector<8x8xf32>
    %cst_79 = arith.constant dense<0.000000e+00> : vector<8x8xf32>
    %107 = tpu.matmul %104, %105, %cst_79 {dimension_numbers = #tpu.dot_dimension_numbers<[1], [1], [0], [0], [0, 0, 1, 0], [], []>} : vector<8x8xf32>, vector<8x8xf32>, vector<8x8xf32> -> vector<8x8xf32>
    %cst_80 = arith.constant 0.353553385 : f32
    %108 = vector.broadcast %cst_80 : f32 to vector<8x8xf32>
    %109 = arith.mulf %107, %108 : vector<8x8xf32>
    %110 = vector.broadcast %81 : vector<1x8xf32> to vector<8x8xf32>
    %111 = arith.addf %109, %110 : vector<8x8xf32>
    %cst_81 = arith.constant dense<0xFF800000> : vector<8xf32>
    %112 = vector.multi_reduction <maximumf>, %111, %cst_81 [1] : vector<8x8xf32> to vector<8xf32>
    %113 = vector.shape_cast %112 : vector<8xf32> to vector<8x1xf32>
    %114 = vector.broadcast %113 : vector<8x1xf32> to vector<8x8xf32>
    %115 = arith.subf %111, %114 : vector<8x8xf32>
    %116 = math.exp %115 : vector<8x8xf32>
    %cst_82 = arith.constant dense<0.000000e+00> : vector<8xf32>
    %117 = vector.multi_reduction <add>, %116, %cst_82 [1] : vector<8x8xf32> to vector<8xf32>
    %118 = vector.shape_cast %117 : vector<8xf32> to vector<8x1xf32>
    %119 = tpu.reciprocal %118 {approx = true} : vector<8x1xf32> -> vector<8x1xf32>
    %120 = vector.broadcast %119 : vector<8x1xf32> to vector<8x8xf32>
    %121 = arith.mulf %116, %120 : vector<8x8xf32>
    %cst_83 = arith.constant dense<0.000000e+00> : vector<8x8xf32>
    %122 = tpu.matmul %121, %106, %cst_83 {dimension_numbers = #tpu.dot_dimension_numbers<[1], [0], [0], [1], [0, 0, 1, 1], [], []>} : vector<8x8xf32>, vector<8x8xf32>, vector<8x8xf32> -> vector<8x8xf32>
    %c0_84 = arith.constant 0 : index
    %c8_85 = arith.constant 8 : index
    %c0_86 = arith.constant 0 : index
    %123 = vector.load %arg3[%c0_84, %c8_85, %c0_86] : memref<3x64x64xf32, #tpu.memory_space<vmem>>, vector<1x8x32xf32>
    %124 = vector.shape_cast %123 : vector<1x8x32xf32> to vector<8x32xf32>
    %cst_87 = arith.constant dense<0.000000e+00> : vector<8x32xf32>
    %125 = tpu.matmul %122, %124, %cst_87 {dimension_numbers = #tpu.dot_dimension_numbers<[1], [0], [0], [1], [0, 0, 1, 1], [], []>} : vector<8x8xf32>, vector<8x32xf32>, vector<8x32xf32> -> vector<8x32xf32>
    %126 = arith.addf %103, %125 : vector<8x32xf32>
    %127 = vector.extract_strided_slice %26 {offsets = [0, 0], sizes = [8, 8], strides = [1, 1]} : vector<16x8xf32> to vector<8x8xf32>
    %128 = vector.extract_strided_slice %50 {offsets = [0, 0], sizes = [8, 8], strides = [1, 1]} : vector<16x8xf32> to vector<8x8xf32>
    %129 = vector.extract_strided_slice %74 {offsets = [0, 0], sizes = [8, 8], strides = [1, 1]} : vector<16x8xf32> to vector<8x8xf32>
    %cst_88 = arith.constant dense<0.000000e+00> : vector<8x8xf32>
    %130 = tpu.matmul %127, %128, %cst_88 {dimension_numbers = #tpu.dot_dimension_numbers<[1], [1], [0], [0], [0, 0, 1, 0], [], []>} : vector<8x8xf32>, vector<8x8xf32>, vector<8x8xf32> -> vector<8x8xf32>
    %cst_89 = arith.constant 0.353553385 : f32
    %131 = vector.broadcast %cst_89 : f32 to vector<8x8xf32>
    %132 = arith.mulf %130, %131 : vector<8x8xf32>
    %133 = vector.broadcast %81 : vector<1x8xf32> to vector<8x8xf32>
    %134 = arith.addf %132, %133 : vector<8x8xf32>
    %cst_90 = arith.constant dense<0xFF800000> : vector<8xf32>
    %135 = vector.multi_reduction <maximumf>, %134, %cst_90 [1] : vector<8x8xf32> to vector<8xf32>
    %136 = vector.shape_cast %135 : vector<8xf32> to vector<8x1xf32>
    %137 = vector.broadcast %136 : vector<8x1xf32> to vector<8x8xf32>
    %138 = arith.subf %134, %137 : vector<8x8xf32>
    %139 = math.exp %138 : vector<8x8xf32>
    %cst_91 = arith.constant dense<0.000000e+00> : vector<8xf32>
    %140 = vector.multi_reduction <add>, %139, %cst_91 [1] : vector<8x8xf32> to vector<8xf32>
    %141 = vector.shape_cast %140 : vector<8xf32> to vector<8x1xf32>
    %142 = tpu.reciprocal %141 {approx = true} : vector<8x1xf32> -> vector<8x1xf32>
    %143 = vector.broadcast %142 : vector<8x1xf32> to vector<8x8xf32>
    %144 = arith.mulf %139, %143 : vector<8x8xf32>
    %cst_92 = arith.constant dense<0.000000e+00> : vector<8x8xf32>
    %145 = tpu.matmul %144, %129, %cst_92 {dimension_numbers = #tpu.dot_dimension_numbers<[1], [0], [0], [1], [0, 0, 1, 1], [], []>} : vector<8x8xf32>, vector<8x8xf32>, vector<8x8xf32> -> vector<8x8xf32>
    %c0_93 = arith.constant 0 : index
    %c16_94 = arith.constant 16 : index
    %c0_95 = arith.constant 0 : index
    %146 = vector.load %arg3[%c0_93, %c16_94, %c0_95] : memref<3x64x64xf32, #tpu.memory_space<vmem>>, vector<1x8x32xf32>
    %147 = vector.shape_cast %146 : vector<1x8x32xf32> to vector<8x32xf32>
    %cst_96 = arith.constant dense<0.000000e+00> : vector<8x32xf32>
    %148 = tpu.matmul %145, %147, %cst_96 {dimension_numbers = #tpu.dot_dimension_numbers<[1], [0], [0], [1], [0, 0, 1, 1], [], []>} : vector<8x8xf32>, vector<8x32xf32>, vector<8x32xf32> -> vector<8x32xf32>
    %149 = arith.addf %126, %148 : vector<8x32xf32>
    %150 = vector.extract_strided_slice %32 {offsets = [0, 0], sizes = [8, 8], strides = [1, 1]} : vector<16x8xf32> to vector<8x8xf32>
    %151 = vector.extract_strided_slice %56 {offsets = [0, 0], sizes = [8, 8], strides = [1, 1]} : vector<16x8xf32> to vector<8x8xf32>
    %152 = vector.extract_strided_slice %80 {offsets = [0, 0], sizes = [8, 8], strides = [1, 1]} : vector<16x8xf32> to vector<8x8xf32>
    %cst_97 = arith.constant dense<0.000000e+00> : vector<8x8xf32>
    %153 = tpu.matmul %150, %151, %cst_97 {dimension_numbers = #tpu.dot_dimension_numbers<[1], [1], [0], [0], [0, 0, 1, 0], [], []>} : vector<8x8xf32>, vector<8x8xf32>, vector<8x8xf32> -> vector<8x8xf32>
    %cst_98 = arith.constant 0.353553385 : f32
    %154 = vector.broadcast %cst_98 : f32 to vector<8x8xf32>
    %155 = arith.mulf %153, %154 : vector<8x8xf32>
    %156 = vector.broadcast %81 : vector<1x8xf32> to vector<8x8xf32>
    %157 = arith.addf %155, %156 : vector<8x8xf32>
    %cst_99 = arith.constant dense<0xFF800000> : vector<8xf32>
    %158 = vector.multi_reduction <maximumf>, %157, %cst_99 [1] : vector<8x8xf32> to vector<8xf32>
    %159 = vector.shape_cast %158 : vector<8xf32> to vector<8x1xf32>
    %160 = vector.broadcast %159 : vector<8x1xf32> to vector<8x8xf32>
    %161 = arith.subf %157, %160 : vector<8x8xf32>
    %162 = math.exp %161 : vector<8x8xf32>
    %cst_100 = arith.constant dense<0.000000e+00> : vector<8xf32>
    %163 = vector.multi_reduction <add>, %162, %cst_100 [1] : vector<8x8xf32> to vector<8xf32>
    %164 = vector.shape_cast %163 : vector<8xf32> to vector<8x1xf32>
    %165 = tpu.reciprocal %164 {approx = true} : vector<8x1xf32> -> vector<8x1xf32>
    %166 = vector.broadcast %165 : vector<8x1xf32> to vector<8x8xf32>
    %167 = arith.mulf %162, %166 : vector<8x8xf32>
    %cst_101 = arith.constant dense<0.000000e+00> : vector<8x8xf32>
    %168 = tpu.matmul %167, %152, %cst_101 {dimension_numbers = #tpu.dot_dimension_numbers<[1], [0], [0], [1], [0, 0, 1, 1], [], []>} : vector<8x8xf32>, vector<8x8xf32>, vector<8x8xf32> -> vector<8x8xf32>
    %c0_102 = arith.constant 0 : index
    %c24 = arith.constant 24 : index
    %c0_103 = arith.constant 0 : index
    %169 = vector.load %arg3[%c0_102, %c24, %c0_103] : memref<3x64x64xf32, #tpu.memory_space<vmem>>, vector<1x8x32xf32>
    %170 = vector.shape_cast %169 : vector<1x8x32xf32> to vector<8x32xf32>
    %cst_104 = arith.constant dense<0.000000e+00> : vector<8x32xf32>
    %171 = tpu.matmul %168, %170, %cst_104 {dimension_numbers = #tpu.dot_dimension_numbers<[1], [0], [0], [1], [0, 0, 1, 1], [], []>} : vector<8x8xf32>, vector<8x32xf32>, vector<8x32xf32> -> vector<8x32xf32>
    %172 = arith.addf %149, %171 : vector<8x32xf32>
    %173 = vector.extract_strided_slice %1 {offsets = [1, 0], sizes = [1, 8], strides = [1, 1]} : vector<2x8xf32> to vector<1x8xf32>
    %174 = vector.extract_strided_slice %14 {offsets = [8, 0], sizes = [8, 8], strides = [1, 1]} : vector<16x8xf32> to vector<8x8xf32>
    %175 = vector.extract_strided_slice %38 {offsets = [8, 0], sizes = [8, 8], strides = [1, 1]} : vector<16x8xf32> to vector<8x8xf32>
    %176 = vector.extract_strided_slice %62 {offsets = [8, 0], sizes = [8, 8], strides = [1, 1]} : vector<16x8xf32> to vector<8x8xf32>
    %cst_105 = arith.constant dense<0.000000e+00> : vector<8x8xf32>
    %177 = tpu.matmul %174, %175, %cst_105 {dimension_numbers = #tpu.dot_dimension_numbers<[1], [1], [0], [0], [0, 0, 1, 0], [], []>} : vector<8x8xf32>, vector<8x8xf32>, vector<8x8xf32> -> vector<8x8xf32>
    %cst_106 = arith.constant 0.353553385 : f32
    %178 = vector.broadcast %cst_106 : f32 to vector<8x8xf32>
    %179 = arith.mulf %177, %178 : vector<8x8xf32>
    %180 = vector.broadcast %173 : vector<1x8xf32> to vector<8x8xf32>
    %181 = arith.addf %179, %180 : vector<8x8xf32>
    %cst_107 = arith.constant dense<0xFF800000> : vector<8xf32>
    %182 = vector.multi_reduction <maximumf>, %181, %cst_107 [1] : vector<8x8xf32> to vector<8xf32>
    %183 = vector.shape_cast %182 : vector<8xf32> to vector<8x1xf32>
    %184 = vector.broadcast %183 : vector<8x1xf32> to vector<8x8xf32>
    %185 = arith.subf %181, %184 : vector<8x8xf32>
    %186 = math.exp %185 : vector<8x8xf32>
    %cst_108 = arith.constant dense<0.000000e+00> : vector<8xf32>
    %187 = vector.multi_reduction <add>, %186, %cst_108 [1] : vector<8x8xf32> to vector<8xf32>
    %188 = vector.shape_cast %187 : vector<8xf32> to vector<8x1xf32>
    %189 = tpu.reciprocal %188 {approx = true} : vector<8x1xf32> -> vector<8x1xf32>
    %190 = vector.broadcast %189 : vector<8x1xf32> to vector<8x8xf32>
    %191 = arith.mulf %186, %190 : vector<8x8xf32>
    %cst_109 = arith.constant dense<0.000000e+00> : vector<8x8xf32>
    %192 = tpu.matmul %191, %176, %cst_109 {dimension_numbers = #tpu.dot_dimension_numbers<[1], [0], [0], [1], [0, 0, 1, 1], [], []>} : vector<8x8xf32>, vector<8x8xf32>, vector<8x8xf32> -> vector<8x8xf32>
    %c0_110 = arith.constant 0 : index
    %c0_111 = arith.constant 0 : index
    %c0_112 = arith.constant 0 : index
    %193 = vector.load %arg3[%c0_110, %c0_111, %c0_112] : memref<3x64x64xf32, #tpu.memory_space<vmem>>, vector<1x8x32xf32>
    %194 = vector.shape_cast %193 : vector<1x8x32xf32> to vector<8x32xf32>
    %cst_113 = arith.constant dense<0.000000e+00> : vector<8x32xf32>
    %195 = tpu.matmul %192, %194, %cst_113 {dimension_numbers = #tpu.dot_dimension_numbers<[1], [0], [0], [1], [0, 0, 1, 1], [], []>} : vector<8x8xf32>, vector<8x32xf32>, vector<8x32xf32> -> vector<8x32xf32>
    %196 = vector.extract_strided_slice %20 {offsets = [8, 0], sizes = [8, 8], strides = [1, 1]} : vector<16x8xf32> to vector<8x8xf32>
    %197 = vector.extract_strided_slice %44 {offsets = [8, 0], sizes = [8, 8], strides = [1, 1]} : vector<16x8xf32> to vector<8x8xf32>
    %198 = vector.extract_strided_slice %68 {offsets = [8, 0], sizes = [8, 8], strides = [1, 1]} : vector<16x8xf32> to vector<8x8xf32>
    %cst_114 = arith.constant dense<0.000000e+00> : vector<8x8xf32>
    %199 = tpu.matmul %196, %197, %cst_114 {dimension_numbers = #tpu.dot_dimension_numbers<[1], [1], [0], [0], [0, 0, 1, 0], [], []>} : vector<8x8xf32>, vector<8x8xf32>, vector<8x8xf32> -> vector<8x8xf32>
    %cst_115 = arith.constant 0.353553385 : f32
    %200 = vector.broadcast %cst_115 : f32 to vector<8x8xf32>
    %201 = arith.mulf %199, %200 : vector<8x8xf32>
    %202 = vector.broadcast %173 : vector<1x8xf32> to vector<8x8xf32>
    %203 = arith.addf %201, %202 : vector<8x8xf32>
    %cst_116 = arith.constant dense<0xFF800000> : vector<8xf32>
    %204 = vector.multi_reduction <maximumf>, %203, %cst_116 [1] : vector<8x8xf32> to vector<8xf32>
    %205 = vector.shape_cast %204 : vector<8xf32> to vector<8x1xf32>
    %206 = vector.broadcast %205 : vector<8x1xf32> to vector<8x8xf32>
    %207 = arith.subf %203, %206 : vector<8x8xf32>
    %208 = math.exp %207 : vector<8x8xf32>
    %cst_117 = arith.constant dense<0.000000e+00> : vector<8xf32>
    %209 = vector.multi_reduction <add>, %208, %cst_117 [1] : vector<8x8xf32> to vector<8xf32>
    %210 = vector.shape_cast %209 : vector<8xf32> to vector<8x1xf32>
    %211 = tpu.reciprocal %210 {approx = true} : vector<8x1xf32> -> vector<8x1xf32>
    %212 = vector.broadcast %211 : vector<8x1xf32> to vector<8x8xf32>
    %213 = arith.mulf %208, %212 : vector<8x8xf32>
    %cst_118 = arith.constant dense<0.000000e+00> : vector<8x8xf32>
    %214 = tpu.matmul %213, %198, %cst_118 {dimension_numbers = #tpu.dot_dimension_numbers<[1], [0], [0], [1], [0, 0, 1, 1], [], []>} : vector<8x8xf32>, vector<8x8xf32>, vector<8x8xf32> -> vector<8x8xf32>
    %c0_119 = arith.constant 0 : index
    %c8_120 = arith.constant 8 : index
    %c0_121 = arith.constant 0 : index
    %215 = vector.load %arg3[%c0_119, %c8_120, %c0_121] : memref<3x64x64xf32, #tpu.memory_space<vmem>>, vector<1x8x32xf32>
    %216 = vector.shape_cast %215 : vector<1x8x32xf32> to vector<8x32xf32>
    %cst_122 = arith.constant dense<0.000000e+00> : vector<8x32xf32>
    %217 = tpu.matmul %214, %216, %cst_122 {dimension_numbers = #tpu.dot_dimension_numbers<[1], [0], [0], [1], [0, 0, 1, 1], [], []>} : vector<8x8xf32>, vector<8x32xf32>, vector<8x32xf32> -> vector<8x32xf32>
    %218 = arith.addf %195, %217 : vector<8x32xf32>
    %219 = vector.extract_strided_slice %26 {offsets = [8, 0], sizes = [8, 8], strides = [1, 1]} : vector<16x8xf32> to vector<8x8xf32>
    %220 = vector.extract_strided_slice %50 {offsets = [8, 0], sizes = [8, 8], strides = [1, 1]} : vector<16x8xf32> to vector<8x8xf32>
    %221 = vector.extract_strided_slice %74 {offsets = [8, 0], sizes = [8, 8], strides = [1, 1]} : vector<16x8xf32> to vector<8x8xf32>
    %cst_123 = arith.constant dense<0.000000e+00> : vector<8x8xf32>
    %222 = tpu.matmul %219, %220, %cst_123 {dimension_numbers = #tpu.dot_dimension_numbers<[1], [1], [0], [0], [0, 0, 1, 0], [], []>} : vector<8x8xf32>, vector<8x8xf32>, vector<8x8xf32> -> vector<8x8xf32>
    %cst_124 = arith.constant 0.353553385 : f32
    %223 = vector.broadcast %cst_124 : f32 to vector<8x8xf32>
    %224 = arith.mulf %222, %223 : vector<8x8xf32>
    %225 = vector.broadcast %173 : vector<1x8xf32> to vector<8x8xf32>
    %226 = arith.addf %224, %225 : vector<8x8xf32>
    %cst_125 = arith.constant dense<0xFF800000> : vector<8xf32>
    %227 = vector.multi_reduction <maximumf>, %226, %cst_125 [1] : vector<8x8xf32> to vector<8xf32>
    %228 = vector.shape_cast %227 : vector<8xf32> to vector<8x1xf32>
    %229 = vector.broadcast %228 : vector<8x1xf32> to vector<8x8xf32>
    %230 = arith.subf %226, %229 : vector<8x8xf32>
    %231 = math.exp %230 : vector<8x8xf32>
    %cst_126 = arith.constant dense<0.000000e+00> : vector<8xf32>
    %232 = vector.multi_reduction <add>, %231, %cst_126 [1] : vector<8x8xf32> to vector<8xf32>
    %233 = vector.shape_cast %232 : vector<8xf32> to vector<8x1xf32>
    %234 = tpu.reciprocal %233 {approx = true} : vector<8x1xf32> -> vector<8x1xf32>
    %235 = vector.broadcast %234 : vector<8x1xf32> to vector<8x8xf32>
    %236 = arith.mulf %231, %235 : vector<8x8xf32>
    %cst_127 = arith.constant dense<0.000000e+00> : vector<8x8xf32>
    %237 = tpu.matmul %236, %221, %cst_127 {dimension_numbers = #tpu.dot_dimension_numbers<[1], [0], [0], [1], [0, 0, 1, 1], [], []>} : vector<8x8xf32>, vector<8x8xf32>, vector<8x8xf32> -> vector<8x8xf32>
    %c0_128 = arith.constant 0 : index
    %c16_129 = arith.constant 16 : index
    %c0_130 = arith.constant 0 : index
    %238 = vector.load %arg3[%c0_128, %c16_129, %c0_130] : memref<3x64x64xf32, #tpu.memory_space<vmem>>, vector<1x8x32xf32>
    %239 = vector.shape_cast %238 : vector<1x8x32xf32> to vector<8x32xf32>
    %cst_131 = arith.constant dense<0.000000e+00> : vector<8x32xf32>
    %240 = tpu.matmul %237, %239, %cst_131 {dimension_numbers = #tpu.dot_dimension_numbers<[1], [0], [0], [1], [0, 0, 1, 1], [], []>} : vector<8x8xf32>, vector<8x32xf32>, vector<8x32xf32> -> vector<8x32xf32>
    %241 = arith.addf %218, %240 : vector<8x32xf32>
    %242 = vector.extract_strided_slice %32 {offsets = [8, 0], sizes = [8, 8], strides = [1, 1]} : vector<16x8xf32> to vector<8x8xf32>
    %243 = vector.extract_strided_slice %56 {offsets = [8, 0], sizes = [8, 8], strides = [1, 1]} : vector<16x8xf32> to vector<8x8xf32>
    %244 = vector.extract_strided_slice %80 {offsets = [8, 0], sizes = [8, 8], strides = [1, 1]} : vector<16x8xf32> to vector<8x8xf32>
    %cst_132 = arith.constant dense<0.000000e+00> : vector<8x8xf32>
    %245 = tpu.matmul %242, %243, %cst_132 {dimension_numbers = #tpu.dot_dimension_numbers<[1], [1], [0], [0], [0, 0, 1, 0], [], []>} : vector<8x8xf32>, vector<8x8xf32>, vector<8x8xf32> -> vector<8x8xf32>
    %cst_133 = arith.constant 0.353553385 : f32
    %246 = vector.broadcast %cst_133 : f32 to vector<8x8xf32>
    %247 = arith.mulf %245, %246 : vector<8x8xf32>
    %248 = vector.broadcast %173 : vector<1x8xf32> to vector<8x8xf32>
    %249 = arith.addf %247, %248 : vector<8x8xf32>
    %cst_134 = arith.constant dense<0xFF800000> : vector<8xf32>
    %250 = vector.multi_reduction <maximumf>, %249, %cst_134 [1] : vector<8x8xf32> to vector<8xf32>
    %251 = vector.shape_cast %250 : vector<8xf32> to vector<8x1xf32>
    %252 = vector.broadcast %251 : vector<8x1xf32> to vector<8x8xf32>
    %253 = arith.subf %249, %252 : vector<8x8xf32>
    %254 = math.exp %253 : vector<8x8xf32>
    %cst_135 = arith.constant dense<0.000000e+00> : vector<8xf32>
    %255 = vector.multi_reduction <add>, %254, %cst_135 [1] : vector<8x8xf32> to vector<8xf32>
    %256 = vector.shape_cast %255 : vector<8xf32> to vector<8x1xf32>
    %257 = tpu.reciprocal %256 {approx = true} : vector<8x1xf32> -> vector<8x1xf32>
    %258 = vector.broadcast %257 : vector<8x1xf32> to vector<8x8xf32>
    %259 = arith.mulf %254, %258 : vector<8x8xf32>
    %cst_136 = arith.constant dense<0.000000e+00> : vector<8x8xf32>
    %260 = tpu.matmul %259, %244, %cst_136 {dimension_numbers = #tpu.dot_dimension_numbers<[1], [0], [0], [1], [0, 0, 1, 1], [], []>} : vector<8x8xf32>, vector<8x8xf32>, vector<8x8xf32> -> vector<8x8xf32>
    %c0_137 = arith.constant 0 : index
    %c24_138 = arith.constant 24 : index
    %c0_139 = arith.constant 0 : index
    %261 = vector.load %arg3[%c0_137, %c24_138, %c0_139] : memref<3x64x64xf32, #tpu.memory_space<vmem>>, vector<1x8x32xf32>
    %262 = vector.shape_cast %261 : vector<1x8x32xf32> to vector<8x32xf32>
    %cst_140 = arith.constant dense<0.000000e+00> : vector<8x32xf32>
    %263 = tpu.matmul %260, %262, %cst_140 {dimension_numbers = #tpu.dot_dimension_numbers<[1], [0], [0], [1], [0, 0, 1, 1], [], []>} : vector<8x8xf32>, vector<8x32xf32>, vector<8x32xf32> -> vector<8x32xf32>
    %264 = arith.addf %241, %263 : vector<8x32xf32>
    %265 = tpu.concatenate %172, %264 in 0 : vector<8x32xf32>, vector<8x32xf32> -> vector<16x32xf32>
    %266 = vector.broadcast %3 : vector<1x32xf32> to vector<16x32xf32>
    %267 = arith.addf %265, %266 : vector<16x32xf32>
    %268 = arith.addf %267, %0 : vector<16x32xf32>
    %cst_141 = arith.constant dense<0.000000e+00> : vector<16xf32>
    %269 = vector.multi_reduction <add>, %268, %cst_141 [1] : vector<16x32xf32> to vector<16xf32>
    %270 = vector.shape_cast %269 : vector<16xf32> to vector<16x1xf32>
    %cst_142 = arith.constant 3.200000e+01 : f32
    %271 = vector.broadcast %cst_142 : f32 to vector<16x1xf32>
    %272 = arith.divf %270, %271 : vector<16x1xf32>
    %273 = vector.broadcast %272 : vector<16x1xf32> to vector<16x32xf32>
    %274 = arith.subf %268, %273 : vector<16x32xf32>
    %275 = arith.mulf %274, %274 : vector<16x32xf32>
    %cst_143 = arith.constant dense<0.000000e+00> : vector<16xf32>
    %276 = vector.multi_reduction <add>, %275, %cst_143 [1] : vector<16x32xf32> to vector<16xf32>
    %277 = vector.shape_cast %276 : vector<16xf32> to vector<16x1xf32>
    %cst_144 = arith.constant 3.200000e+01 : f32
    %278 = vector.broadcast %cst_144 : f32 to vector<16x1xf32>
    %279 = arith.divf %277, %278 : vector<16x1xf32>
    %280 = vector.broadcast %272 : vector<16x1xf32> to vector<16x32xf32>
    %281 = arith.subf %268, %280 : vector<16x32xf32>
    %cst_145 = arith.constant 9.99999996E-13 : f32
    %282 = vector.broadcast %cst_145 : f32 to vector<16x1xf32>
    %283 = arith.addf %279, %282 : vector<16x1xf32>
    %284 = math.rsqrt %283 : vector<16x1xf32>
    %285 = vector.broadcast %284 : vector<16x1xf32> to vector<16x32xf32>
    %286 = arith.mulf %281, %285 : vector<16x32xf32>
    %287 = vector.broadcast %4 : vector<1x32xf32> to vector<16x32xf32>
    %288 = arith.mulf %286, %287 : vector<16x32xf32>
    %289 = vector.broadcast %5 : vector<1x32xf32> to vector<16x32xf32>
    %290 = arith.addf %288, %289 : vector<16x32xf32>
    %c1_146 = arith.constant 1 : index
    %c0_147 = arith.constant 0 : index
    %c0_148 = arith.constant 0 : index
    %291 = vector.load %arg3[%c1_146, %c0_147, %c0_148] : memref<3x64x64xf32, #tpu.memory_space<vmem>>, vector<1x32x64xf32>
    %292 = vector.shape_cast %291 : vector<1x32x64xf32> to vector<32x64xf32>
    %c2_149 = arith.constant 2 : index
    %c0_150 = arith.constant 0 : index
    %c0_151 = arith.constant 0 : index
    %293 = vector.load %arg3[%c2_149, %c0_150, %c0_151] : memref<3x64x64xf32, #tpu.memory_space<vmem>>, vector<1x64x32xf32>
    %294 = vector.shape_cast %293 : vector<1x64x32xf32> to vector<64x32xf32>
    %cst_152 = arith.constant dense<0.000000e+00> : vector<16x64xf32>
    %295 = tpu.matmul %290, %292, %cst_152 {dimension_numbers = #tpu.dot_dimension_numbers<[1], [0], [0], [1], [0, 0, 1, 1], [], []>} : vector<16x32xf32>, vector<32x64xf32>, vector<16x64xf32> -> vector<16x64xf32>
    %296 = vector.broadcast %2 : vector<1x64xf32> to vector<16x64xf32>
    %297 = arith.addf %295, %296 : vector<16x64xf32>
    %cst_153 = arith.constant 5.000000e-01 : f32
    %298 = vector.broadcast %cst_153 : f32 to vector<16x64xf32>
    %299 = arith.mulf %298, %297 : vector<16x64xf32>
    %cst_154 = arith.constant 0.707106769 : f32
    %300 = vector.broadcast %cst_154 : f32 to vector<16x64xf32>
    %301 = arith.mulf %297, %300 : vector<16x64xf32>
    %302 = math.erf %301 : vector<16x64xf32>
    %cst_155 = arith.constant 1.000000e+00 : f32
    %303 = vector.broadcast %cst_155 : f32 to vector<16x64xf32>
    %304 = arith.addf %303, %302 : vector<16x64xf32>
    %305 = arith.mulf %299, %304 : vector<16x64xf32>
    %cst_156 = arith.constant dense<0.000000e+00> : vector<16x32xf32>
    %306 = tpu.matmul %305, %294, %cst_156 {dimension_numbers = #tpu.dot_dimension_numbers<[1], [0], [0], [1], [0, 0, 1, 1], [], []>} : vector<16x64xf32>, vector<64x32xf32>, vector<16x32xf32> -> vector<16x32xf32>
    %307 = vector.broadcast %6 : vector<1x32xf32> to vector<16x32xf32>
    %308 = arith.addf %306, %307 : vector<16x32xf32>
    %309 = arith.addf %308, %290 : vector<16x32xf32>
    %cst_157 = arith.constant dense<0.000000e+00> : vector<16xf32>
    %310 = vector.multi_reduction <add>, %309, %cst_157 [1] : vector<16x32xf32> to vector<16xf32>
    %311 = vector.shape_cast %310 : vector<16xf32> to vector<16x1xf32>
    %cst_158 = arith.constant 3.200000e+01 : f32
    %312 = vector.broadcast %cst_158 : f32 to vector<16x1xf32>
    %313 = arith.divf %311, %312 : vector<16x1xf32>
    %314 = vector.broadcast %313 : vector<16x1xf32> to vector<16x32xf32>
    %315 = arith.subf %309, %314 : vector<16x32xf32>
    %316 = arith.mulf %315, %315 : vector<16x32xf32>
    %cst_159 = arith.constant dense<0.000000e+00> : vector<16xf32>
    %317 = vector.multi_reduction <add>, %316, %cst_159 [1] : vector<16x32xf32> to vector<16xf32>
    %318 = vector.shape_cast %317 : vector<16xf32> to vector<16x1xf32>
    %cst_160 = arith.constant 3.200000e+01 : f32
    %319 = vector.broadcast %cst_160 : f32 to vector<16x1xf32>
    %320 = arith.divf %318, %319 : vector<16x1xf32>
    %321 = vector.broadcast %313 : vector<16x1xf32> to vector<16x32xf32>
    %322 = arith.subf %309, %321 : vector<16x32xf32>
    %cst_161 = arith.constant 9.99999996E-13 : f32
    %323 = vector.broadcast %cst_161 : f32 to vector<16x1xf32>
    %324 = arith.addf %320, %323 : vector<16x1xf32>
    %325 = math.rsqrt %324 : vector<16x1xf32>
    %326 = vector.broadcast %325 : vector<16x1xf32> to vector<16x32xf32>
    %327 = arith.mulf %322, %326 : vector<16x32xf32>
    %328 = vector.broadcast %7 : vector<1x32xf32> to vector<16x32xf32>
    %329 = arith.mulf %327, %328 : vector<16x32xf32>
    %330 = vector.broadcast %8 : vector<1x32xf32> to vector<16x32xf32>
    %331 = arith.addf %329, %330 : vector<16x32xf32>
    %c0_162 = arith.constant 0 : index
    %c0_163 = arith.constant 0 : index
    %332 = vector.load %arg5[%c0_162, %c0_163] : memref<16x32xf32, #tpu.memory_space<vmem>>, vector<16x32xf32>
    tpu.vector_store %arg5[%c0_162, %c0_163], %331 {strides = array<i32>} : memref<16x32xf32, #tpu.memory_space<vmem>>, vector<16x32xf32>,
    return
  }
}

</mosaic_0001>

<llo_original>
// kernel: tpu_custom_call.1
$region0: #{tpu_custom_call.1}
  #allocation0 [shape = 'u32[]', space=smem, size = 0x4, offset = 0x4, fixed_abs, tag = 'smem constant byte address 0x4 - core index']
  #allocation1 [shape = 'u32[144,128]{1,0:T(1,128)}', space=vmem, size = 0x12000, scoped, tag = 'internal scratch']
  %s0 = inlined_call_operand.vmem [shape: f32[16,32], index: 0, kind: input, shape index: {}]
  %s1 = inlined_call_operand.vmem [shape: f32[2,8], index: 1, kind: input, shape index: {}]
  %s2 = inlined_call_operand.vmem [shape: f32[12,32,8], index: 2, kind: input, shape index: {}]
  %s3 = inlined_call_operand.vmem [shape: f32[3,64,64], index: 3, kind: input, shape index: {}]
  %s4 = inlined_call_operand.vmem [shape: f32[19,64], index: 4, kind: input, shape index: {}]
  %s5 = inlined_call_operand.hbm [shape: f32[16,32], index: 5, kind: output, shape index: {}]
  %s6 = sld [smem:[#allocation0]]
  $region30: #{tpu_custom_call.1} parent=0
    _
  %s8 = ssub.s32 1, %s6
  %s9 = scalar_select 0, %s8, %s6
  $region1: #{tpu_custom_call.1} parent=0
    #allocation2 [shape = 'u8[8192]{0}', space=vmem, size = 0x2000, scoped, tag = 'output window, operand 0, single buffered']
    #allocation3 [shape = 's32[1]{0}', space=sflag, size = 0x4, scoped, tag = 'scoped memory for tpu_custom_call.1']
    %10 = vsyncpa [#allocation3], 0
    // Predicated region
    $region2: #{tpu_custom_call.1} parent=1 // pred_check
      _
    $region3: #{tpu_custom_call.1} parent=1 // pred_check_branch
      %12 = sbr.rel (0) target = $region5
    $region4: #{tpu_custom_call.1} parent=1 // pred_region
      _
    $region5: #{tpu_custom_call.1} parent=1 // pred_fallthru
      _
    // Predicated region
    $region6: #{tpu_custom_call.1} parent=1 // pred_check
      _
    $region7: #{tpu_custom_call.1} parent=1 // pred_check_branch
      %14 = sbr.rel (0) target = $region9
    $region8: #{tpu_custom_call.1} parent=1 // pred_region
      _
    $region9: #{tpu_custom_call.1} parent=1 // pred_fallthru
      _
    // Predicated region
    $region10: #{tpu_custom_call.1} parent=1 // pred_check
      _
    $region11: #{tpu_custom_call.1} parent=1 // pred_check_branch
      %16 = sbr.rel (0) target = $region13
    $region12: #{tpu_custom_call.1} parent=1 // pred_region
      _
    $region13: #{tpu_custom_call.1} parent=1 // pred_fallthru
      _
    // Predicated region
    $region14: #{tpu_custom_call.1} parent=1 // pred_check
      _
    $region15: #{tpu_custom_call.1} parent=1 // pred_check_branch
      %18 = sbr.rel (0) target = $region17
    $region16: #{tpu_custom_call.1} parent=1 // pred_region
      _
    $region17: #{tpu_custom_call.1} parent=1 // pred_fallthru
      _
    // Predicated region
    $region18: #{tpu_custom_call.1} parent=1 // pred_check
      _
    $region19: #{tpu_custom_call.1} parent=1 // pred_check_branch
      %20 = sbr.rel (0) target = $region21
    $region20: #{tpu_custom_call.1} parent=1 // pred_region
      _
    $region21: #{tpu_custom_call.1} parent=1 // pred_fallthru
      _
    %v21 = vld [vmem:[%s0] sm:$0xff]
    %v22 = vld [vmem:[%s0 + $0x8] sm:$0xff]
    %v23 = vld [vmem:[%s1] sm:$0x3]
    %v24 = vld [vmem:[%s4] sm:$0x1]
    %v25 = vld [vmem:[%s4 + $0x1] sm:$0x1]
    %v26 = vld [vmem:[%s4 + $0x2] sm:$0x1]
    %v27 = vld [vmem:[%s4 + $0x3] sm:$0x1]
    %v28 = vld [vmem:[%s4 + $0x4] sm:$0x1]
    %v29 = vld [vmem:[%s4 + $0x5] sm:$0x1]
    %v30 = vld [vmem:[%s4 + $0x6] sm:$0x1]
    %v31 = vld [vmem:[%s2] sm:$0xff]
    %v32 = vld [vmem:[%s2 + $0x8] sm:$0xff]
    %v33 = vld [vmem:[%s2 + $0x10] sm:$0xff]
    %v34 = vld [vmem:[%s2 + $0x18] sm:$0xff]
    %v35 = vld [vmem:[%s4 + $0x7] sm:$0x1]
    %v36 = vlaneseq
    %v37 = vshrl.u32 %v36, 7
    %v38 = vsub.s32 0, %v37
    %v39 = vrot.slane %v35, %v38
    %vm40 = vcmask 261120
    %v42 = vsel %vm40, %v21, 0
    %v45 = vsel %vm40, %v22, 0
    %47 = vmatprep.subr.mxu0 0.0
    %48 = vmatpush1.msra.mxu0 0.0
    %49 = vmatprep.subr.mxu0 0.0
    %50 = vmatpush1.msra.mxu0 0.0
    %51 = vmatprep.subr.mxu0 0.0
    %52 = vmatpush1.msra.mxu0 0.0
    %53 = vmatprep.subr.mxu0 0.0
    %54 = vmatpush1.msra.mxu0 0.0
    %55 = vmatprep.subr.mxu0 0.0
    %56 = vmatpush1.msra.mxu0 0.0
    %57 = vmatprep.subr.mxu0 0.0
    %58 = vmatpush1.msra.mxu0 0.0
    %59 = vmatprep.subr.mxu0 0.0
    %60 = vmatpush1.msra.mxu0 0.0
    %61 = vmatprep.subr.mxu0 0.0
    %62 = vmatpush1.msra.mxu0 0.0
    %63 = vmatprep.subr.mxu0 0.0
    %64 = vmatpush1.msra.mxu0 0.0
    %65 = vmatprep.subr.mxu0 0.0
    %66 = vmatpush1.msra.mxu0 0.0
    %67 = vmatprep.subr.mxu0 0.0
    %68 = vmatpush1.msra.mxu0 0.0
    %69 = vmatprep.subr.mxu0 0.0
    %70 = vmatpush1.msra.mxu0 0.0
    %71 = vmatprep.subr.mxu0 0.0
    %72 = vmatpush1.msra.mxu0 %v34
    %73 = vmatprep.subr.mxu0 0.0
    %74 = vmatpush1.msra.mxu0 %v33
    %75 = vmatprep.subr.mxu0 0.0
    %76 = vmatpush1.msra.mxu0 %v32
    %77 = vmatprep.subr.mxu0 0.0
    %78 = vmatpush1.msra.mxu0 %v31
    %79 = vmatprep.subr.mxu0 0.0
    %80 = vmatpush2.msra.mxu0 0.0
    %81 = vmatprep.subr.mxu0 0.0
    %82 = vmatpush2.msra.mxu0 0.0
    %83 = vmatprep.subr.mxu0 0.0
    %84 = vmatpush2.msra.mxu0 0.0
    %85 = vmatprep.subr.mxu0 0.0
    %86 = vmatpush2.msra.mxu0 0.0
    %87 = vmatprep.subr.mxu0 0.0
    %88 = vmatpush2.msra.mxu0 0.0
    %89 = vmatprep.subr.mxu0 0.0
    %90 = vmatpush2.msra.mxu0 0.0
    %91 = vmatprep.subr.mxu0 0.0
    %92 = vmatpush2.msra.mxu0 0.0
    %93 = vmatprep.subr.mxu0 0.0
    %94 = vmatpush2.msra.mxu0 0.0
    %95 = vmatprep.subr.mxu0 0.0
    %96 = vmatpush2.msra.mxu0 0.0
    %97 = vmatprep.subr.mxu0 0.0
    %98 = vmatpush2.msra.mxu0 0.0
    %99 = vmatprep.subr.mxu0 0.0
    %100 = vmatpush2.msra.mxu0 0.0
    %101 = vmatprep.subr.mxu0 0.0
    %102 = vmatpush2.msra.mxu0 0.0
    %103 = vmatprep.subr.mxu0 0.0
    %104 = vmatpush2.msra.mxu0 0.0
    %105 = vmatprep.subr.mxu0 0.0
    %106 = vmatpush2.msra.mxu0 0.0
    %107 = vmatprep.subr.mxu0 0.0
    %108 = vmatpush2.msra.mxu0 0.0
    %109 = vmatprep.subr.mxu0 0.0
    %110 = vmatpush2.msra.mxu0 0.0
    %111 = vmatprep.mubr.f32.mxu0 0.0
    %112 = vmatmul.mubr.f32.gmra.mxu0 %v42
    %v113 = vpop.f32.mrf.mxu0
    %v114 = vadd.f32 %v39, %v113
    %v115 = vpop.f32.mrf.mxu0
    %116 = vmatprep.mubr.f32.mxu0 0.0
    %117 = vmatmul.mubr.f32.gmra.mxu0 %v45
    %v118 = vpop.f32.mrf.mxu0
    %v119 = vadd.f32 %v39, %v118
    %v120 = vpop.f32.mrf.mxu0
    %121 = vdwg.mxu0
    %s122 = scalar_lea.vmem %s2, 32
    %v123 = vld [vmem:[%s122] sm:$0xff]
    %v124 = vld [vmem:[%s122 + $0x8] sm:$0xff]
    %v125 = vld [vmem:[%s122 + $0x10] sm:$0xff]
    %v126 = vld [vmem:[%s122 + $0x18] sm:$0xff]
    %v127 = vld [vmem:[%s4 + $0x8] sm:$0x1]
    %v128 = vlaneseq
    %v129 = vshrl.u32 %v128, 7
    %v130 = vsub.s32 0, %v129
    %v131 = vrot.slane %v127, %v130
    %132 = vmatprep.subr.mxu0 0.0
    %133 = vmatpush1.msra.mxu0 0.0
    %134 = vmatprep.subr.mxu0 0.0
    %135 = vmatpush1.msra.mxu0 0.0
    %136 = vmatprep.subr.mxu0 0.0
    %137 = vmatpush1.msra.mxu0 0.0
    %138 = vmatprep.subr.mxu0 0.0
    %139 = vmatpush1.msra.mxu0 0.0
    %140 = vmatprep.subr.mxu0 0.0
    %141 = vmatpush1.msra.mxu0 0.0
    %142 = vmatprep.subr.mxu0 0.0
    %143 = vmatpush1.msra.mxu0 0.0
    %144 = vmatprep.subr.mxu0 0.0
    %145 = vmatpush1.msra.mxu0 0.0
    %146 = vmatprep.subr.mxu0 0.0
    %147 = vmatpush1.msra.mxu0 0.0
    %148 = vmatprep.subr.mxu0 0.0
    %149 = vmatpush1.msra.mxu0 0.0
    %150 = vmatprep.subr.mxu0 0.0
    %151 = vmatpush1.msra.mxu0 0.0
    %152 = vmatprep.subr.mxu0 0.0
    %153 = vmatpush1.msra.mxu0 0.0
    %154 = vmatprep.subr.mxu0 0.0
    %155 = vmatpush1.msra.mxu0 0.0
    %156 = vmatprep.subr.mxu0 0.0
    %157 = vmatpush1.msra.mxu0 %v126
    %158 = vmatprep.subr.mxu0 0.0
    %159 = vmatpush1.msra.mxu0 %v125
    %160 = vmatprep.subr.mxu0 0.0
    %161 = vmatpush1.msra.mxu0 %v124
    %162 = vmatprep.subr.mxu0 0.0
    %163 = vmatpush1.msra.mxu0 %v123
    %164 = vmatprep.subr.mxu0 0.0
    %165 = vmatpush2.msra.mxu0 0.0
    %166 = vmatprep.subr.mxu0 0.0
    %167 = vmatpush2.msra.mxu0 0.0
    %168 = vmatprep.subr.mxu0 0.0
    %169 = vmatpush2.msra.mxu0 0.0
    %170 = vmatprep.subr.mxu0 0.0
    %171 = vmatpush2.msra.mxu0 0.0
    %172 = vmatprep.subr.mxu0 0.0
    %173 = vmatpush2.msra.mxu0 0.0
    %174 = vmatprep.subr.mxu0 0.0
    %175 = vmatpush2.msra.mxu0 0.0
    %176 = vmatprep.subr.mxu0 0.0
    %177 = vmatpush2.msra.mxu0 0.0
    %178 = vmatprep.subr.mxu0 0.0
    %179 = vmatpush2.msra.mxu0 0.0
    %180 = vmatprep.subr.mxu0 0.0
    %181 = vmatpush2.msra.mxu0 0.0
    %182 = vmatprep.subr.mxu0 0.0
    %183 = vmatpush2.msra.mxu0 0.0
    %184 = vmatprep.subr.mxu0 0.0
    %185 = vmatpush2.msra.mxu0 0.0
    %186 = vmatprep.subr.mxu0 0.0
    %187 = vmatpush2.msra.mxu0 0.0
    %188 = vmatprep.subr.mxu0 0.0
    %189 = vmatpush2.msra.mxu0 0.0
    %190 = vmatprep.subr.mxu0 0.0
    %191 = vmatpush2.msra.mxu0 0.0
    %192 = vmatprep.subr.mxu0 0.0
    %193 = vmatpush2.msra.mxu0 0.0
    %194 = vmatprep.subr.mxu0 0.0
    %195 = vmatpush2.msra.mxu0 0.0
    %196 = vmatprep.mubr.f32.mxu0 0.0
    %197 = vmatmul.mubr.f32.gmra.mxu0 %v42
    %v198 = vpop.f32.mrf.mxu0
    %v199 = vadd.f32 %v131, %v198
    %v200 = vpop.f32.mrf.mxu0
    %201 = vmatprep.mubr.f32.mxu0 0.0
    %202 = vmatmul.mubr.f32.gmra.mxu0 %v45
    %v203 = vpop.f32.mrf.mxu0
    %v204 = vadd.f32 %v131, %v203
    %v205 = vpop.f32.mrf.mxu0
    %206 = vdwg.mxu0
    %s207 = scalar_lea.vmem %s2, 64
    %v208 = vld [vmem:[%s207] sm:$0xff]
    %v209 = vld [vmem:[%s207 + $0x8] sm:$0xff]
    %v210 = vld [vmem:[%s207 + $0x10] sm:$0xff]
    %v211 = vld [vmem:[%s207 + $0x18] sm:$0xff]
    %v212 = vld [vmem:[%s4 + $0x9] sm:$0x1]
    %v213 = vlaneseq
    %v214 = vshrl.u32 %v213, 7
    %v215 = vsub.s32 0, %v214
    %v216 = vrot.slane %v212, %v215
    %217 = vmatprep.subr.mxu0 0.0
    %218 = vmatpush1.msra.mxu0 0.0
    %219 = vmatprep.subr.mxu0 0.0
    %220 = vmatpush1.msra.mxu0 0.0
    %221 = vmatprep.subr.mxu0 0.0
    %222 = vmatpush1.msra.mxu0 0.0
    %223 = vmatprep.subr.mxu0 0.0
    %224 = vmatpush1.msra.mxu0 0.0
    %225 = vmatprep.subr.mxu0 0.0
    %226 = vmatpush1.msra.mxu0 0.0
    %227 = vmatprep.subr.mxu0 0.0
    %228 = vmatpush1.msra.mxu0 0.0
    %229 = vmatprep.subr.mxu0 0.0
    %230 = vmatpush1.msra.mxu0 0.0
    %231 = vmatprep.subr.mxu0 0.0
    %232 = vmatpush1.msra.mxu0 0.0
    %233 = vmatprep.subr.mxu0 0.0
    %234 = vmatpush1.msra.mxu0 0.0
    %235 = vmatprep.subr.mxu0 0.0
    %236 = vmatpush1.msra.mxu0 0.0
    %237 = vmatprep.subr.mxu0 0.0
    %238 = vmatpush1.msra.mxu0 0.0
    %239 = vmatprep.subr.mxu0 0.0
    %240 = vmatpush1.msra.mxu0 0.0
    %241 = vmatprep.subr.mxu0 0.0
    %242 = vmatpush1.msra.mxu0 %v211
    %243 = vmatprep.subr.mxu0 0.0
    %244 = vmatpush1.msra.mxu0 %v210
    %245 = vmatprep.subr.mxu0 0.0
    %246 = vmatpush1.msra.mxu0 %v209
    %247 = vmatprep.subr.mxu0 0.0
    %248 = vmatpush1.msra.mxu0 %v208
    %249 = vmatprep.subr.mxu0 0.0
    %250 = vmatpush2.msra.mxu0 0.0
    %251 = vmatprep.subr.mxu0 0.0
    %252 = vmatpush2.msra.mxu0 0.0
    %253 = vmatprep.subr.mxu0 0.0
    %254 = vmatpush2.msra.mxu0 0.0
    %255 = vmatprep.subr.mxu0 0.0
    %256 = vmatpush2.msra.mxu0 0.0
    %257 = vmatprep.subr.mxu0 0.0
    %258 = vmatpush2.msra.mxu0 0.0
    %259 = vmatprep.subr.mxu0 0.0
    %260 = vmatpush2.msra.mxu0 0.0
    %261 = vmatprep.subr.mxu0 0.0
    %262 = vmatpush2.msra.mxu0 0.0
    %263 = vmatprep.subr.mxu0 0.0
    %264 = vmatpush2.msra.mxu0 0.0
    %265 = vmatprep.subr.mxu0 0.0
    %266 = vmatpush2.msra.mxu0 0.0
    %267 = vmatprep.subr.mxu0 0.0
    %268 = vmatpush2.msra.mxu0 0.0
    %269 = vmatprep.subr.mxu0 0.0
    %270 = vmatpush2.msra.mxu0 0.0
    %271 = vmatprep.subr.mxu0 0.0
    %272 = vmatpush2.msra.mxu0 0.0
    %273 = vmatprep.subr.mxu0 0.0
    %274 = vmatpush2.msra.mxu0 0.0
    %275 = vmatprep.subr.mxu0 0.0
    %276 = vmatpush2.msra.mxu0 0.0
    %277 = vmatprep.subr.mxu0 0.0
    %278 = vmatpush2.msra.mxu0 0.0
    %279 = vmatprep.subr.mxu0 0.0
    %280 = vmatpush2.msra.mxu0 0.0
    %281 = vmatprep.mubr.f32.mxu0 0.0
    %282 = vmatmul.mubr.f32.gmra.mxu0 %v42
    %v283 = vpop.f32.mrf.mxu0
    %v284 = vadd.f32 %v216, %v283
    %v285 = vpop.f32.mrf.mxu0
    %286 = vmatprep.mubr.f32.mxu0 0.0
    %287 = vmatmul.mubr.f32.gmra.mxu0 %v45
    %v288 = vpop.f32.mrf.mxu0
    %v289 = vadd.f32 %v216, %v288
    %v290 = vpop.f32.mrf.mxu0
    %291 = vdwg.mxu0
    %s292 = scalar_lea.vmem %s2, 96
    %v293 = vld [vmem:[%s292] sm:$0xff]
    %v294 = vld [vmem:[%s292 + $0x8] sm:$0xff]
    %v295 = vld [vmem:[%s292 + $0x10] sm:$0xff]
    %v296 = vld [vmem:[%s292 + $0x18] sm:$0xff]
    %v297 = vld [vmem:[%s4 + $0xa] sm:$0x1]
    %v298 = vlaneseq
    %v299 = vshrl.u32 %v298, 7
    %v300 = vsub.s32 0, %v299
    %v301 = vrot.slane %v297, %v300
    %302 = vmatprep.subr.mxu0 0.0
    %303 = vmatpush1.msra.mxu0 0.0
    %304 = vmatprep.subr.mxu0 0.0
    %305 = vmatpush1.msra.mxu0 0.0
    %306 = vmatprep.subr.mxu0 0.0
    %307 = vmatpush1.msra.mxu0 0.0
    %308 = vmatprep.subr.mxu0 0.0
    %309 = vmatpush1.msra.mxu0 0.0
    %310 = vmatprep.subr.mxu0 0.0
    %311 = vmatpush1.msra.mxu0 0.0
    %312 = vmatprep.subr.mxu0 0.0
    %313 = vmatpush1.msra.mxu0 0.0
    %314 = vmatprep.subr.mxu0 0.0
    %315 = vmatpush1.msra.mxu0 0.0
    %316 = vmatprep.subr.mxu0 0.0
    %317 = vmatpush1.msra.mxu0 0.0
    %318 = vmatprep.subr.mxu0 0.0
    %319 = vmatpush1.msra.mxu0 0.0
    %320 = vmatprep.subr.mxu0 0.0
    %321 = vmatpush1.msra.mxu0 0.0
    %322 = vmatprep.subr.mxu0 0.0
    %323 = vmatpush1.msra.mxu0 0.0
    %324 = vmatprep.subr.mxu0 0.0
    %325 = vmatpush1.msra.mxu0 0.0
    %326 = vmatprep.subr.mxu0 0.0
    %327 = vmatpush1.msra.mxu0 %v296
    %328 = vmatprep.subr.mxu0 0.0
    %329 = vmatpush1.msra.mxu0 %v295
    %330 = vmatprep.subr.mxu0 0.0
    %331 = vmatpush1.msra.mxu0 %v294
    %332 = vmatprep.subr.mxu0 0.0
    %333 = vmatpush1.msra.mxu0 %v293
    %334 = vmatprep.subr.mxu0 0.0
    %335 = vmatpush2.msra.mxu0 0.0
    %336 = vmatprep.subr.mxu0 0.0
    %337 = vmatpush2.msra.mxu0 0.0
    %338 = vmatprep.subr.mxu0 0.0
    %339 = vmatpush2.msra.mxu0 0.0
    %340 = vmatprep.subr.mxu0 0.0
    %341 = vmatpush2.msra.mxu0 0.0
    %342 = vmatprep.subr.mxu0 0.0
    %343 = vmatpush2.msra.mxu0 0.0
    %344 = vmatprep.subr.mxu0 0.0
    %345 = vmatpush2.msra.mxu0 0.0
    %346 = vmatprep.subr.mxu0 0.0
    %347 = vmatpush2.msra.mxu0 0.0
    %348 = vmatprep.subr.mxu0 0.0
    %349 = vmatpush2.msra.mxu0 0.0
    %350 = vmatprep.subr.mxu0 0.0
    %351 = vmatpush2.msra.mxu0 0.0
    %352 = vmatprep.subr.mxu0 0.0
    %353 = vmatpush2.msra.mxu0 0.0
    %354 = vmatprep.subr.mxu0 0.0
    %355 = vmatpush2.msra.mxu0 0.0
    %356 = vmatprep.subr.mxu0 0.0
    %357 = vmatpush2.msra.mxu0 0.0
    %358 = vmatprep.subr.mxu0 0.0
    %359 = vmatpush2.msra.mxu0 0.0
    %360 = vmatprep.subr.mxu0 0.0
    %361 = vmatpush2.msra.mxu0 0.0
    %362 = vmatprep.subr.mxu0 0.0
    %363 = vmatpush2.msra.mxu0 0.0
    %364 = vmatprep.subr.mxu0 0.0
    %365 = vmatpush2.msra.mxu0 0.0
    %366 = vmatprep.mubr.f32.mxu0 0.0
    %367 = vmatmul.mubr.f32.gmra.mxu0 %v42
    %v368 = vpop.f32.mrf.mxu0
    %v369 = vadd.f32 %v301, %v368
    %v370 = vpop.f32.mrf.mxu0
    %371 = vmatprep.mubr.f32.mxu0 0.0
    %372 = vmatmul.mubr.f32.gmra.mxu0 %v45
    %v373 = vpop.f32.mrf.mxu0
    %v374 = vadd.f32 %v301, %v373
    %v375 = vpop.f32.mrf.mxu0
    %376 = vdwg.mxu0
    %s377 = scalar_lea.vmem %s2, 128
    %v378 = vld [vmem:[%s377] sm:$0xff]
    %v379 = vld [vmem:[%s377 + $0x8] sm:$0xff]
    %v380 = vld [vmem:[%s377 + $0x10] sm:$0xff]
    %v381 = vld [vmem:[%s377 + $0x18] sm:$0xff]
    %v382 = vld [vmem:[%s4 + $0xb] sm:$0x1]
    %v383 = vlaneseq
    %v384 = vshrl.u32 %v383, 7
    %v385 = vsub.s32 0, %v384
    %v386 = vrot.slane %v382, %v385
    %387 = vmatprep.subr.mxu0 0.0
    %388 = vmatpush1.msra.mxu0 0.0
    %389 = vmatprep.subr.mxu0 0.0
    %390 = vmatpush1.msra.mxu0 0.0
    %391 = vmatprep.subr.mxu0 0.0
    %392 = vmatpush1.msra.mxu0 0.0
    %393 = vmatprep.subr.mxu0 0.0
    %394 = vmatpush1.msra.mxu0 0.0
    %395 = vmatprep.subr.mxu0 0.0
    %396 = vmatpush1.msra.mxu0 0.0
    %397 = vmatprep.subr.mxu0 0.0
    %398 = vmatpush1.msra.mxu0 0.0
    %399 = vmatprep.subr.mxu0 0.0
    %400 = vmatpush1.msra.mxu0 0.0
    %401 = vmatprep.subr.mxu0 0.0
    %402 = vmatpush1.msra.mxu0 0.0
    %403 = vmatprep.subr.mxu0 0.0
    %404 = vmatpush1.msra.mxu0 0.0
    %405 = vmatprep.subr.mxu0 0.0
    %406 = vmatpush1.msra.mxu0 0.0
    %407 = vmatprep.subr.mxu0 0.0
    %408 = vmatpush1.msra.mxu0 0.0
    %409 = vmatprep.subr.mxu0 0.0
    %410 = vmatpush1.msra.mxu0 0.0
    %411 = vmatprep.subr.mxu0 0.0
    %412 = vmatpush1.msra.mxu0 %v381
    %413 = vmatprep.subr.mxu0 0.0
    %414 = vmatpush1.msra.mxu0 %v380
    %415 = vmatprep.subr.mxu0 0.0
    %416 = vmatpush1.msra.mxu0 %v379
    %417 = vmatprep.subr.mxu0 0.0
    %418 = vmatpush1.msra.mxu0 %v378
    %419 = vmatprep.subr.mxu0 0.0
    %420 = vmatpush2.msra.mxu0 0.0
    %421 = vmatprep.subr.mxu0 0.0
    %422 = vmatpush2.msra.mxu0 0.0
    %423 = vmatprep.subr.mxu0 0.0
    %424 = vmatpush2.msra.mxu0 0.0
    %425 = vmatprep.subr.mxu0 0.0
    %426 = vmatpush2.msra.mxu0 0.0
    %427 = vmatprep.subr.mxu0 0.0
    %428 = vmatpush2.msra.mxu0 0.0
    %429 = vmatprep.subr.mxu0 0.0
    %430 = vmatpush2.msra.mxu0 0.0
    %431 = vmatprep.subr.mxu0 0.0
    %432 = vmatpush2.msra.mxu0 0.0
    %433 = vmatprep.subr.mxu0 0.0
    %434 = vmatpush2.msra.mxu0 0.0
    %435 = vmatprep.subr.mxu0 0.0
    %436 = vmatpush2.msra.mxu0 0.0
    %437 = vmatprep.subr.mxu0 0.0
    %438 = vmatpush2.msra.mxu0 0.0
    %439 = vmatprep.subr.mxu0 0.0
    %440 = vmatpush2.msra.mxu0 0.0
    %441 = vmatprep.subr.mxu0 0.0
    %442 = vmatpush2.msra.mxu0 0.0
    %443 = vmatprep.subr.mxu0 0.0
    %444 = vmatpush2.msra.mxu0 0.0
    %445 = vmatprep.subr.mxu0 0.0
    %446 = vmatpush2.msra.mxu0 0.0
    %447 = vmatprep.subr.mxu0 0.0
    %448 = vmatpush2.msra.mxu0 0.0
    %449 = vmatprep.subr.mxu0 0.0
    %450 = vmatpush2.msra.mxu0 0.0
    %451 = vmatprep.mubr.f32.mxu0 0.0
    %452 = vmatmul.mubr.f32.gmra.mxu0 %v42
    %v453 = vpop.f32.mrf.mxu0
    %v454 = vadd.f32 %v386, %v453
    %v455 = vpop.f32.mrf.mxu0
    %456 = vmatprep.mubr.f32.mxu0 0.0
    %457 = vmatmul.mubr.f32.gmra.mxu0 %v45
    %v458 = vpop.f32.mrf.mxu0
    %v459 = vadd.f32 %v386, %v458
    %v460 = vpop.f32.mrf.mxu0
    %461 = vdwg.mxu0
    %s462 = scalar_lea.vmem %s2, 160
    %v463 = vld [vmem:[%s462] sm:$0xff]
    %v464 = vld [vmem:[%s462 + $0x8] sm:$0xff]
    %v465 = vld [vmem:[%s462 + $0x10] sm:$0xff]
    %v466 = vld [vmem:[%s462 + $0x18] sm:$0xff]
    %v467 = vld [vmem:[%s4 + $0xc] sm:$0x1]
    %v468 = vlaneseq
    %v469 = vshrl.u32 %v468, 7
    %v470 = vsub.s32 0, %v469
    %v471 = vrot.slane %v467, %v470
    %472 = vmatprep.subr.mxu0 0.0
    %473 = vmatpush1.msra.mxu0 0.0
    %474 = vmatprep.subr.mxu0 0.0
    %475 = vmatpush1.msra.mxu0 0.0
    %476 = vmatprep.subr.mxu0 0.0
    %477 = vmatpush1.msra.mxu0 0.0
    %478 = vmatprep.subr.mxu0 0.0
    %479 = vmatpush1.msra.mxu0 0.0
    %480 = vmatprep.subr.mxu0 0.0
    %481 = vmatpush1.msra.mxu0 0.0
    %482 = vmatprep.subr.mxu0 0.0
    %483 = vmatpush1.msra.mxu0 0.0
    %484 = vmatprep.subr.mxu0 0.0
    %485 = vmatpush1.msra.mxu0 0.0
    %486 = vmatprep.subr.mxu0 0.0
    %487 = vmatpush1.msra.mxu0 0.0
    %488 = vmatprep.subr.mxu0 0.0
    %489 = vmatpush1.msra.mxu0 0.0
    %490 = vmatprep.subr.mxu0 0.0
    %491 = vmatpush1.msra.mxu0 0.0
    %492 = vmatprep.subr.mxu0 0.0
    %493 = vmatpush1.msra.mxu0 0.0
    %494 = vmatprep.subr.mxu0 0.0
    %495 = vmatpush1.msra.mxu0 0.0
    %496 = vmatprep.subr.mxu0 0.0
    %497 = vmatpush1.msra.mxu0 %v466
    %498 = vmatprep.subr.mxu0 0.0
    %499 = vmatpush1.msra.mxu0 %v465
    %500 = vmatprep.subr.mxu0 0.0
    %501 = vmatpush1.msra.mxu0 %v464
    %502 = vmatprep.subr.mxu0 0.0
    %503 = vmatpush1.msra.mxu0 %v463
    %504 = vmatprep.subr.mxu0 0.0
    %505 = vmatpush2.msra.mxu0 0.0
    %506 = vmatprep.subr.mxu0 0.0
    %507 = vmatpush2.msra.mxu0 0.0
    %508 = vmatprep.subr.mxu0 0.0
    %509 = vmatpush2.msra.mxu0 0.0
    %510 = vmatprep.subr.mxu0 0.0
    %511 = vmatpush2.msra.mxu0 0.0
    %512 = vmatprep.subr.mxu0 0.0
    %513 = vmatpush2.msra.mxu0 0.0
    %514 = vmatprep.subr.mxu0 0.0
    %515 = vmatpush2.msra.mxu0 0.0
    %516 = vmatprep.subr.mxu0 0.0
    %517 = vmatpush2.msra.mxu0 0.0
    %518 = vmatprep.subr.mxu0 0.0
    %519 = vmatpush2.msra.mxu0 0.0
    %520 = vmatprep.subr.mxu0 0.0
    %521 = vmatpush2.msra.mxu0 0.0
    %522 = vmatprep.subr.mxu0 0.0
    %523 = vmatpush2.msra.mxu0 0.0
    %524 = vmatprep.subr.mxu0 0.0
    %525 = vmatpush2.msra.mxu0 0.0
    %526 = vmatprep.subr.mxu0 0.0
    %527 = vmatpush2.msra.mxu0 0.0
    %528 = vmatprep.subr.mxu0 0.0
    %529 = vmatpush2.msra.mxu0 0.0
    %530 = vmatprep.subr.mxu0 0.0
    %531 = vmatpush2.msra.mxu0 0.0
    %532 = vmatprep.subr.mxu0 0.0
    %533 = vmatpush2.msra.mxu0 0.0
    %534 = vmatprep.subr.mxu0 0.0
    %535 = vmatpush2.msra.mxu0 0.0
    %536 = vmatprep.mubr.f32.mxu0 0.0
    %537 = vmatmul.mubr.f32.gmra.mxu0 %v42
    %v538 = vpop.f32.mrf.mxu0
    %v539 = vadd.f32 %v471, %v538
    %v540 = vpop.f32.mrf.mxu0
    %541 = vmatprep.mubr.f32.mxu0 0.0
    %542 = vmatmul.mubr.f32.gmra.mxu0 %v45
    %v543 = vpop.f32.mrf.mxu0
    %v544 = vadd.f32 %v471, %v543
    %v545 = vpop.f32.mrf.mxu0
    %546 = vdwg.mxu0
    %s547 = scalar_lea.vmem %s2, 192
    %v548 = vld [vmem:[%s547] sm:$0xff]
    %v549 = vld [vmem:[%s547 + $0x8] sm:$0xff]
    %v550 = vld [vmem:[%s547 + $0x10] sm:$0xff]
    %v551 = vld [vmem:[%s547 + $0x18] sm:$0xff]
    %v552 = vld [vmem:[%s4 + $0xd] sm:$0x1]
    %v553 = vlaneseq
    %v554 = vshrl.u32 %v553, 7
    %v555 = vsub.s32 0, %v554
    %v556 = vrot.slane %v552, %v555
    %557 = vmatprep.subr.mxu0 0.0
    %558 = vmatpush1.msra.mxu0 0.0
    %559 = vmatprep.subr.mxu0 0.0
    %560 = vmatpush1.msra.mxu0 0.0
    %561 = vmatprep.subr.mxu0 0.0
    %562 = vmatpush1.msra.mxu0 0.0
    %563 = vmatprep.subr.mxu0 0.0
    %564 = vmatpush1.msra.mxu0 0.0
    %565 = vmatprep.subr.mxu0 0.0
    %566 = vmatpush1.msra.mxu0 0.0
    %567 = vmatprep.subr.mxu0 0.0
    %568 = vmatpush1.msra.mxu0 0.0
    %569 = vmatprep.subr.mxu0 0.0
    %570 = vmatpush1.msra.mxu0 0.0
    %571 = vmatprep.subr.mxu0 0.0
    %572 = vmatpush1.msra.mxu0 0.0
    %573 = vmatprep.subr.mxu0 0.0
    %574 = vmatpush1.msra.mxu0 0.0
    %575 = vmatprep.subr.mxu0 0.0
    %576 = vmatpush1.msra.mxu0 0.0
    %577 = vmatprep.subr.mxu0 0.0
    %578 = vmatpush1.msra.mxu0 0.0
    %579 = vmatprep.subr.mxu0 0.0
    %580 = vmatpush1.msra.mxu0 0.0
    %581 = vmatprep.subr.mxu0 0.0
    %582 = vmatpush1.msra.mxu0 %v551
    %583 = vmatprep.subr.mxu0 0.0
    %584 = vmatpush1.msra.mxu0 %v550
    %585 = vmatprep.subr.mxu0 0.0
    %586 = vmatpush1.msra.mxu0 %v549
    %587 = vmatprep.subr.mxu0 0.0
    %588 = vmatpush1.msra.mxu0 %v548
    %589 = vmatprep.subr.mxu0 0.0
    %590 = vmatpush2.msra.mxu0 0.0
    %591 = vmatprep.subr.mxu0 0.0
    %592 = vmatpush2.msra.mxu0 0.0
    %593 = vmatprep.subr.mxu0 0.0
    %594 = vmatpush2.msra.mxu0 0.0
    %595 = vmatprep.subr.mxu0 0.0
    %596 = vmatpush2.msra.mxu0 0.0
    %597 = vmatprep.subr.mxu0 0.0
    %598 = vmatpush2.msra.mxu0 0.0
    %599 = vmatprep.subr.mxu0 0.0
    %600 = vmatpush2.msra.mxu0 0.0
    %601 = vmatprep.subr.mxu0 0.0
    %602 = vmatpush2.msra.mxu0 0.0
    %603 = vmatprep.subr.mxu0 0.0
    %604 = vmatpush2.msra.mxu0 0.0
    %605 = vmatprep.subr.mxu0 0.0
    %606 = vmatpush2.msra.mxu0 0.0
    %607 = vmatprep.subr.mxu0 0.0
    %608 = vmatpush2.msra.mxu0 0.0
    %609 = vmatprep.subr.mxu0 0.0
    %610 = vmatpush2.msra.mxu0 0.0
    %611 = vmatprep.subr.mxu0 0.0
    %612 = vmatpush2.msra.mxu0 0.0
    %613 = vmatprep.subr.mxu0 0.0
    %614 = vmatpush2.msra.mxu0 0.0
    %615 = vmatprep.subr.mxu0 0.0
    %616 = vmatpush2.msra.mxu0 0.0
    %617 = vmatprep.subr.mxu0 0.0
    %618 = vmatpush2.msra.mxu0 0.0
    %619 = vmatprep.subr.mxu0 0.0
    %620 = vmatpush2.msra.mxu0 0.0
    %621 = vmatprep.mubr.f32.mxu0 0.0
    %622 = vmatmul.mubr.f32.gmra.mxu0 %v42
    %v623 = vpop.f32.mrf.mxu0
    %v624 = vadd.f32 %v556, %v623
    %v625 = vpop.f32.mrf.mxu0
    %626 = vmatprep.mubr.f32.mxu0 0.0
    %627 = vmatmul.mubr.f32.gmra.mxu0 %v45
    %v628 = vpop.f32.mrf.mxu0
    %v629 = vadd.f32 %v556, %v628
    %v630 = vpop.f32.mrf.mxu0
    %631 = vdwg.mxu0
    %s632 = scalar_lea.vmem %s2, 224
    %v633 = vld [vmem:[%s632] sm:$0xff]
    %v634 = vld [vmem:[%s632 + $0x8] sm:$0xff]
    %v635 = vld [vmem:[%s632 + $0x10] sm:$0xff]
    %v636 = vld [vmem:[%s632 + $0x18] sm:$0xff]
    %v637 = vld [vmem:[%s4 + $0xe] sm:$0x1]
    %v638 = vlaneseq
    %v639 = vshrl.u32 %v638, 7
    %v640 = vsub.s32 0, %v639
    %v641 = vrot.slane %v637, %v640
    %642 = vmatprep.subr.mxu0 0.0
    %643 = vmatpush1.msra.mxu0 0.0
    %644 = vmatprep.subr.mxu0 0.0
    %645 = vmatpush1.msra.mxu0 0.0
    %646 = vmatprep.subr.mxu0 0.0
    %647 = vmatpush1.msra.mxu0 0.0
    %648 = vmatprep.subr.mxu0 0.0
    %649 = vmatpush1.msra.mxu0 0.0
    %650 = vmatprep.subr.mxu0 0.0
    %651 = vmatpush1.msra.mxu0 0.0
    %652 = vmatprep.subr.mxu0 0.0
    %653 = vmatpush1.msra.mxu0 0.0
    %654 = vmatprep.subr.mxu0 0.0
    %655 = vmatpush1.msra.mxu0 0.0
    %656 = vmatprep.subr.mxu0 0.0
    %657 = vmatpush1.msra.mxu0 0.0
    %658 = vmatprep.subr.mxu0 0.0
    %659 = vmatpush1.msra.mxu0 0.0
    %660 = vmatprep.subr.mxu0 0.0
    %661 = vmatpush1.msra.mxu0 0.0
    %662 = vmatprep.subr.mxu0 0.0
    %663 = vmatpush1.msra.mxu0 0.0
    %664 = vmatprep.subr.mxu0 0.0
    %665 = vmatpush1.msra.mxu0 0.0
    %666 = vmatprep.subr.mxu0 0.0
    %667 = vmatpush1.msra.mxu0 %v636
    %668 = vmatprep.subr.mxu0 0.0
    %669 = vmatpush1.msra.mxu0 %v635
    %670 = vmatprep.subr.mxu0 0.0
    %671 = vmatpush1.msra.mxu0 %v634
    %672 = vmatprep.subr.mxu0 0.0
    %673 = vmatpush1.msra.mxu0 %v633
    %674 = vmatprep.subr.mxu0 0.0
    %675 = vmatpush2.msra.mxu0 0.0
    %676 = vmatprep.subr.mxu0 0.0
    %677 = vmatpush2.msra.mxu0 0.0
    %678 = vmatprep.subr.mxu0 0.0
    %679 = vmatpush2.msra.mxu0 0.0
    %680 = vmatprep.subr.mxu0 0.0
    %681 = vmatpush2.msra.mxu0 0.0
    %682 = vmatprep.subr.mxu0 0.0
    %683 = vmatpush2.msra.mxu0 0.0
    %684 = vmatprep.subr.mxu0 0.0
    %685 = vmatpush2.msra.mxu0 0.0
    %686 = vmatprep.subr.mxu0 0.0
    %687 = vmatpush2.msra.mxu0 0.0
    %688 = vmatprep.subr.mxu0 0.0
    %689 = vmatpush2.msra.mxu0 0.0
    %690 = vmatprep.subr.mxu0 0.0
    %691 = vmatpush2.msra.mxu0 0.0
    %692 = vmatprep.subr.mxu0 0.0
    %693 = vmatpush2.msra.mxu0 0.0
    %694 = vmatprep.subr.mxu0 0.0
    %695 = vmatpush2.msra.mxu0 0.0
    %696 = vmatprep.subr.mxu0 0.0
    %697 = vmatpush2.msra.mxu0 0.0
    %698 = vmatprep.subr.mxu0 0.0
    %699 = vmatpush2.msra.mxu0 0.0
    %700 = vmatprep.subr.mxu0 0.0
    %701 = vmatpush2.msra.mxu0 0.0
    %702 = vmatprep.subr.mxu0 0.0
    %703 = vmatpush2.msra.mxu0 0.0
    %704 = vmatprep.subr.mxu0 0.0
    %705 = vmatpush2.msra.mxu0 0.0
    %706 = vmatprep.mubr.f32.mxu0 0.0
    %707 = vmatmul.mubr.f32.gmra.mxu0 %v42
    %v708 = vpop.f32.mrf.mxu0
    %v709 = vadd.f32 %v641, %v708
    %v710 = vpop.f32.mrf.mxu0
    %711 = vmatprep.mubr.f32.mxu0 0.0
    %712 = vmatmul.mubr.f32.gmra.mxu0 %v45
    %v713 = vpop.f32.mrf.mxu0
    %v714 = vadd.f32 %v641, %v713
    %v715 = vpop.f32.mrf.mxu0
    %716 = vdwg.mxu0
    %s717 = scalar_lea.vmem %s2, 256
    %v718 = vld [vmem:[%s717] sm:$0xff]
    %v719 = vld [vmem:[%s717 + $0x8] sm:$0xff]
    %v720 = vld [vmem:[%s717 + $0x10] sm:$0xff]
    %v721 = vld [vmem:[%s717 + $0x18] sm:$0xff]
    %v722 = vld [vmem:[%s4 + $0xf] sm:$0x1]
    %v723 = vlaneseq
    %v724 = vshrl.u32 %v723, 7
    %v725 = vsub.s32 0, %v724
    %v726 = vrot.slane %v722, %v725
    %727 = vmatprep.subr.mxu0 0.0
    %728 = vmatpush1.msra.mxu0 0.0
    %729 = vmatprep.subr.mxu0 0.0
    %730 = vmatpush1.msra.mxu0 0.0
    %731 = vmatprep.subr.mxu0 0.0
    %732 = vmatpush1.msra.mxu0 0.0
    %733 = vmatprep.subr.mxu0 0.0
    %734 = vmatpush1.msra.mxu0 0.0
    %735 = vmatprep.subr.mxu0 0.0
    %736 = vmatpush1.msra.mxu0 0.0
    %737 = vmatprep.subr.mxu0 0.0
    %738 = vmatpush1.msra.mxu0 0.0
    %739 = vmatprep.subr.mxu0 0.0
    %740 = vmatpush1.msra.mxu0 0.0
    %741 = vmatprep.subr.mxu0 0.0
    %742 = vmatpush1.msra.mxu0 0.0
    %743 = vmatprep.subr.mxu0 0.0
    %744 = vmatpush1.msra.mxu0 0.0
    %745 = vmatprep.subr.mxu0 0.0
    %746 = vmatpush1.msra.mxu0 0.0
    %747 = vmatprep.subr.mxu0 0.0
    %748 = vmatpush1.msra.mxu0 0.0
    %749 = vmatprep.subr.mxu0 0.0
    %750 = vmatpush1.msra.mxu0 0.0
    %751 = vmatprep.subr.mxu0 0.0
    %752 = vmatpush1.msra.mxu0 %v721
    %753 = vmatprep.subr.mxu0 0.0
    %754 = vmatpush1.msra.mxu0 %v720
    %755 = vmatprep.subr.mxu0 0.0
    %756 = vmatpush1.msra.mxu0 %v719
    %757 = vmatprep.subr.mxu0 0.0
    %758 = vmatpush1.msra.mxu0 %v718
    %759 = vmatprep.subr.mxu0 0.0
    %760 = vmatpush2.msra.mxu0 0.0
    %761 = vmatprep.subr.mxu0 0.0
    %762 = vmatpush2.msra.mxu0 0.0
    %763 = vmatprep.subr.mxu0 0.0
    %764 = vmatpush2.msra.mxu0 0.0
    %765 = vmatprep.subr.mxu0 0.0
    %766 = vmatpush2.msra.mxu0 0.0
    %767 = vmatprep.subr.mxu0 0.0
    %768 = vmatpush2.msra.mxu0 0.0
    %769 = vmatprep.subr.mxu0 0.0
    %770 = vmatpush2.msra.mxu0 0.0
    %771 = vmatprep.subr.mxu0 0.0
    %772 = vmatpush2.msra.mxu0 0.0
    %773 = vmatprep.subr.mxu0 0.0
    %774 = vmatpush2.msra.mxu0 0.0
    %775 = vmatprep.subr.mxu0 0.0
    %776 = vmatpush2.msra.mxu0 0.0
    %777 = vmatprep.subr.mxu0 0.0
    %778 = vmatpush2.msra.mxu0 0.0
    %779 = vmatprep.subr.mxu0 0.0
    %780 = vmatpush2.msra.mxu0 0.0
    %781 = vmatprep.subr.mxu0 0.0
    %782 = vmatpush2.msra.mxu0 0.0
    %783 = vmatprep.subr.mxu0 0.0
    %784 = vmatpush2.msra.mxu0 0.0
    %785 = vmatprep.subr.mxu0 0.0
    %786 = vmatpush2.msra.mxu0 0.0
    %787 = vmatprep.subr.mxu0 0.0
    %788 = vmatpush2.msra.mxu0 0.0
    %789 = vmatprep.subr.mxu0 0.0
    %790 = vmatpush2.msra.mxu0 0.0
    %791 = vmatprep.mubr.f32.mxu0 0.0
    %792 = vmatmul.mubr.f32.gmra.mxu0 %v42
    %v793 = vpop.f32.mrf.mxu0
    %v794 = vadd.f32 %v726, %v793
    %v795 = vpop.f32.mrf.mxu0
    %796 = vmatprep.mubr.f32.mxu0 0.0
    %797 = vmatmul.mubr.f32.gmra.mxu0 %v45
    %v798 = vpop.f32.mrf.mxu0
    %v799 = vadd.f32 %v726, %v798
    %v800 = vpop.f32.mrf.mxu0
    %801 = vdwg.mxu0
    %s802 = scalar_lea.vmem %s2, 288
    %v803 = vld [vmem:[%s802] sm:$0xff]
    %v804 = vld [vmem:[%s802 + $0x8] sm:$0xff]
    %v805 = vld [vmem:[%s802 + $0x10] sm:$0xff]
    %v806 = vld [vmem:[%s802 + $0x18] sm:$0xff]
    %v807 = vld [vmem:[%s4 + $0x10] sm:$0x1]
    %v808 = vlaneseq
    %v809 = vshrl.u32 %v808, 7
    %v810 = vsub.s32 0, %v809
    %v811 = vrot.slane %v807, %v810
    %812 = vmatprep.subr.mxu0 0.0
    %813 = vmatpush1.msra.mxu0 0.0
    %814 = vmatprep.subr.mxu0 0.0
    %815 = vmatpush1.msra.mxu0 0.0
    %816 = vmatprep.subr.mxu0 0.0
    %817 = vmatpush1.msra.mxu0 0.0
    %818 = vmatprep.subr.mxu0 0.0
    %819 = vmatpush1.msra.mxu0 0.0
    %820 = vmatprep.subr.mxu0 0.0
    %821 = vmatpush1.msra.mxu0 0.0
    %822 = vmatprep.subr.mxu0 0.0
    %823 = vmatpush1.msra.mxu0 0.0
    %824 = vmatprep.subr.mxu0 0.0
    %825 = vmatpush1.msra.mxu0 0.0
    %826 = vmatprep.subr.mxu0 0.0
    %827 = vmatpush1.msra.mxu0 0.0
    %828 = vmatprep.subr.mxu0 0.0
    %829 = vmatpush1.msra.mxu0 0.0
    %830 = vmatprep.subr.mxu0 0.0
    %831 = vmatpush1.msra.mxu0 0.0
    %832 = vmatprep.subr.mxu0 0.0
    %833 = vmatpush1.msra.mxu0 0.0
    %834 = vmatprep.subr.mxu0 0.0
    %835 = vmatpush1.msra.mxu0 0.0
    %836 = vmatprep.subr.mxu0 0.0
    %837 = vmatpush1.msra.mxu0 %v806
    %838 = vmatprep.subr.mxu0 0.0
    %839 = vmatpush1.msra.mxu0 %v805
    %840 = vmatprep.subr.mxu0 0.0
    %841 = vmatpush1.msra.mxu0 %v804
    %842 = vmatprep.subr.mxu0 0.0
    %843 = vmatpush1.msra.mxu0 %v803
    %844 = vmatprep.subr.mxu0 0.0
    %845 = vmatpush2.msra.mxu0 0.0
    %846 = vmatprep.subr.mxu0 0.0
    %847 = vmatpush2.msra.mxu0 0.0
    %848 = vmatprep.subr.mxu0 0.0
    %849 = vmatpush2.msra.mxu0 0.0
    %850 = vmatprep.subr.mxu0 0.0
    %851 = vmatpush2.msra.mxu0 0.0
    %852 = vmatprep.subr.mxu0 0.0
    %853 = vmatpush2.msra.mxu0 0.0
    %854 = vmatprep.subr.mxu0 0.0
    %855 = vmatpush2.msra.mxu0 0.0
    %856 = vmatprep.subr.mxu0 0.0
    %857 = vmatpush2.msra.mxu0 0.0
    %858 = vmatprep.subr.mxu0 0.0
    %859 = vmatpush2.msra.mxu0 0.0
    %860 = vmatprep.subr.mxu0 0.0
    %861 = vmatpush2.msra.mxu0 0.0
    %862 = vmatprep.subr.mxu0 0.0
    %863 = vmatpush2.msra.mxu0 0.0
    %864 = vmatprep.subr.mxu0 0.0
    %865 = vmatpush2.msra.mxu0 0.0
    %866 = vmatprep.subr.mxu0 0.0
    %867 = vmatpush2.msra.mxu0 0.0
    %868 = vmatprep.subr.mxu0 0.0
    %869 = vmatpush2.msra.mxu0 0.0
    %870 = vmatprep.subr.mxu0 0.0
    %871 = vmatpush2.msra.mxu0 0.0
    %872 = vmatprep.subr.mxu0 0.0
    %873 = vmatpush2.msra.mxu0 0.0
    %874 = vmatprep.subr.mxu0 0.0
    %875 = vmatpush2.msra.mxu0 0.0
    %876 = vmatprep.mubr.f32.mxu0 0.0
    %877 = vmatmul.mubr.f32.gmra.mxu0 %v42
    %v878 = vpop.f32.mrf.mxu0
    %v879 = vadd.f32 %v811, %v878
    %v880 = vpop.f32.mrf.mxu0
    %881 = vmatprep.mubr.f32.mxu0 0.0
    %882 = vmatmul.mubr.f32.gmra.mxu0 %v45
    %v883 = vpop.f32.mrf.mxu0
    %v884 = vadd.f32 %v811, %v883
    %v885 = vpop.f32.mrf.mxu0
    %886 = vdwg.mxu0
    %s887 = scalar_lea.vmem %s2, 320
    %v888 = vld [vmem:[%s887] sm:$0xff]
    %v889 = vld [vmem:[%s887 + $0x8] sm:$0xff]
    %v890 = vld [vmem:[%s887 + $0x10] sm:$0xff]
    %v891 = vld [vmem:[%s887 + $0x18] sm:$0xff]
    %v892 = vld [vmem:[%s4 + $0x11] sm:$0x1]
    %v893 = vlaneseq
    %v894 = vshrl.u32 %v893, 7
    %v895 = vsub.s32 0, %v894
    %v896 = vrot.slane %v892, %v895
    %897 = vmatprep.subr.mxu0 0.0
    %898 = vmatpush1.msra.mxu0 0.0
    %899 = vmatprep.subr.mxu0 0.0
    %900 = vmatpush1.msra.mxu0 0.0
    %901 = vmatprep.subr.mxu0 0.0
    %902 = vmatpush1.msra.mxu0 0.0
    %903 = vmatprep.subr.mxu0 0.0
    %904 = vmatpush1.msra.mxu0 0.0
    %905 = vmatprep.subr.mxu0 0.0
    %906 = vmatpush1.msra.mxu0 0.0
    %907 = vmatprep.subr.mxu0 0.0
    %908 = vmatpush1.msra.mxu0 0.0
    %909 = vmatprep.subr.mxu0 0.0
    %910 = vmatpush1.msra.mxu0 0.0
    %911 = vmatprep.subr.mxu0 0.0
    %912 = vmatpush1.msra.mxu0 0.0
    %913 = vmatprep.subr.mxu0 0.0
    %914 = vmatpush1.msra.mxu0 0.0
    %915 = vmatprep.subr.mxu0 0.0
    %916 = vmatpush1.msra.mxu0 0.0
    %917 = vmatprep.subr.mxu0 0.0
    %918 = vmatpush1.msra.mxu0 0.0
    %919 = vmatprep.subr.mxu0 0.0
    %920 = vmatpush1.msra.mxu0 0.0
    %921 = vmatprep.subr.mxu0 0.0
    %922 = vmatpush1.msra.mxu0 %v891
    %923 = vmatprep.subr.mxu0 0.0
    %924 = vmatpush1.msra.mxu0 %v890
    %925 = vmatprep.subr.mxu0 0.0
    %926 = vmatpush1.msra.mxu0 %v889
    %927 = vmatprep.subr.mxu0 0.0
    %928 = vmatpush1.msra.mxu0 %v888
    %929 = vmatprep.subr.mxu0 0.0
    %930 = vmatpush2.msra.mxu0 0.0
    %931 = vmatprep.subr.mxu0 0.0
    %932 = vmatpush2.msra.mxu0 0.0
    %933 = vmatprep.subr.mxu0 0.0
    %934 = vmatpush2.msra.mxu0 0.0
    %935 = vmatprep.subr.mxu0 0.0
    %936 = vmatpush2.msra.mxu0 0.0
    %937 = vmatprep.subr.mxu0 0.0
    %938 = vmatpush2.msra.mxu0 0.0
    %939 = vmatprep.subr.mxu0 0.0
    %940 = vmatpush2.msra.mxu0 0.0
    %941 = vmatprep.subr.mxu0 0.0
    %942 = vmatpush2.msra.mxu0 0.0
    %943 = vmatprep.subr.mxu0 0.0
    %944 = vmatpush2.msra.mxu0 0.0
    %945 = vmatprep.subr.mxu0 0.0
    %946 = vmatpush2.msra.mxu0 0.0
    %947 = vmatprep.subr.mxu0 0.0
    %948 = vmatpush2.msra.mxu0 0.0
    %949 = vmatprep.subr.mxu0 0.0
    %950 = vmatpush2.msra.mxu0 0.0
    %951 = vmatprep.subr.mxu0 0.0
    %952 = vmatpush2.msra.mxu0 0.0
    %953 = vmatprep.subr.mxu0 0.0
    %954 = vmatpush2.msra.mxu0 0.0
    %955 = vmatprep.subr.mxu0 0.0
    %956 = vmatpush2.msra.mxu0 0.0
    %957 = vmatprep.subr.mxu0 0.0
    %958 = vmatpush2.msra.mxu0 0.0
    %959 = vmatprep.subr.mxu0 0.0
    %960 = vmatpush2.msra.mxu0 0.0
    %961 = vmatprep.mubr.f32.mxu0 0.0
    %962 = vmatmul.mubr.f32.gmra.mxu0 %v42
    %v963 = vpop.f32.mrf.mxu0
    %v964 = vadd.f32 %v896, %v963
    %v965 = vpop.f32.mrf.mxu0
    %966 = vmatprep.mubr.f32.mxu0 0.0
    %967 = vmatmul.mubr.f32.gmra.mxu0 %v45
    %v968 = vpop.f32.mrf.mxu0
    %v969 = vadd.f32 %v896, %v968
    %v970 = vpop.f32.mrf.mxu0
    %971 = vdwg.mxu0
    %s972 = scalar_lea.vmem %s2, 352
    %v973 = vld [vmem:[%s972] sm:$0xff]
    %v974 = vld [vmem:[%s972 + $0x8] sm:$0xff]
    %v975 = vld [vmem:[%s972 + $0x10] sm:$0xff]
    %v976 = vld [vmem:[%s972 + $0x18] sm:$0xff]
    %v977 = vld [vmem:[%s4 + $0x12] sm:$0x1]
    %v978 = vlaneseq
    %v979 = vshrl.u32 %v978, 7
    %v980 = vsub.s32 0, %v979
    %v981 = vrot.slane %v977, %v980
    %982 = vmatprep.subr.mxu0 0.0
    %983 = vmatpush1.msra.mxu0 0.0
    %984 = vmatprep.subr.mxu0 0.0
    %985 = vmatpush1.msra.mxu0 0.0
    %986 = vmatprep.subr.mxu0 0.0
    %987 = vmatpush1.msra.mxu0 0.0
    %988 = vmatprep.subr.mxu0 0.0
    %989 = vmatpush1.msra.mxu0 0.0
    %990 = vmatprep.subr.mxu0 0.0
    %991 = vmatpush1.msra.mxu0 0.0
    %992 = vmatprep.subr.mxu0 0.0
    %993 = vmatpush1.msra.mxu0 0.0
    %994 = vmatprep.subr.mxu0 0.0
    %995 = vmatpush1.msra.mxu0 0.0
    %996 = vmatprep.subr.mxu0 0.0
    %997 = vmatpush1.msra.mxu0 0.0
    %998 = vmatprep.subr.mxu0 0.0
    %999 = vmatpush1.msra.mxu0 0.0
    %1000 = vmatprep.subr.mxu0 0.0
    %1001 = vmatpush1.msra.mxu0 0.0
    %1002 = vmatprep.subr.mxu0 0.0
    %1003 = vmatpush1.msra.mxu0 0.0
    %1004 = vmatprep.subr.mxu0 0.0
    %1005 = vmatpush1.msra.mxu0 0.0
    %1006 = vmatprep.subr.mxu0 0.0
    %1007 = vmatpush1.msra.mxu0 %v976
    %1008 = vmatprep.subr.mxu0 0.0
    %1009 = vmatpush1.msra.mxu0 %v975
    %1010 = vmatprep.subr.mxu0 0.0
    %1011 = vmatpush1.msra.mxu0 %v974
    %1012 = vmatprep.subr.mxu0 0.0
    %1013 = vmatpush1.msra.mxu0 %v973
    %1014 = vmatprep.subr.mxu0 0.0
    %1015 = vmatpush2.msra.mxu0 0.0
    %1016 = vmatprep.subr.mxu0 0.0
    %1017 = vmatpush2.msra.mxu0 0.0
    %1018 = vmatprep.subr.mxu0 0.0
    %1019 = vmatpush2.msra.mxu0 0.0
    %1020 = vmatprep.subr.mxu0 0.0
    %1021 = vmatpush2.msra.mxu0 0.0
    %1022 = vmatprep.subr.mxu0 0.0
    %1023 = vmatpush2.msra.mxu0 0.0
    %1024 = vmatprep.subr.mxu0 0.0
    %1025 = vmatpush2.msra.mxu0 0.0
    %1026 = vmatprep.subr.mxu0 0.0
    %1027 = vmatpush2.msra.mxu0 0.0
    %1028 = vmatprep.subr.mxu0 0.0
    %1029 = vmatpush2.msra.mxu0 0.0
    %1030 = vmatprep.subr.mxu0 0.0
    %1031 = vmatpush2.msra.mxu0 0.0
    %1032 = vmatprep.subr.mxu0 0.0
    %1033 = vmatpush2.msra.mxu0 0.0
    %1034 = vmatprep.subr.mxu0 0.0
    %1035 = vmatpush2.msra.mxu0 0.0
    %1036 = vmatprep.subr.mxu0 0.0
    %1037 = vmatpush2.msra.mxu0 0.0
    %1038 = vmatprep.subr.mxu0 0.0
    %1039 = vmatpush2.msra.mxu0 0.0
    %1040 = vmatprep.subr.mxu0 0.0
    %1041 = vmatpush2.msra.mxu0 0.0
    %1042 = vmatprep.subr.mxu0 0.0
    %1043 = vmatpush2.msra.mxu0 0.0
    %1044 = vmatprep.subr.mxu0 0.0
    %1045 = vmatpush2.msra.mxu0 0.0
    %1046 = vmatprep.mubr.f32.mxu0 0.0
    %1047 = vmatmul.mubr.f32.gmra.mxu0 %v42
    %v1048 = vpop.f32.mrf.mxu0
    %v1049 = vadd.f32 %v981, %v1048
    %v1050 = vpop.f32.mrf.mxu0
    %1051 = vmatprep.mubr.f32.mxu0 0.0
    %1052 = vmatmul.mubr.f32.gmra.mxu0 %v45
    %v1053 = vpop.f32.mrf.mxu0
    %v1054 = vadd.f32 %v981, %v1053
    %v1055 = vpop.f32.mrf.mxu0
    %1056 = vdwg.mxu0
    %vm1057 = vcmask 64512
    %v1059 = vsel %vm1057, %v114, 0
    %v1062 = vsel %vm1057, %v454, 0
    %1064 = vmatprep.subr.mxu0 0.0
    %1065 = vmatpush1.xpose.msra.mxu0 0.0
    %1066 = vmatprep.subr.mxu0 0.0
    %1067 = vmatpush1.xpose.msra.mxu0 0.0
    %1068 = vmatprep.subr.mxu0 0.0
    %1069 = vmatpush1.xpose.msra.mxu0 0.0
    %1070 = vmatprep.subr.mxu0 0.0
    %1071 = vmatpush1.xpose.msra.mxu0 0.0
    %1072 = vmatprep.subr.mxu0 0.0
    %1073 = vmatpush1.xpose.msra.mxu0 0.0
    %1074 = vmatprep.subr.mxu0 0.0
    %1075 = vmatpush1.xpose.msra.mxu0 0.0
    %1076 = vmatprep.subr.mxu0 0.0
    %1077 = vmatpush1.xpose.msra.mxu0 0.0
    %1078 = vmatprep.subr.mxu0 0.0
    %1079 = vmatpush1.xpose.msra.mxu0 0.0
    %1080 = vmatprep.subr.mxu0 0.0
    %1081 = vmatpush1.xpose.msra.mxu0 0.0
    %1082 = vmatprep.subr.mxu0 0.0
    %1083 = vmatpush1.xpose.msra.mxu0 0.0
    %1084 = vmatprep.subr.mxu0 0.0
    %1085 = vmatpush1.xpose.msra.mxu0 0.0
    %1086 = vmatprep.subr.mxu0 0.0
    %1087 = vmatpush1.xpose.msra.mxu0 0.0
    %1088 = vmatprep.subr.mxu0 0.0
    %1089 = vmatpush1.xpose.msra.mxu0 0.0
    %1090 = vmatprep.subr.mxu0 0.0
    %1091 = vmatpush1.xpose.msra.mxu0 0.0
    %1092 = vmatprep.subr.mxu0 0.0
    %1093 = vmatpush1.xpose.msra.mxu0 0.0
    %1094 = vmatprep.subr.mxu0 0.0
    %1095 = vmatpush1.xpose.msra.mxu0 %v1062
    %1096 = vmatprep.subr.mxu0 0.0
    %1097 = vmatpush2.xpose.msra.mxu0 0.0
    %1098 = vmatprep.subr.mxu0 0.0
    %1099 = vmatpush2.xpose.msra.mxu0 0.0
    %1100 = vmatprep.subr.mxu0 0.0
    %1101 = vmatpush2.xpose.msra.mxu0 0.0
    %1102 = vmatprep.subr.mxu0 0.0
    %1103 = vmatpush2.xpose.msra.mxu0 0.0
    %1104 = vmatprep.subr.mxu0 0.0
    %1105 = vmatpush2.xpose.msra.mxu0 0.0
    %1106 = vmatprep.subr.mxu0 0.0
    %1107 = vmatpush2.xpose.msra.mxu0 0.0
    %1108 = vmatprep.subr.mxu0 0.0
    %1109 = vmatpush2.xpose.msra.mxu0 0.0
    %1110 = vmatprep.subr.mxu0 0.0
    %1111 = vmatpush2.xpose.msra.mxu0 0.0
    %1112 = vmatprep.subr.mxu0 0.0
    %1113 = vmatpush2.xpose.msra.mxu0 0.0
    %1114 = vmatprep.subr.mxu0 0.0
    %1115 = vmatpush2.xpose.msra.mxu0 0.0
    %1116 = vmatprep.subr.mxu0 0.0
    %1117 = vmatpush2.xpose.msra.mxu0 0.0
    %1118 = vmatprep.subr.mxu0 0.0
    %1119 = vmatpush2.xpose.msra.mxu0 0.0
    %1120 = vmatprep.subr.mxu0 0.0
    %1121 = vmatpush2.xpose.msra.mxu0 0.0
    %1122 = vmatprep.subr.mxu0 0.0
    %1123 = vmatpush2.xpose.msra.mxu0 0.0
    %1124 = vmatprep.subr.mxu0 0.0
    %1125 = vmatpush2.xpose.msra.mxu0 0.0
    %1126 = vmatprep.subr.mxu0 0.0
    %1127 = vmatpush2.xpose.msra.mxu0 0.0
    %1128 = vmatprep.mubr.f32.mxu0 0.0
    %1129 = vmatmul.mubr.f32.gmra.mxu0 %v1059
    %v1130 = vpop.f32.mrf.mxu0
    %v1131 = vadd.f32 0.0, %v1130
    %v1132 = vpop.f32.mrf.mxu0
    %1133 = vdwg.mxu0
    %v1134 = vmul.f32 %v1131, 0.35355338
    %v1135 = vlaneseq
    %v1136 = vshrl.u32 %v1135, 7
    %v1137 = vsub.s32 0, %v1136
    %v1138 = vrot.slane %v23, %v1137
    %v1139 = vadd.f32 %v1134, %v1138
    %v1140 = vsel %vm1057, %v1139, -inf
    %1141 = vmax.xlane.f32.xlu0 %v1140
    %v1142 = vpop.xlane.xlu0 %1141
    %v1143 = vsub.f32 %v1139, %v1142
    %v1144 = vmul.f32 %v1143, 1.442695
    %v1145 = vpow.pop %v1144
    %v1146 = vsel %vm1057, %v1145, 0.0
    %1147 = vadd.xlane.f32.xlu0 %v1146
    %v1148 = vpop.xlane.xlu0 %1147
    %v1149 = vrcp.pop %v1148
    %v1150 = vmul.f32 %v1145, %v1149
    %v1152 = vsel %vm1057, %v1150, 0
    %1154 = vmatprep.subr.mxu0 0.0
    %1155 = vmatpush1.msra.mxu0 0.0
    %1156 = vmatprep.subr.mxu0 0.0
    %1157 = vmatpush1.msra.mxu0 0.0
    %1158 = vmatprep.subr.mxu0 0.0
    %1159 = vmatpush1.msra.mxu0 0.0
    %1160 = vmatprep.subr.mxu0 0.0
    %1161 = vmatpush1.msra.mxu0 0.0
    %1162 = vmatprep.subr.mxu0 0.0
    %1163 = vmatpush1.msra.mxu0 0.0
    %1164 = vmatprep.subr.mxu0 0.0
    %1165 = vmatpush1.msra.mxu0 0.0
    %1166 = vmatprep.subr.mxu0 0.0
    %1167 = vmatpush1.msra.mxu0 0.0
    %1168 = vmatprep.subr.mxu0 0.0
    %1169 = vmatpush1.msra.mxu0 0.0
    %1170 = vmatprep.subr.mxu0 0.0
    %1171 = vmatpush1.msra.mxu0 0.0
    %1172 = vmatprep.subr.mxu0 0.0
    %1173 = vmatpush1.msra.mxu0 0.0
    %1174 = vmatprep.subr.mxu0 0.0
    %1175 = vmatpush1.msra.mxu0 0.0
    %1176 = vmatprep.subr.mxu0 0.0
    %1177 = vmatpush1.msra.mxu0 0.0
    %1178 = vmatprep.subr.mxu0 0.0
    %1179 = vmatpush1.msra.mxu0 0.0
    %1180 = vmatprep.subr.mxu0 0.0
    %1181 = vmatpush1.msra.mxu0 0.0
    %1182 = vmatprep.subr.mxu0 0.0
    %1183 = vmatpush1.msra.mxu0 0.0
    %1184 = vmatprep.subr.mxu0 0.0
    %1185 = vmatpush1.msra.mxu0 %v794
    %1186 = vmatprep.subr.mxu0 0.0
    %1187 = vmatpush2.msra.mxu0 0.0
    %1188 = vmatprep.subr.mxu0 0.0
    %1189 = vmatpush2.msra.mxu0 0.0
    %1190 = vmatprep.subr.mxu0 0.0
    %1191 = vmatpush2.msra.mxu0 0.0
    %1192 = vmatprep.subr.mxu0 0.0
    %1193 = vmatpush2.msra.mxu0 0.0
    %1194 = vmatprep.subr.mxu0 0.0
    %1195 = vmatpush2.msra.mxu0 0.0
    %1196 = vmatprep.subr.mxu0 0.0
    %1197 = vmatpush2.msra.mxu0 0.0
    %1198 = vmatprep.subr.mxu0 0.0
    %1199 = vmatpush2.msra.mxu0 0.0
    %1200 = vmatprep.subr.mxu0 0.0
    %1201 = vmatpush2.msra.mxu0 0.0
    %1202 = vmatprep.subr.mxu0 0.0
    %1203 = vmatpush2.msra.mxu0 0.0
    %1204 = vmatprep.subr.mxu0 0.0
    %1205 = vmatpush2.msra.mxu0 0.0
    %1206 = vmatprep.subr.mxu0 0.0
    %1207 = vmatpush2.msra.mxu0 0.0
    %1208 = vmatprep.subr.mxu0 0.0
    %1209 = vmatpush2.msra.mxu0 0.0
    %1210 = vmatprep.subr.mxu0 0.0
    %1211 = vmatpush2.msra.mxu0 0.0
    %1212 = vmatprep.subr.mxu0 0.0
    %1213 = vmatpush2.msra.mxu0 0.0
    %1214 = vmatprep.subr.mxu0 0.0
    %1215 = vmatpush2.msra.mxu0 0.0
    %1216 = vmatprep.subr.mxu0 0.0
    %1217 = vmatpush2.msra.mxu0 0.0
    %1218 = vmatprep.mubr.f32.mxu0 0.0
    %1219 = vmatmul.mubr.f32.gmra.mxu0 %v1152
    %v1220 = vpop.f32.mrf.mxu0
    %v1221 = vadd.f32 0.0, %v1220
    %v1222 = vpop.f32.mrf.mxu0
    %1223 = vdwg.mxu0
    %v1224 = vld [vmem:[%s3] sm:$0xff]
    %v1226 = vsel %vm1057, %v199, 0
    %v1229 = vsel %vm1057, %v539, 0
    %1231 = vmatprep.subr.mxu0 0.0
    %1232 = vmatpush1.xpose.msra.mxu0 0.0
    %1233 = vmatprep.subr.mxu0 0.0
    %1234 = vmatpush1.xpose.msra.mxu0 0.0
    %1235 = vmatprep.subr.mxu0 0.0
    %1236 = vmatpush1.xpose.msra.mxu0 0.0
    %1237 = vmatprep.subr.mxu0 0.0
    %1238 = vmatpush1.xpose.msra.mxu0 0.0
    %1239 = vmatprep.subr.mxu0 0.0
    %1240 = vmatpush1.xpose.msra.mxu0 0.0
    %1241 = vmatprep.subr.mxu0 0.0
    %1242 = vmatpush1.xpose.msra.mxu0 0.0
    %1243 = vmatprep.subr.mxu0 0.0
    %1244 = vmatpush1.xpose.msra.mxu0 0.0
    %1245 = vmatprep.subr.mxu0 0.0
    %1246 = vmatpush1.xpose.msra.mxu0 0.0
    %1247 = vmatprep.subr.mxu0 0.0
    %1248 = vmatpush1.xpose.msra.mxu0 0.0
    %1249 = vmatprep.subr.mxu0 0.0
    %1250 = vmatpush1.xpose.msra.mxu0 0.0
    %1251 = vmatprep.subr.mxu0 0.0
    %1252 = vmatpush1.xpose.msra.mxu0 0.0
    %1253 = vmatprep.subr.mxu0 0.0
    %1254 = vmatpush1.xpose.msra.mxu0 0.0
    %1255 = vmatprep.subr.mxu0 0.0
    %1256 = vmatpush1.xpose.msra.mxu0 0.0
    %1257 = vmatprep.subr.mxu0 0.0
    %1258 = vmatpush1.xpose.msra.mxu0 0.0
    %1259 = vmatprep.subr.mxu0 0.0
    %1260 = vmatpush1.xpose.msra.mxu0 0.0
    %1261 = vmatprep.subr.mxu0 0.0
    %1262 = vmatpush1.xpose.msra.mxu0 %v1229
    %1263 = vmatprep.subr.mxu0 0.0
    %1264 = vmatpush2.xpose.msra.mxu0 0.0
    %1265 = vmatprep.subr.mxu0 0.0
    %1266 = vmatpush2.xpose.msra.mxu0 0.0
    %1267 = vmatprep.subr.mxu0 0.0
    %1268 = vmatpush2.xpose.msra.mxu0 0.0
    %1269 = vmatprep.subr.mxu0 0.0
    %1270 = vmatpush2.xpose.msra.mxu0 0.0
    %1271 = vmatprep.subr.mxu0 0.0
    %1272 = vmatpush2.xpose.msra.mxu0 0.0
    %1273 = vmatprep.subr.mxu0 0.0
    %1274 = vmatpush2.xpose.msra.mxu0 0.0
    %1275 = vmatprep.subr.mxu0 0.0
    %1276 = vmatpush2.xpose.msra.mxu0 0.0
    %1277 = vmatprep.subr.mxu0 0.0
    %1278 = vmatpush2.xpose.msra.mxu0 0.0
    %1279 = vmatprep.subr.mxu0 0.0
    %1280 = vmatpush2.xpose.msra.mxu0 0.0
    %1281 = vmatprep.subr.mxu0 0.0
    %1282 = vmatpush2.xpose.msra.mxu0 0.0
    %1283 = vmatprep.subr.mxu0 0.0
    %1284 = vmatpush2.xpose.msra.mxu0 0.0
    %1285 = vmatprep.subr.mxu0 0.0
    %1286 = vmatpush2.xpose.msra.mxu0 0.0
    %1287 = vmatprep.subr.mxu0 0.0
    %1288 = vmatpush2.xpose.msra.mxu0 0.0
    %1289 = vmatprep.subr.mxu0 0.0
    %1290 = vmatpush2.xpose.msra.mxu0 0.0
    %1291 = vmatprep.subr.mxu0 0.0
    %1292 = vmatpush2.xpose.msra.mxu0 0.0
    %1293 = vmatprep.subr.mxu0 0.0
    %1294 = vmatpush2.xpose.msra.mxu0 0.0
    %1295 = vmatprep.mubr.f32.mxu0 0.0
    %1296 = vmatmul.mubr.f32.gmra.mxu0 %v1226
    %v1297 = vpop.f32.mrf.mxu0
    %v1298 = vadd.f32 0.0, %v1297
    %v1299 = vpop.f32.mrf.mxu0
    %1300 = vdwg.mxu0
    %v1301 = vmul.f32 %v1298, 0.35355338
    %v1302 = vadd.f32 %v1301, %v1138
    %v1303 = vsel %vm1057, %v1302, -inf
    %1304 = vmax.xlane.f32.xlu0 %v1303
    %v1305 = vpop.xlane.xlu0 %1304
    %v1306 = vsub.f32 %v1302, %v1305
    %v1307 = vmul.f32 %v1306, 1.442695
    %v1308 = vpow.pop %v1307
    %v1309 = vsel %vm1057, %v1308, 0.0
    %1310 = vadd.xlane.f32.xlu0 %v1309
    %v1311 = vpop.xlane.xlu0 %1310
    %v1312 = vrcp.pop %v1311
    %v1313 = vmul.f32 %v1308, %v1312
    %v1315 = vsel %vm1057, %v1313, 0
    %1317 = vmatprep.subr.mxu0 0.0
    %1318 = vmatpush1.msra.mxu0 0.0
    %1319 = vmatprep.subr.mxu0 0.0
    %1320 = vmatpush1.msra.mxu0 0.0
    %1321 = vmatprep.subr.mxu0 0.0
    %1322 = vmatpush1.msra.mxu0 0.0
    %1323 = vmatprep.subr.mxu0 0.0
    %1324 = vmatpush1.msra.mxu0 0.0
    %1325 = vmatprep.subr.mxu0 0.0
    %1326 = vmatpush1.msra.mxu0 0.0
    %1327 = vmatprep.subr.mxu0 0.0
    %1328 = vmatpush1.msra.mxu0 0.0
    %1329 = vmatprep.subr.mxu0 0.0
    %1330 = vmatpush1.msra.mxu0 0.0
    %1331 = vmatprep.subr.mxu0 0.0
    %1332 = vmatpush1.msra.mxu0 0.0
    %1333 = vmatprep.subr.mxu0 0.0
    %1334 = vmatpush1.msra.mxu0 0.0
    %1335 = vmatprep.subr.mxu0 0.0
    %1336 = vmatpush1.msra.mxu0 0.0
    %1337 = vmatprep.subr.mxu0 0.0
    %1338 = vmatpush1.msra.mxu0 0.0
    %1339 = vmatprep.subr.mxu0 0.0
    %1340 = vmatpush1.msra.mxu0 0.0
    %1341 = vmatprep.subr.mxu0 0.0
    %1342 = vmatpush1.msra.mxu0 0.0
    %1343 = vmatprep.subr.mxu0 0.0
    %1344 = vmatpush1.msra.mxu0 0.0
    %1345 = vmatprep.subr.mxu0 0.0
    %1346 = vmatpush1.msra.mxu0 0.0
    %1347 = vmatprep.subr.mxu0 0.0
    %1348 = vmatpush1.msra.mxu0 %v879
    %1349 = vmatprep.subr.mxu0 0.0
    %1350 = vmatpush2.msra.mxu0 0.0
    %1351 = vmatprep.subr.mxu0 0.0
    %1352 = vmatpush2.msra.mxu0 0.0
    %1353 = vmatprep.subr.mxu0 0.0
    %1354 = vmatpush2.msra.mxu0 0.0
    %1355 = vmatprep.subr.mxu0 0.0
    %1356 = vmatpush2.msra.mxu0 0.0
    %1357 = vmatprep.subr.mxu0 0.0
    %1358 = vmatpush2.msra.mxu0 0.0
    %1359 = vmatprep.subr.mxu0 0.0
    %1360 = vmatpush2.msra.mxu0 0.0
    %1361 = vmatprep.subr.mxu0 0.0
    %1362 = vmatpush2.msra.mxu0 0.0
    %1363 = vmatprep.subr.mxu0 0.0
    %1364 = vmatpush2.msra.mxu0 0.0
    %1365 = vmatprep.subr.mxu0 0.0
    %1366 = vmatpush2.msra.mxu0 0.0
    %1367 = vmatprep.subr.mxu0 0.0
    %1368 = vmatpush2.msra.mxu0 0.0
    %1369 = vmatprep.subr.mxu0 0.0
    %1370 = vmatpush2.msra.mxu0 0.0
    %1371 = vmatprep.subr.mxu0 0.0
    %1372 = vmatpush2.msra.mxu0 0.0
    %1373 = vmatprep.subr.mxu0 0.0
    %1374 = vmatpush2.msra.mxu0 0.0
    %1375 = vmatprep.subr.mxu0 0.0
    %1376 = vmatpush2.msra.mxu0 0.0
    %1377 = vmatprep.subr.mxu0 0.0
    %1378 = vmatpush2.msra.mxu0 0.0
    %1379 = vmatprep.subr.mxu0 0.0
    %1380 = vmatpush2.msra.mxu0 0.0
    %1381 = vmatprep.mubr.f32.mxu0 0.0
    %1382 = vmatmul.mubr.f32.gmra.mxu0 %v1315
    %v1383 = vpop.f32.mrf.mxu0
    %v1384 = vadd.f32 0.0, %v1383
    %v1385 = vpop.f32.mrf.mxu0
    %1386 = vdwg.mxu0
    %v1387 = vld [vmem:[%s3 + $0x8] sm:$0xff]
    %v1389 = vsel %vm1057, %v1384, 0
    %1391 = vmatprep.subr.mxu0 0.0
    %1392 = vmatpush1.msra.mxu0 0.0
    %1393 = vmatprep.subr.mxu0 0.0
    %1394 = vmatpush1.msra.mxu0 0.0
    %1395 = vmatprep.subr.mxu0 0.0
    %1396 = vmatpush1.msra.mxu0 0.0
    %1397 = vmatprep.subr.mxu0 0.0
    %1398 = vmatpush1.msra.mxu0 0.0
    %1399 = vmatprep.subr.mxu0 0.0
    %1400 = vmatpush1.msra.mxu0 0.0
    %1401 = vmatprep.subr.mxu0 0.0
    %1402 = vmatpush1.msra.mxu0 0.0
    %1403 = vmatprep.subr.mxu0 0.0
    %1404 = vmatpush1.msra.mxu0 0.0
    %1405 = vmatprep.subr.mxu0 0.0
    %1406 = vmatpush1.msra.mxu0 0.0
    %1407 = vmatprep.subr.mxu0 0.0
    %1408 = vmatpush1.msra.mxu0 0.0
    %1409 = vmatprep.subr.mxu0 0.0
    %1410 = vmatpush1.msra.mxu0 0.0
    %1411 = vmatprep.subr.mxu0 0.0
    %1412 = vmatpush1.msra.mxu0 0.0
    %1413 = vmatprep.subr.mxu0 0.0
    %1414 = vmatpush1.msra.mxu0 0.0
    %1415 = vmatprep.subr.mxu0 0.0
    %1416 = vmatpush1.msra.mxu0 0.0
    %1417 = vmatprep.subr.mxu0 0.0
    %1418 = vmatpush1.msra.mxu0 0.0
    %1419 = vmatprep.subr.mxu0 0.0
    %1420 = vmatpush1.msra.mxu0 0.0
    %1421 = vmatprep.subr.mxu0 0.0
    %1422 = vmatpush1.msra.mxu0 %v1387
    %1423 = vmatprep.subr.mxu0 0.0
    %1424 = vmatpush2.msra.mxu0 0.0
    %1425 = vmatprep.subr.mxu0 0.0
    %1426 = vmatpush2.msra.mxu0 0.0
    %1427 = vmatprep.subr.mxu0 0.0
    %1428 = vmatpush2.msra.mxu0 0.0
    %1429 = vmatprep.subr.mxu0 0.0
    %1430 = vmatpush2.msra.mxu0 0.0
    %1431 = vmatprep.subr.mxu0 0.0
    %1432 = vmatpush2.msra.mxu0 0.0
    %1433 = vmatprep.subr.mxu0 0.0
    %1434 = vmatpush2.msra.mxu0 0.0
    %1435 = vmatprep.subr.mxu0 0.0
    %1436 = vmatpush2.msra.mxu0 0.0
    %1437 = vmatprep.subr.mxu0 0.0
    %1438 = vmatpush2.msra.mxu0 0.0
    %1439 = vmatprep.subr.mxu0 0.0
    %1440 = vmatpush2.msra.mxu0 0.0
    %1441 = vmatprep.subr.mxu0 0.0
    %1442 = vmatpush2.msra.mxu0 0.0
    %1443 = vmatprep.subr.mxu0 0.0
    %1444 = vmatpush2.msra.mxu0 0.0
    %1445 = vmatprep.subr.mxu0 0.0
    %1446 = vmatpush2.msra.mxu0 0.0
    %1447 = vmatprep.subr.mxu0 0.0
    %1448 = vmatpush2.msra.mxu0 0.0
    %1449 = vmatprep.subr.mxu0 0.0
    %1450 = vmatpush2.msra.mxu0 0.0
    %1451 = vmatprep.subr.mxu0 0.0
    %1452 = vmatpush2.msra.mxu0 0.0
    %1453 = vmatprep.subr.mxu0 0.0
    %1454 = vmatpush2.msra.mxu0 0.0
    %1455 = vmatprep.mubr.f32.mxu0 0.0
    %1456 = vmatmul.mubr.f32.gmra.mxu0 %v1389
    %v1457 = vpop.f32.mrf.mxu0
    %v1458 = vadd.f32 0.0, %v1457
    %v1459 = vpop.f32.mrf.mxu0
    %1460 = vdwg.mxu0
    %v1462 = vsel %vm1057, %v1221, 0
    %1464 = vmatprep.subr.mxu0 0.0
    %1465 = vmatpush1.msra.mxu0 0.0
    %1466 = vmatprep.subr.mxu0 0.0
    %1467 = vmatpush1.msra.mxu0 0.0
    %1468 = vmatprep.subr.mxu0 0.0
    %1469 = vmatpush1.msra.mxu0 0.0
    %1470 = vmatprep.subr.mxu0 0.0
    %1471 = vmatpush1.msra.mxu0 0.0
    %1472 = vmatprep.subr.mxu0 0.0
    %1473 = vmatpush1.msra.mxu0 0.0
    %1474 = vmatprep.subr.mxu0 0.0
    %1475 = vmatpush1.msra.mxu0 0.0
    %1476 = vmatprep.subr.mxu0 0.0
    %1477 = vmatpush1.msra.mxu0 0.0
    %1478 = vmatprep.subr.mxu0 0.0
    %1479 = vmatpush1.msra.mxu0 0.0
    %1480 = vmatprep.subr.mxu0 0.0
    %1481 = vmatpush1.msra.mxu0 0.0
    %1482 = vmatprep.subr.mxu0 0.0
    %1483 = vmatpush1.msra.mxu0 0.0
    %1484 = vmatprep.subr.mxu0 0.0
    %1485 = vmatpush1.msra.mxu0 0.0
    %1486 = vmatprep.subr.mxu0 0.0
    %1487 = vmatpush1.msra.mxu0 0.0
    %1488 = vmatprep.subr.mxu0 0.0
    %1489 = vmatpush1.msra.mxu0 0.0
    %1490 = vmatprep.subr.mxu0 0.0
    %1491 = vmatpush1.msra.mxu0 0.0
    %1492 = vmatprep.subr.mxu0 0.0
    %1493 = vmatpush1.msra.mxu0 0.0
    %1494 = vmatprep.subr.mxu0 0.0
    %1495 = vmatpush1.msra.mxu0 %v1224
    %1496 = vmatprep.subr.mxu0 0.0
    %1497 = vmatpush2.msra.mxu0 0.0
    %1498 = vmatprep.subr.mxu0 0.0
    %1499 = vmatpush2.msra.mxu0 0.0
    %1500 = vmatprep.subr.mxu0 0.0
    %1501 = vmatpush2.msra.mxu0 0.0
    %1502 = vmatprep.subr.mxu0 0.0
    %1503 = vmatpush2.msra.mxu0 0.0
    %1504 = vmatprep.subr.mxu0 0.0
    %1505 = vmatpush2.msra.mxu0 0.0
    %1506 = vmatprep.subr.mxu0 0.0
    %1507 = vmatpush2.msra.mxu0 0.0
    %1508 = vmatprep.subr.mxu0 0.0
    %1509 = vmatpush2.msra.mxu0 0.0
    %1510 = vmatprep.subr.mxu0 0.0
    %1511 = vmatpush2.msra.mxu0 0.0
    %1512 = vmatprep.subr.mxu0 0.0
    %1513 = vmatpush2.msra.mxu0 0.0
    %1514 = vmatprep.subr.mxu0 0.0
    %1515 = vmatpush2.msra.mxu0 0.0
    %1516 = vmatprep.subr.mxu0 0.0
    %1517 = vmatpush2.msra.mxu0 0.0
    %1518 = vmatprep.subr.mxu0 0.0
    %1519 = vmatpush2.msra.mxu0 0.0
    %1520 = vmatprep.subr.mxu0 0.0
    %1521 = vmatpush2.msra.mxu0 0.0
    %1522 = vmatprep.subr.mxu0 0.0
    %1523 = vmatpush2.msra.mxu0 0.0
    %1524 = vmatprep.subr.mxu0 0.0
    %1525 = vmatpush2.msra.mxu0 0.0
    %1526 = vmatprep.subr.mxu0 0.0
    %1527 = vmatpush2.msra.mxu0 0.0
    %1528 = vmatprep.mubr.f32.mxu0 0.0
    %1529 = vmatmul.mubr.f32.gmra.mxu0 %v1462
    %v1530 = vpop.f32.mrf.mxu0
    %v1531 = vadd.f32 %v1458, %v1530
    %v1532 = vpop.f32.mrf.mxu0
    %1533 = vdwg.mxu0
    %v1535 = vsel %vm1057, %v284, 0
    %v1538 = vsel %vm1057, %v624, 0
    %1540 = vmatprep.subr.mxu0 0.0
    %1541 = vmatpush1.xpose.msra.mxu0 0.0
    %1542 = vmatprep.subr.mxu0 0.0
    %1543 = vmatpush1.xpose.msra.mxu0 0.0
    %1544 = vmatprep.subr.mxu0 0.0
    %1545 = vmatpush1.xpose.msra.mxu0 0.0
    %1546 = vmatprep.subr.mxu0 0.0
    %1547 = vmatpush1.xpose.msra.mxu0 0.0
    %1548 = vmatprep.subr.mxu0 0.0
    %1549 = vmatpush1.xpose.msra.mxu0 0.0
    %1550 = vmatprep.subr.mxu0 0.0
    %1551 = vmatpush1.xpose.msra.mxu0 0.0
    %1552 = vmatprep.subr.mxu0 0.0
    %1553 = vmatpush1.xpose.msra.mxu0 0.0
    %1554 = vmatprep.subr.mxu0 0.0
    %1555 = vmatpush1.xpose.msra.mxu0 0.0
    %1556 = vmatprep.subr.mxu0 0.0
    %1557 = vmatpush1.xpose.msra.mxu0 0.0
    %1558 = vmatprep.subr.mxu0 0.0
    %1559 = vmatpush1.xpose.msra.mxu0 0.0
    %1560 = vmatprep.subr.mxu0 0.0
    %1561 = vmatpush1.xpose.msra.mxu0 0.0
    %1562 = vmatprep.subr.mxu0 0.0
    %1563 = vmatpush1.xpose.msra.mxu0 0.0
    %1564 = vmatprep.subr.mxu0 0.0
    %1565 = vmatpush1.xpose.msra.mxu0 0.0
    %1566 = vmatprep.subr.mxu0 0.0
    %1567 = vmatpush1.xpose.msra.mxu0 0.0
    %1568 = vmatprep.subr.mxu0 0.0
    %1569 = vmatpush1.xpose.msra.mxu0 0.0
    %1570 = vmatprep.subr.mxu0 0.0
    %1571 = vmatpush1.xpose.msra.mxu0 %v1538
    %1572 = vmatprep.subr.mxu0 0.0
    %1573 = vmatpush2.xpose.msra.mxu0 0.0
    %1574 = vmatprep.subr.mxu0 0.0
    %1575 = vmatpush2.xpose.msra.mxu0 0.0
    %1576 = vmatprep.subr.mxu0 0.0
    %1577 = vmatpush2.xpose.msra.mxu0 0.0
    %1578 = vmatprep.subr.mxu0 0.0
    %1579 = vmatpush2.xpose.msra.mxu0 0.0
    %1580 = vmatprep.subr.mxu0 0.0
    %1581 = vmatpush2.xpose.msra.mxu0 0.0
    %1582 = vmatprep.subr.mxu0 0.0
    %1583 = vmatpush2.xpose.msra.mxu0 0.0
    %1584 = vmatprep.subr.mxu0 0.0
    %1585 = vmatpush2.xpose.msra.mxu0 0.0
    %1586 = vmatprep.subr.mxu0 0.0
    %1587 = vmatpush2.xpose.msra.mxu0 0.0
    %1588 = vmatprep.subr.mxu0 0.0
    %1589 = vmatpush2.xpose.msra.mxu0 0.0
    %1590 = vmatprep.subr.mxu0 0.0
    %1591 = vmatpush2.xpose.msra.mxu0 0.0
    %1592 = vmatprep.subr.mxu0 0.0
    %1593 = vmatpush2.xpose.msra.mxu0 0.0
    %1594 = vmatprep.subr.mxu0 0.0
    %1595 = vmatpush2.xpose.msra.mxu0 0.0
    %1596 = vmatprep.subr.mxu0 0.0
    %1597 = vmatpush2.xpose.msra.mxu0 0.0
    %1598 = vmatprep.subr.mxu0 0.0
    %1599 = vmatpush2.xpose.msra.mxu0 0.0
    %1600 = vmatprep.subr.mxu0 0.0
    %1601 = vmatpush2.xpose.msra.mxu0 0.0
    %1602 = vmatprep.subr.mxu0 0.0
    %1603 = vmatpush2.xpose.msra.mxu0 0.0
    %1604 = vmatprep.mubr.f32.mxu0 0.0
    %1605 = vmatmul.mubr.f32.gmra.mxu0 %v1535
    %v1606 = vpop.f32.mrf.mxu0
    %v1607 = vadd.f32 0.0, %v1606
    %v1608 = vpop.f32.mrf.mxu0
    %1609 = vdwg.mxu0
    %v1610 = vmul.f32 %v1607, 0.35355338
    %v1611 = vadd.f32 %v1610, %v1138
    %v1612 = vsel %vm1057, %v1611, -inf
    %1613 = vmax.xlane.f32.xlu0 %v1612
    %v1614 = vpop.xlane.xlu0 %1613
    %v1615 = vsub.f32 %v1611, %v1614
    %v1616 = vmul.f32 %v1615, 1.442695
    %v1617 = vpow.pop %v1616
    %v1618 = vsel %vm1057, %v1617, 0.0
    %1619 = vadd.xlane.f32.xlu0 %v1618
    %v1620 = vpop.xlane.xlu0 %1619
    %v1621 = vrcp.pop %v1620
    %v1622 = vmul.f32 %v1617, %v1621
    %v1624 = vsel %vm1057, %v1622, 0
    %1626 = vmatprep.subr.mxu0 0.0
    %1627 = vmatpush1.msra.mxu0 0.0
    %1628 = vmatprep.subr.mxu0 0.0
    %1629 = vmatpush1.msra.mxu0 0.0
    %1630 = vmatprep.subr.mxu0 0.0
    %1631 = vmatpush1.msra.mxu0 0.0
    %1632 = vmatprep.subr.mxu0 0.0
    %1633 = vmatpush1.msra.mxu0 0.0
    %1634 = vmatprep.subr.mxu0 0.0
    %1635 = vmatpush1.msra.mxu0 0.0
    %1636 = vmatprep.subr.mxu0 0.0
    %1637 = vmatpush1.msra.mxu0 0.0
    %1638 = vmatprep.subr.mxu0 0.0
    %1639 = vmatpush1.msra.mxu0 0.0
    %1640 = vmatprep.subr.mxu0 0.0
    %1641 = vmatpush1.msra.mxu0 0.0
    %1642 = vmatprep.subr.mxu0 0.0
    %1643 = vmatpush1.msra.mxu0 0.0
    %1644 = vmatprep.subr.mxu0 0.0
    %1645 = vmatpush1.msra.mxu0 0.0
    %1646 = vmatprep.subr.mxu0 0.0
    %1647 = vmatpush1.msra.mxu0 0.0
    %1648 = vmatprep.subr.mxu0 0.0
    %1649 = vmatpush1.msra.mxu0 0.0
    %1650 = vmatprep.subr.mxu0 0.0
    %1651 = vmatpush1.msra.mxu0 0.0
    %1652 = vmatprep.subr.mxu0 0.0
    %1653 = vmatpush1.msra.mxu0 0.0
    %1654 = vmatprep.subr.mxu0 0.0
    %1655 = vmatpush1.msra.mxu0 0.0
    %1656 = vmatprep.subr.mxu0 0.0
    %1657 = vmatpush1.msra.mxu0 %v964
    %1658 = vmatprep.subr.mxu0 0.0
    %1659 = vmatpush2.msra.mxu0 0.0
    %1660 = vmatprep.subr.mxu0 0.0
    %1661 = vmatpush2.msra.mxu0 0.0
    %1662 = vmatprep.subr.mxu0 0.0
    %1663 = vmatpush2.msra.mxu0 0.0
    %1664 = vmatprep.subr.mxu0 0.0
    %1665 = vmatpush2.msra.mxu0 0.0
    %1666 = vmatprep.subr.mxu0 0.0
    %1667 = vmatpush2.msra.mxu0 0.0
    %1668 = vmatprep.subr.mxu0 0.0
    %1669 = vmatpush2.msra.mxu0 0.0
    %1670 = vmatprep.subr.mxu0 0.0
    %1671 = vmatpush2.msra.mxu0 0.0
    %1672 = vmatprep.subr.mxu0 0.0
    %1673 = vmatpush2.msra.mxu0 0.0
    %1674 = vmatprep.subr.mxu0 0.0
    %1675 = vmatpush2.msra.mxu0 0.0
    %1676 = vmatprep.subr.mxu0 0.0
    %1677 = vmatpush2.msra.mxu0 0.0
    %1678 = vmatprep.subr.mxu0 0.0
    %1679 = vmatpush2.msra.mxu0 0.0
    %1680 = vmatprep.subr.mxu0 0.0
    %1681 = vmatpush2.msra.mxu0 0.0
    %1682 = vmatprep.subr.mxu0 0.0
    %1683 = vmatpush2.msra.mxu0 0.0
    %1684 = vmatprep.subr.mxu0 0.0
    %1685 = vmatpush2.msra.mxu0 0.0
    %1686 = vmatprep.subr.mxu0 0.0
    %1687 = vmatpush2.msra.mxu0 0.0
    %1688 = vmatprep.subr.mxu0 0.0
    %1689 = vmatpush2.msra.mxu0 0.0
    %1690 = vmatprep.mubr.f32.mxu0 0.0
    %1691 = vmatmul.mubr.f32.gmra.mxu0 %v1624
    %v1692 = vpop.f32.mrf.mxu0
    %v1693 = vadd.f32 0.0, %v1692
    %v1694 = vpop.f32.mrf.mxu0
    %1695 = vdwg.mxu0
    %v1696 = vld [vmem:[%s3 + $0x10] sm:$0xff]
    %v1698 = vsel %vm1057, %v1693, 0
    %1700 = vmatprep.subr.mxu0 0.0
    %1701 = vmatpush1.msra.mxu0 0.0
    %1702 = vmatprep.subr.mxu0 0.0
    %1703 = vmatpush1.msra.mxu0 0.0
    %1704 = vmatprep.subr.mxu0 0.0
    %1705 = vmatpush1.msra.mxu0 0.0
    %1706 = vmatprep.subr.mxu0 0.0
    %1707 = vmatpush1.msra.mxu0 0.0
    %1708 = vmatprep.subr.mxu0 0.0
    %1709 = vmatpush1.msra.mxu0 0.0
    %1710 = vmatprep.subr.mxu0 0.0
    %1711 = vmatpush1.msra.mxu0 0.0
    %1712 = vmatprep.subr.mxu0 0.0
    %1713 = vmatpush1.msra.mxu0 0.0
    %1714 = vmatprep.subr.mxu0 0.0
    %1715 = vmatpush1.msra.mxu0 0.0
    %1716 = vmatprep.subr.mxu0 0.0
    %1717 = vmatpush1.msra.mxu0 0.0
    %1718 = vmatprep.subr.mxu0 0.0
    %1719 = vmatpush1.msra.mxu0 0.0
    %1720 = vmatprep.subr.mxu0 0.0
    %1721 = vmatpush1.msra.mxu0 0.0
    %1722 = vmatprep.subr.mxu0 0.0
    %1723 = vmatpush1.msra.mxu0 0.0
    %1724 = vmatprep.subr.mxu0 0.0
    %1725 = vmatpush1.msra.mxu0 0.0
    %1726 = vmatprep.subr.mxu0 0.0
    %1727 = vmatpush1.msra.mxu0 0.0
    %1728 = vmatprep.subr.mxu0 0.0
    %1729 = vmatpush1.msra.mxu0 0.0
    %1730 = vmatprep.subr.mxu0 0.0
    %1731 = vmatpush1.msra.mxu0 %v1696
    %1732 = vmatprep.subr.mxu0 0.0
    %1733 = vmatpush2.msra.mxu0 0.0
    %1734 = vmatprep.subr.mxu0 0.0
    %1735 = vmatpush2.msra.mxu0 0.0
    %1736 = vmatprep.subr.mxu0 0.0
    %1737 = vmatpush2.msra.mxu0 0.0
    %1738 = vmatprep.subr.mxu0 0.0
    %1739 = vmatpush2.msra.mxu0 0.0
    %1740 = vmatprep.subr.mxu0 0.0
    %1741 = vmatpush2.msra.mxu0 0.0
    %1742 = vmatprep.subr.mxu0 0.0
    %1743 = vmatpush2.msra.mxu0 0.0
    %1744 = vmatprep.subr.mxu0 0.0
    %1745 = vmatpush2.msra.mxu0 0.0
    %1746 = vmatprep.subr.mxu0 0.0
    %1747 = vmatpush2.msra.mxu0 0.0
    %1748 = vmatprep.subr.mxu0 0.0
    %1749 = vmatpush2.msra.mxu0 0.0
    %1750 = vmatprep.subr.mxu0 0.0
    %1751 = vmatpush2.msra.mxu0 0.0
    %1752 = vmatprep.subr.mxu0 0.0
    %1753 = vmatpush2.msra.mxu0 0.0
    %1754 = vmatprep.subr.mxu0 0.0
    %1755 = vmatpush2.msra.mxu0 0.0
    %1756 = vmatprep.subr.mxu0 0.0
    %1757 = vmatpush2.msra.mxu0 0.0
    %1758 = vmatprep.subr.mxu0 0.0
    %1759 = vmatpush2.msra.mxu0 0.0
    %1760 = vmatprep.subr.mxu0 0.0
    %1761 = vmatpush2.msra.mxu0 0.0
    %1762 = vmatprep.subr.mxu0 0.0
    %1763 = vmatpush2.msra.mxu0 0.0
    %1764 = vmatprep.mubr.f32.mxu0 0.0
    %1765 = vmatmul.mubr.f32.gmra.mxu0 %v1698
    %v1766 = vpop.f32.mrf.mxu0
    %v1767 = vadd.f32 0.0, %v1766
    %v1768 = vpop.f32.mrf.mxu0
    %1769 = vdwg.mxu0
    %v1770 = vadd.f32 %v1531, %v1767
    %v1772 = vsel %vm1057, %v369, 0
    %v1775 = vsel %vm1057, %v709, 0
    %1777 = vmatprep.subr.mxu0 0.0
    %1778 = vmatpush1.xpose.msra.mxu0 0.0
    %1779 = vmatprep.subr.mxu0 0.0
    %1780 = vmatpush1.xpose.msra.mxu0 0.0
    %1781 = vmatprep.subr.mxu0 0.0
    %1782 = vmatpush1.xpose.msra.mxu0 0.0
    %1783 = vmatprep.subr.mxu0 0.0
    %1784 = vmatpush1.xpose.msra.mxu0 0.0
    %1785 = vmatprep.subr.mxu0 0.0
    %1786 = vmatpush1.xpose.msra.mxu0 0.0
    %1787 = vmatprep.subr.mxu0 0.0
    %1788 = vmatpush1.xpose.msra.mxu0 0.0
    %1789 = vmatprep.subr.mxu0 0.0
    %1790 = vmatpush1.xpose.msra.mxu0 0.0
    %1791 = vmatprep.subr.mxu0 0.0
    %1792 = vmatpush1.xpose.msra.mxu0 0.0
    %1793 = vmatprep.subr.mxu0 0.0
    %1794 = vmatpush1.xpose.msra.mxu0 0.0
    %1795 = vmatprep.subr.mxu0 0.0
    %1796 = vmatpush1.xpose.msra.mxu0 0.0
    %1797 = vmatprep.subr.mxu0 0.0
    %1798 = vmatpush1.xpose.msra.mxu0 0.0
    %1799 = vmatprep.subr.mxu0 0.0
    %1800 = vmatpush1.xpose.msra.mxu0 0.0
    %1801 = vmatprep.subr.mxu0 0.0
    %1802 = vmatpush1.xpose.msra.mxu0 0.0
    %1803 = vmatprep.subr.mxu0 0.0
    %1804 = vmatpush1.xpose.msra.mxu0 0.0
    %1805 = vmatprep.subr.mxu0 0.0
    %1806 = vmatpush1.xpose.msra.mxu0 0.0
    %1807 = vmatprep.subr.mxu0 0.0
    %1808 = vmatpush1.xpose.msra.mxu0 %v1775
    %1809 = vmatprep.subr.mxu0 0.0
    %1810 = vmatpush2.xpose.msra.mxu0 0.0
    %1811 = vmatprep.subr.mxu0 0.0
    %1812 = vmatpush2.xpose.msra.mxu0 0.0
    %1813 = vmatprep.subr.mxu0 0.0
    %1814 = vmatpush2.xpose.msra.mxu0 0.0
    %1815 = vmatprep.subr.mxu0 0.0
    %1816 = vmatpush2.xpose.msra.mxu0 0.0
    %1817 = vmatprep.subr.mxu0 0.0
    %1818 = vmatpush2.xpose.msra.mxu0 0.0
    %1819 = vmatprep.subr.mxu0 0.0
    %1820 = vmatpush2.xpose.msra.mxu0 0.0
    %1821 = vmatprep.subr.mxu0 0.0
    %1822 = vmatpush2.xpose.msra.mxu0 0.0
    %1823 = vmatprep.subr.mxu0 0.0
    %1824 = vmatpush2.xpose.msra.mxu0 0.0
    %1825 = vmatprep.subr.mxu0 0.0
    %1826 = vmatpush2.xpose.msra.mxu0 0.0
    %1827 = vmatprep.subr.mxu0 0.0
    %1828 = vmatpush2.xpose.msra.mxu0 0.0
    %1829 = vmatprep.subr.mxu0 0.0
    %1830 = vmatpush2.xpose.msra.mxu0 0.0
    %1831 = vmatprep.subr.mxu0 0.0
    %1832 = vmatpush2.xpose.msra.mxu0 0.0
    %1833 = vmatprep.subr.mxu0 0.0
    %1834 = vmatpush2.xpose.msra.mxu0 0.0
    %1835 = vmatprep.subr.mxu0 0.0
    %1836 = vmatpush2.xpose.msra.mxu0 0.0
    %1837 = vmatprep.subr.mxu0 0.0
    %1838 = vmatpush2.xpose.msra.mxu0 0.0
    %1839 = vmatprep.subr.mxu0 0.0
    %1840 = vmatpush2.xpose.msra.mxu0 0.0
    %1841 = vmatprep.mubr.f32.mxu0 0.0
    %1842 = vmatmul.mubr.f32.gmra.mxu0 %v1772
    %v1843 = vpop.f32.mrf.mxu0
    %v1844 = vadd.f32 0.0, %v1843
    %v1845 = vpop.f32.mrf.mxu0
    %1846 = vdwg.mxu0
    %v1847 = vmul.f32 %v1844, 0.35355338
    %v1848 = vadd.f32 %v1847, %v1138
    %v1849 = vsel %vm1057, %v1848, -inf
    %1850 = vmax.xlane.f32.xlu0 %v1849
    %v1851 = vpop.xlane.xlu0 %1850
    %v1852 = vsub.f32 %v1848, %v1851
    %v1853 = vmul.f32 %v1852, 1.442695
    %v1854 = vpow.pop %v1853
    %v1855 = vsel %vm1057, %v1854, 0.0
    %1856 = vadd.xlane.f32.xlu0 %v1855
    %v1857 = vpop.xlane.xlu0 %1856
    %v1858 = vrcp.pop %v1857
    %v1859 = vmul.f32 %v1854, %v1858
    %v1861 = vsel %vm1057, %v1859, 0
    %1863 = vmatprep.subr.mxu0 0.0
    %1864 = vmatpush1.msra.mxu0 0.0
    %1865 = vmatprep.subr.mxu0 0.0
    %1866 = vmatpush1.msra.mxu0 0.0
    %1867 = vmatprep.subr.mxu0 0.0
    %1868 = vmatpush1.msra.mxu0 0.0
    %1869 = vmatprep.subr.mxu0 0.0
    %1870 = vmatpush1.msra.mxu0 0.0
    %1871 = vmatprep.subr.mxu0 0.0
    %1872 = vmatpush1.msra.mxu0 0.0
    %1873 = vmatprep.subr.mxu0 0.0
    %1874 = vmatpush1.msra.mxu0 0.0
    %1875 = vmatprep.subr.mxu0 0.0
    %1876 = vmatpush1.msra.mxu0 0.0
    %1877 = vmatprep.subr.mxu0 0.0
    %1878 = vmatpush1.msra.mxu0 0.0
    %1879 = vmatprep.subr.mxu0 0.0
    %1880 = vmatpush1.msra.mxu0 0.0
    %1881 = vmatprep.subr.mxu0 0.0
    %1882 = vmatpush1.msra.mxu0 0.0
    %1883 = vmatprep.subr.mxu0 0.0
    %1884 = vmatpush1.msra.mxu0 0.0
    %1885 = vmatprep.subr.mxu0 0.0
    %1886 = vmatpush1.msra.mxu0 0.0
    %1887 = vmatprep.subr.mxu0 0.0
    %1888 = vmatpush1.msra.mxu0 0.0
    %1889 = vmatprep.subr.mxu0 0.0
    %1890 = vmatpush1.msra.mxu0 0.0
    %1891 = vmatprep.subr.mxu0 0.0
    %1892 = vmatpush1.msra.mxu0 0.0
    %1893 = vmatprep.subr.mxu0 0.0
    %1894 = vmatpush1.msra.mxu0 %v1049
    %1895 = vmatprep.subr.mxu0 0.0
    %1896 = vmatpush2.msra.mxu0 0.0
    %1897 = vmatprep.subr.mxu0 0.0
    %1898 = vmatpush2.msra.mxu0 0.0
    %1899 = vmatprep.subr.mxu0 0.0
    %1900 = vmatpush2.msra.mxu0 0.0
    %1901 = vmatprep.subr.mxu0 0.0
    %1902 = vmatpush2.msra.mxu0 0.0
    %1903 = vmatprep.subr.mxu0 0.0
    %1904 = vmatpush2.msra.mxu0 0.0
    %1905 = vmatprep.subr.mxu0 0.0
    %1906 = vmatpush2.msra.mxu0 0.0
    %1907 = vmatprep.subr.mxu0 0.0
    %1908 = vmatpush2.msra.mxu0 0.0
    %1909 = vmatprep.subr.mxu0 0.0
    %1910 = vmatpush2.msra.mxu0 0.0
    %1911 = vmatprep.subr.mxu0 0.0
    %1912 = vmatpush2.msra.mxu0 0.0
    %1913 = vmatprep.subr.mxu0 0.0
    %1914 = vmatpush2.msra.mxu0 0.0
    %1915 = vmatprep.subr.mxu0 0.0
    %1916 = vmatpush2.msra.mxu0 0.0
    %1917 = vmatprep.subr.mxu0 0.0
    %1918 = vmatpush2.msra.mxu0 0.0
    %1919 = vmatprep.subr.mxu0 0.0
    %1920 = vmatpush2.msra.mxu0 0.0
    %1921 = vmatprep.subr.mxu0 0.0
    %1922 = vmatpush2.msra.mxu0 0.0
    %1923 = vmatprep.subr.mxu0 0.0
    %1924 = vmatpush2.msra.mxu0 0.0
    %1925 = vmatprep.subr.mxu0 0.0
    %1926 = vmatpush2.msra.mxu0 0.0
    %1927 = vmatprep.mubr.f32.mxu0 0.0
    %1928 = vmatmul.mubr.f32.gmra.mxu0 %v1861
    %v1929 = vpop.f32.mrf.mxu0
    %v1930 = vadd.f32 0.0, %v1929
    %v1931 = vpop.f32.mrf.mxu0
    %1932 = vdwg.mxu0
    %v1933 = vld [vmem:[%s3 + $0x18] sm:$0xff]
    %v1935 = vsel %vm1057, %v1930, 0
    %1937 = vmatprep.subr.mxu0 0.0
    %1938 = vmatpush1.msra.mxu0 0.0
    %1939 = vmatprep.subr.mxu0 0.0
    %1940 = vmatpush1.msra.mxu0 0.0
    %1941 = vmatprep.subr.mxu0 0.0
    %1942 = vmatpush1.msra.mxu0 0.0
    %1943 = vmatprep.subr.mxu0 0.0
    %1944 = vmatpush1.msra.mxu0 0.0
    %1945 = vmatprep.subr.mxu0 0.0
    %1946 = vmatpush1.msra.mxu0 0.0
    %1947 = vmatprep.subr.mxu0 0.0
    %1948 = vmatpush1.msra.mxu0 0.0
    %1949 = vmatprep.subr.mxu0 0.0
    %1950 = vmatpush1.msra.mxu0 0.0
    %1951 = vmatprep.subr.mxu0 0.0
    %1952 = vmatpush1.msra.mxu0 0.0
    %1953 = vmatprep.subr.mxu0 0.0
    %1954 = vmatpush1.msra.mxu0 0.0
    %1955 = vmatprep.subr.mxu0 0.0
    %1956 = vmatpush1.msra.mxu0 0.0
    %1957 = vmatprep.subr.mxu0 0.0
    %1958 = vmatpush1.msra.mxu0 0.0
    %1959 = vmatprep.subr.mxu0 0.0
    %1960 = vmatpush1.msra.mxu0 0.0
    %1961 = vmatprep.subr.mxu0 0.0
    %1962 = vmatpush1.msra.mxu0 0.0
    %1963 = vmatprep.subr.mxu0 0.0
    %1964 = vmatpush1.msra.mxu0 0.0
    %1965 = vmatprep.subr.mxu0 0.0
    %1966 = vmatpush1.msra.mxu0 0.0
    %1967 = vmatprep.subr.mxu0 0.0
    %1968 = vmatpush1.msra.mxu0 %v1933
    %1969 = vmatprep.subr.mxu0 0.0
    %1970 = vmatpush2.msra.mxu0 0.0
    %1971 = vmatprep.subr.mxu0 0.0
    %1972 = vmatpush2.msra.mxu0 0.0
    %1973 = vmatprep.subr.mxu0 0.0
    %1974 = vmatpush2.msra.mxu0 0.0
    %1975 = vmatprep.subr.mxu0 0.0
    %1976 = vmatpush2.msra.mxu0 0.0
    %1977 = vmatprep.subr.mxu0 0.0
    %1978 = vmatpush2.msra.mxu0 0.0
    %1979 = vmatprep.subr.mxu0 0.0
    %1980 = vmatpush2.msra.mxu0 0.0
    %1981 = vmatprep.subr.mxu0 0.0
    %1982 = vmatpush2.msra.mxu0 0.0
    %1983 = vmatprep.subr.mxu0 0.0
    %1984 = vmatpush2.msra.mxu0 0.0
    %1985 = vmatprep.subr.mxu0 0.0
    %1986 = vmatpush2.msra.mxu0 0.0
    %1987 = vmatprep.subr.mxu0 0.0
    %1988 = vmatpush2.msra.mxu0 0.0
    %1989 = vmatprep.subr.mxu0 0.0
    %1990 = vmatpush2.msra.mxu0 0.0
    %1991 = vmatprep.subr.mxu0 0.0
    %1992 = vmatpush2.msra.mxu0 0.0
    %1993 = vmatprep.subr.mxu0 0.0
    %1994 = vmatpush2.msra.mxu0 0.0
    %1995 = vmatprep.subr.mxu0 0.0
    %1996 = vmatpush2.msra.mxu0 0.0
    %1997 = vmatprep.subr.mxu0 0.0
    %1998 = vmatpush2.msra.mxu0 0.0
    %1999 = vmatprep.subr.mxu0 0.0
    %2000 = vmatpush2.msra.mxu0 0.0
    %2001 = vmatprep.mubr.f32.mxu0 0.0
    %2002 = vmatmul.mubr.f32.gmra.mxu0 %v1935
    %v2003 = vpop.f32.mrf.mxu0
    %v2004 = vadd.f32 0.0, %v2003
    %v2005 = vpop.f32.mrf.mxu0
    %2006 = vdwg.mxu0
    %v2007 = vadd.f32 %v1770, %v2004
    %v2009 = vsel %vm1057, %v119, 0
    %v2012 = vsel %vm1057, %v459, 0
    %2014 = vmatprep.subr.mxu0 0.0
    %2015 = vmatpush1.xpose.msra.mxu0 0.0
    %2016 = vmatprep.subr.mxu0 0.0
    %2017 = vmatpush1.xpose.msra.mxu0 0.0
    %2018 = vmatprep.subr.mxu0 0.0
    %2019 = vmatpush1.xpose.msra.mxu0 0.0
    %2020 = vmatprep.subr.mxu0 0.0
    %2021 = vmatpush1.xpose.msra.mxu0 0.0
    %2022 = vmatprep.subr.mxu0 0.0
    %2023 = vmatpush1.xpose.msra.mxu0 0.0
    %2024 = vmatprep.subr.mxu0 0.0
    %2025 = vmatpush1.xpose.msra.mxu0 0.0
    %2026 = vmatprep.subr.mxu0 0.0
    %2027 = vmatpush1.xpose.msra.mxu0 0.0
    %2028 = vmatprep.subr.mxu0 0.0
    %2029 = vmatpush1.xpose.msra.mxu0 0.0
    %2030 = vmatprep.subr.mxu0 0.0
    %2031 = vmatpush1.xpose.msra.mxu0 0.0
    %2032 = vmatprep.subr.mxu0 0.0
    %2033 = vmatpush1.xpose.msra.mxu0 0.0
    %2034 = vmatprep.subr.mxu0 0.0
    %2035 = vmatpush1.xpose.msra.mxu0 0.0
    %2036 = vmatprep.subr.mxu0 0.0
    %2037 = vmatpush1.xpose.msra.mxu0 0.0
    %2038 = vmatprep.subr.mxu0 0.0
    %2039 = vmatpush1.xpose.msra.mxu0 0.0
    %2040 = vmatprep.subr.mxu0 0.0
    %2041 = vmatpush1.xpose.msra.mxu0 0.0
    %2042 = vmatprep.subr.mxu0 0.0
    %2043 = vmatpush1.xpose.msra.mxu0 0.0
    %2044 = vmatprep.subr.mxu0 0.0
    %2045 = vmatpush1.xpose.msra.mxu0 %v2012
    %2046 = vmatprep.subr.mxu0 0.0
    %2047 = vmatpush2.xpose.msra.mxu0 0.0
    %2048 = vmatprep.subr.mxu0 0.0
    %2049 = vmatpush2.xpose.msra.mxu0 0.0
    %2050 = vmatprep.subr.mxu0 0.0
    %2051 = vmatpush2.xpose.msra.mxu0 0.0
    %2052 = vmatprep.subr.mxu0 0.0
    %2053 = vmatpush2.xpose.msra.mxu0 0.0
    %2054 = vmatprep.subr.mxu0 0.0
    %2055 = vmatpush2.xpose.msra.mxu0 0.0
    %2056 = vmatprep.subr.mxu0 0.0
    %2057 = vmatpush2.xpose.msra.mxu0 0.0
    %2058 = vmatprep.subr.mxu0 0.0
    %2059 = vmatpush2.xpose.msra.mxu0 0.0
    %2060 = vmatprep.subr.mxu0 0.0
    %2061 = vmatpush2.xpose.msra.mxu0 0.0
    %2062 = vmatprep.subr.mxu0 0.0
    %2063 = vmatpush2.xpose.msra.mxu0 0.0
    %2064 = vmatprep.subr.mxu0 0.0
    %2065 = vmatpush2.xpose.msra.mxu0 0.0
    %2066 = vmatprep.subr.mxu0 0.0
    %2067 = vmatpush2.xpose.msra.mxu0 0.0
    %2068 = vmatprep.subr.mxu0 0.0
    %2069 = vmatpush2.xpose.msra.mxu0 0.0
    %2070 = vmatprep.subr.mxu0 0.0
    %2071 = vmatpush2.xpose.msra.mxu0 0.0
    %2072 = vmatprep.subr.mxu0 0.0
    %2073 = vmatpush2.xpose.msra.mxu0 0.0
    %2074 = vmatprep.subr.mxu0 0.0
    %2075 = vmatpush2.xpose.msra.mxu0 0.0
    %2076 = vmatprep.subr.mxu0 0.0
    %2077 = vmatpush2.xpose.msra.mxu0 0.0
    %2078 = vmatprep.mubr.f32.mxu0 0.0
    %2079 = vmatmul.mubr.f32.gmra.mxu0 %v2009
    %v2080 = vpop.f32.mrf.mxu0
    %v2081 = vadd.f32 0.0, %v2080
    %v2082 = vpop.f32.mrf.mxu0
    %2083 = vdwg.mxu0
    %v2084 = vmul.f32 %v2081, 0.35355338
    %v2085 = vlaneseq
    %v2086 = vshrl.u32 %v2085, 7
    %v2087 = vsub.s32 1, %v2086
    %v2088 = vrot.slane %v23, %v2087
    %v2089 = vadd.f32 %v2084, %v2088
    %v2090 = vsel %vm1057, %v2089, -inf
    %2091 = vmax.xlane.f32.xlu0 %v2090
    %v2092 = vpop.xlane.xlu0 %2091
    %v2093 = vsub.f32 %v2089, %v2092
    %v2094 = vmul.f32 %v2093, 1.442695
    %v2095 = vpow.pop %v2094
    %v2096 = vsel %vm1057, %v2095, 0.0
    %2097 = vadd.xlane.f32.xlu0 %v2096
    %v2098 = vpop.xlane.xlu0 %2097
    %v2099 = vrcp.pop %v2098
    %v2100 = vmul.f32 %v2095, %v2099
    %v2102 = vsel %vm1057, %v2100, 0
    %2104 = vmatprep.subr.mxu0 0.0
    %2105 = vmatpush1.msra.mxu0 0.0
    %2106 = vmatprep.subr.mxu0 0.0
    %2107 = vmatpush1.msra.mxu0 0.0
    %2108 = vmatprep.subr.mxu0 0.0
    %2109 = vmatpush1.msra.mxu0 0.0
    %2110 = vmatprep.subr.mxu0 0.0
    %2111 = vmatpush1.msra.mxu0 0.0
    %2112 = vmatprep.subr.mxu0 0.0
    %2113 = vmatpush1.msra.mxu0 0.0
    %2114 = vmatprep.subr.mxu0 0.0
    %2115 = vmatpush1.msra.mxu0 0.0
    %2116 = vmatprep.subr.mxu0 0.0
    %2117 = vmatpush1.msra.mxu0 0.0
    %2118 = vmatprep.subr.mxu0 0.0
    %2119 = vmatpush1.msra.mxu0 0.0
    %2120 = vmatprep.subr.mxu0 0.0
    %2121 = vmatpush1.msra.mxu0 0.0
    %2122 = vmatprep.subr.mxu0 0.0
    %2123 = vmatpush1.msra.mxu0 0.0
    %2124 = vmatprep.subr.mxu0 0.0
    %2125 = vmatpush1.msra.mxu0 0.0
    %2126 = vmatprep.subr.mxu0 0.0
    %2127 = vmatpush1.msra.mxu0 0.0
    %2128 = vmatprep.subr.mxu0 0.0
    %2129 = vmatpush1.msra.mxu0 0.0
    %2130 = vmatprep.subr.mxu0 0.0
    %2131 = vmatpush1.msra.mxu0 0.0
    %2132 = vmatprep.subr.mxu0 0.0
    %2133 = vmatpush1.msra.mxu0 0.0
    %2134 = vmatprep.subr.mxu0 0.0
    %2135 = vmatpush1.msra.mxu0 %v799
    %2136 = vmatprep.subr.mxu0 0.0
    %2137 = vmatpush2.msra.mxu0 0.0
    %2138 = vmatprep.subr.mxu0 0.0
    %2139 = vmatpush2.msra.mxu0 0.0
    %2140 = vmatprep.subr.mxu0 0.0
    %2141 = vmatpush2.msra.mxu0 0.0
    %2142 = vmatprep.subr.mxu0 0.0
    %2143 = vmatpush2.msra.mxu0 0.0
    %2144 = vmatprep.subr.mxu0 0.0
    %2145 = vmatpush2.msra.mxu0 0.0
    %2146 = vmatprep.subr.mxu0 0.0
    %2147 = vmatpush2.msra.mxu0 0.0
    %2148 = vmatprep.subr.mxu0 0.0
    %2149 = vmatpush2.msra.mxu0 0.0
    %2150 = vmatprep.subr.mxu0 0.0
    %2151 = vmatpush2.msra.mxu0 0.0
    %2152 = vmatprep.subr.mxu0 0.0
    %2153 = vmatpush2.msra.mxu0 0.0
    %2154 = vmatprep.subr.mxu0 0.0
    %2155 = vmatpush2.msra.mxu0 0.0
    %2156 = vmatprep.subr.mxu0 0.0
    %2157 = vmatpush2.msra.mxu0 0.0
    %2158 = vmatprep.subr.mxu0 0.0
    %2159 = vmatpush2.msra.mxu0 0.0
    %2160 = vmatprep.subr.mxu0 0.0
    %2161 = vmatpush2.msra.mxu0 0.0
    %2162 = vmatprep.subr.mxu0 0.0
    %2163 = vmatpush2.msra.mxu0 0.0
    %2164 = vmatprep.subr.mxu0 0.0
    %2165 = vmatpush2.msra.mxu0 0.0
    %2166 = vmatprep.subr.mxu0 0.0
    %2167 = vmatpush2.msra.mxu0 0.0
    %2168 = vmatprep.mubr.f32.mxu0 0.0
    %2169 = vmatmul.mubr.f32.gmra.mxu0 %v2102
    %v2170 = vpop.f32.mrf.mxu0
    %v2171 = vadd.f32 0.0, %v2170
    %v2172 = vpop.f32.mrf.mxu0
    %2173 = vdwg.mxu0
    %v2175 = vsel %vm1057, %v204, 0
    %v2178 = vsel %vm1057, %v544, 0
    %2180 = vmatprep.subr.mxu0 0.0
    %2181 = vmatpush1.xpose.msra.mxu0 0.0
    %2182 = vmatprep.subr.mxu0 0.0
    %2183 = vmatpush1.xpose.msra.mxu0 0.0
    %2184 = vmatprep.subr.mxu0 0.0
    %2185 = vmatpush1.xpose.msra.mxu0 0.0
    %2186 = vmatprep.subr.mxu0 0.0
    %2187 = vmatpush1.xpose.msra.mxu0 0.0
    %2188 = vmatprep.subr.mxu0 0.0
    %2189 = vmatpush1.xpose.msra.mxu0 0.0
    %2190 = vmatprep.subr.mxu0 0.0
    %2191 = vmatpush1.xpose.msra.mxu0 0.0
    %2192 = vmatprep.subr.mxu0 0.0
    %2193 = vmatpush1.xpose.msra.mxu0 0.0
    %2194 = vmatprep.subr.mxu0 0.0
    %2195 = vmatpush1.xpose.msra.mxu0 0.0
    %2196 = vmatprep.subr.mxu0 0.0
    %2197 = vmatpush1.xpose.msra.mxu0 0.0
    %2198 = vmatprep.subr.mxu0 0.0
    %2199 = vmatpush1.xpose.msra.mxu0 0.0
    %2200 = vmatprep.subr.mxu0 0.0
    %2201 = vmatpush1.xpose.msra.mxu0 0.0
    %2202 = vmatprep.subr.mxu0 0.0
    %2203 = vmatpush1.xpose.msra.mxu0 0.0
    %2204 = vmatprep.subr.mxu0 0.0
    %2205 = vmatpush1.xpose.msra.mxu0 0.0
    %2206 = vmatprep.subr.mxu0 0.0
    %2207 = vmatpush1.xpose.msra.mxu0 0.0
    %2208 = vmatprep.subr.mxu0 0.0
    %2209 = vmatpush1.xpose.msra.mxu0 0.0
    %2210 = vmatprep.subr.mxu0 0.0
    %2211 = vmatpush1.xpose.msra.mxu0 %v2178
    %2212 = vmatprep.subr.mxu0 0.0
    %2213 = vmatpush2.xpose.msra.mxu0 0.0
    %2214 = vmatprep.subr.mxu0 0.0
    %2215 = vmatpush2.xpose.msra.mxu0 0.0
    %2216 = vmatprep.subr.mxu0 0.0
    %2217 = vmatpush2.xpose.msra.mxu0 0.0
    %2218 = vmatprep.subr.mxu0 0.0
    %2219 = vmatpush2.xpose.msra.mxu0 0.0
    %2220 = vmatprep.subr.mxu0 0.0
    %2221 = vmatpush2.xpose.msra.mxu0 0.0
    %2222 = vmatprep.subr.mxu0 0.0
    %2223 = vmatpush2.xpose.msra.mxu0 0.0
    %2224 = vmatprep.subr.mxu0 0.0
    %2225 = vmatpush2.xpose.msra.mxu0 0.0
    %2226 = vmatprep.subr.mxu0 0.0
    %2227 = vmatpush2.xpose.msra.mxu0 0.0
    %2228 = vmatprep.subr.mxu0 0.0
    %2229 = vmatpush2.xpose.msra.mxu0 0.0
    %2230 = vmatprep.subr.mxu0 0.0
    %2231 = vmatpush2.xpose.msra.mxu0 0.0
    %2232 = vmatprep.subr.mxu0 0.0
    %2233 = vmatpush2.xpose.msra.mxu0 0.0
    %2234 = vmatprep.subr.mxu0 0.0
    %2235 = vmatpush2.xpose.msra.mxu0 0.0
    %2236 = vmatprep.subr.mxu0 0.0
    %2237 = vmatpush2.xpose.msra.mxu0 0.0
    %2238 = vmatprep.subr.mxu0 0.0
    %2239 = vmatpush2.xpose.msra.mxu0 0.0
    %2240 = vmatprep.subr.mxu0 0.0
    %2241 = vmatpush2.xpose.msra.mxu0 0.0
    %2242 = vmatprep.subr.mxu0 0.0
    %2243 = vmatpush2.xpose.msra.mxu0 0.0
    %2244 = vmatprep.mubr.f32.mxu0 0.0
    %2245 = vmatmul.mubr.f32.gmra.mxu0 %v2175
    %v2246 = vpop.f32.mrf.mxu0
    %v2247 = vadd.f32 0.0, %v2246
    %v2248 = vpop.f32.mrf.mxu0
    %2249 = vdwg.mxu0
    %v2250 = vmul.f32 %v2247, 0.35355338
    %v2251 = vadd.f32 %v2250, %v2088
    %v2252 = vsel %vm1057, %v2251, -inf
    %2253 = vmax.xlane.f32.xlu0 %v2252
    %v2254 = vpop.xlane.xlu0 %2253
    %v2255 = vsub.f32 %v2251, %v2254
    %v2256 = vmul.f32 %v2255, 1.442695
    %v2257 = vpow.pop %v2256
    %v2258 = vsel %vm1057, %v2257, 0.0
    %2259 = vadd.xlane.f32.xlu0 %v2258
    %v2260 = vpop.xlane.xlu0 %2259
    %v2261 = vrcp.pop %v2260
    %v2262 = vmul.f32 %v2257, %v2261
    %v2264 = vsel %vm1057, %v2262, 0
    %2266 = vmatprep.subr.mxu0 0.0
    %2267 = vmatpush1.msra.mxu0 0.0
    %2268 = vmatprep.subr.mxu0 0.0
    %2269 = vmatpush1.msra.mxu0 0.0
    %2270 = vmatprep.subr.mxu0 0.0
    %2271 = vmatpush1.msra.mxu0 0.0
    %2272 = vmatprep.subr.mxu0 0.0
    %2273 = vmatpush1.msra.mxu0 0.0
    %2274 = vmatprep.subr.mxu0 0.0
    %2275 = vmatpush1.msra.mxu0 0.0
    %2276 = vmatprep.subr.mxu0 0.0
    %2277 = vmatpush1.msra.mxu0 0.0
    %2278 = vmatprep.subr.mxu0 0.0
    %2279 = vmatpush1.msra.mxu0 0.0
    %2280 = vmatprep.subr.mxu0 0.0
    %2281 = vmatpush1.msra.mxu0 0.0
    %2282 = vmatprep.subr.mxu0 0.0
    %2283 = vmatpush1.msra.mxu0 0.0
    %2284 = vmatprep.subr.mxu0 0.0
    %2285 = vmatpush1.msra.mxu0 0.0
    %2286 = vmatprep.subr.mxu0 0.0
    %2287 = vmatpush1.msra.mxu0 0.0
    %2288 = vmatprep.subr.mxu0 0.0
    %2289 = vmatpush1.msra.mxu0 0.0
    %2290 = vmatprep.subr.mxu0 0.0
    %2291 = vmatpush1.msra.mxu0 0.0
    %2292 = vmatprep.subr.mxu0 0.0
    %2293 = vmatpush1.msra.mxu0 0.0
    %2294 = vmatprep.subr.mxu0 0.0
    %2295 = vmatpush1.msra.mxu0 0.0
    %2296 = vmatprep.subr.mxu0 0.0
    %2297 = vmatpush1.msra.mxu0 %v884
    %2298 = vmatprep.subr.mxu0 0.0
    %2299 = vmatpush2.msra.mxu0 0.0
    %2300 = vmatprep.subr.mxu0 0.0
    %2301 = vmatpush2.msra.mxu0 0.0
    %2302 = vmatprep.subr.mxu0 0.0
    %2303 = vmatpush2.msra.mxu0 0.0
    %2304 = vmatprep.subr.mxu0 0.0
    %2305 = vmatpush2.msra.mxu0 0.0
    %2306 = vmatprep.subr.mxu0 0.0
    %2307 = vmatpush2.msra.mxu0 0.0
    %2308 = vmatprep.subr.mxu0 0.0
    %2309 = vmatpush2.msra.mxu0 0.0
    %2310 = vmatprep.subr.mxu0 0.0
    %2311 = vmatpush2.msra.mxu0 0.0
    %2312 = vmatprep.subr.mxu0 0.0
    %2313 = vmatpush2.msra.mxu0 0.0
    %2314 = vmatprep.subr.mxu0 0.0
    %2315 = vmatpush2.msra.mxu0 0.0
    %2316 = vmatprep.subr.mxu0 0.0
    %2317 = vmatpush2.msra.mxu0 0.0
    %2318 = vmatprep.subr.mxu0 0.0
    %2319 = vmatpush2.msra.mxu0 0.0
    %2320 = vmatprep.subr.mxu0 0.0
    %2321 = vmatpush2.msra.mxu0 0.0
    %2322 = vmatprep.subr.mxu0 0.0
    %2323 = vmatpush2.msra.mxu0 0.0
    %2324 = vmatprep.subr.mxu0 0.0
    %2325 = vmatpush2.msra.mxu0 0.0
    %2326 = vmatprep.subr.mxu0 0.0
    %2327 = vmatpush2.msra.mxu0 0.0
    %2328 = vmatprep.subr.mxu0 0.0
    %2329 = vmatpush2.msra.mxu0 0.0
    %2330 = vmatprep.mubr.f32.mxu0 0.0
    %2331 = vmatmul.mubr.f32.gmra.mxu0 %v2264
    %v2332 = vpop.f32.mrf.mxu0
    %v2333 = vadd.f32 0.0, %v2332
    %v2334 = vpop.f32.mrf.mxu0
    %2335 = vdwg.mxu0
    %v2337 = vsel %vm1057, %v2333, 0
    %2339 = vmatprep.subr.mxu0 0.0
    %2340 = vmatpush1.msra.mxu0 0.0
    %2341 = vmatprep.subr.mxu0 0.0
    %2342 = vmatpush1.msra.mxu0 0.0
    %2343 = vmatprep.subr.mxu0 0.0
    %2344 = vmatpush1.msra.mxu0 0.0
    %2345 = vmatprep.subr.mxu0 0.0
    %2346 = vmatpush1.msra.mxu0 0.0
    %2347 = vmatprep.subr.mxu0 0.0
    %2348 = vmatpush1.msra.mxu0 0.0
    %2349 = vmatprep.subr.mxu0 0.0
    %2350 = vmatpush1.msra.mxu0 0.0
    %2351 = vmatprep.subr.mxu0 0.0
    %2352 = vmatpush1.msra.mxu0 0.0
    %2353 = vmatprep.subr.mxu0 0.0
    %2354 = vmatpush1.msra.mxu0 0.0
    %2355 = vmatprep.subr.mxu0 0.0
    %2356 = vmatpush1.msra.mxu0 0.0
    %2357 = vmatprep.subr.mxu0 0.0
    %2358 = vmatpush1.msra.mxu0 0.0
    %2359 = vmatprep.subr.mxu0 0.0
    %2360 = vmatpush1.msra.mxu0 0.0
    %2361 = vmatprep.subr.mxu0 0.0
    %2362 = vmatpush1.msra.mxu0 0.0
    %2363 = vmatprep.subr.mxu0 0.0
    %2364 = vmatpush1.msra.mxu0 0.0
    %2365 = vmatprep.subr.mxu0 0.0
    %2366 = vmatpush1.msra.mxu0 0.0
    %2367 = vmatprep.subr.mxu0 0.0
    %2368 = vmatpush1.msra.mxu0 0.0
    %2369 = vmatprep.subr.mxu0 0.0
    %2370 = vmatpush1.msra.mxu0 %v1387
    %2371 = vmatprep.subr.mxu0 0.0
    %2372 = vmatpush2.msra.mxu0 0.0
    %2373 = vmatprep.subr.mxu0 0.0
    %2374 = vmatpush2.msra.mxu0 0.0
    %2375 = vmatprep.subr.mxu0 0.0
    %2376 = vmatpush2.msra.mxu0 0.0
    %2377 = vmatprep.subr.mxu0 0.0
    %2378 = vmatpush2.msra.mxu0 0.0
    %2379 = vmatprep.subr.mxu0 0.0
    %2380 = vmatpush2.msra.mxu0 0.0
    %2381 = vmatprep.subr.mxu0 0.0
    %2382 = vmatpush2.msra.mxu0 0.0
    %2383 = vmatprep.subr.mxu0 0.0
    %2384 = vmatpush2.msra.mxu0 0.0
    %2385 = vmatprep.subr.mxu0 0.0
    %2386 = vmatpush2.msra.mxu0 0.0
    %2387 = vmatprep.subr.mxu0 0.0
    %2388 = vmatpush2.msra.mxu0 0.0
    %2389 = vmatprep.subr.mxu0 0.0
    %2390 = vmatpush2.msra.mxu0 0.0
    %2391 = vmatprep.subr.mxu0 0.0
    %2392 = vmatpush2.msra.mxu0 0.0
    %2393 = vmatprep.subr.mxu0 0.0
    %2394 = vmatpush2.msra.mxu0 0.0
    %2395 = vmatprep.subr.mxu0 0.0
    %2396 = vmatpush2.msra.mxu0 0.0
    %2397 = vmatprep.subr.mxu0 0.0
    %2398 = vmatpush2.msra.mxu0 0.0
    %2399 = vmatprep.subr.mxu0 0.0
    %2400 = vmatpush2.msra.mxu0 0.0
    %2401 = vmatprep.subr.mxu0 0.0
    %2402 = vmatpush2.msra.mxu0 0.0
    %2403 = vmatprep.mubr.f32.mxu0 0.0
    %2404 = vmatmul.mubr.f32.gmra.mxu0 %v2337
    %v2405 = vpop.f32.mrf.mxu0
    %v2406 = vadd.f32 0.0, %v2405
    %v2407 = vpop.f32.mrf.mxu0
    %2408 = vdwg.mxu0
    %v2410 = vsel %vm1057, %v2171, 0
    %2412 = vmatprep.subr.mxu0 0.0
    %2413 = vmatpush1.msra.mxu0 0.0
    %2414 = vmatprep.subr.mxu0 0.0
    %2415 = vmatpush1.msra.mxu0 0.0
    %2416 = vmatprep.subr.mxu0 0.0
    %2417 = vmatpush1.msra.mxu0 0.0
    %2418 = vmatprep.subr.mxu0 0.0
    %2419 = vmatpush1.msra.mxu0 0.0
    %2420 = vmatprep.subr.mxu0 0.0
    %2421 = vmatpush1.msra.mxu0 0.0
    %2422 = vmatprep.subr.mxu0 0.0
    %2423 = vmatpush1.msra.mxu0 0.0
    %2424 = vmatprep.subr.mxu0 0.0
    %2425 = vmatpush1.msra.mxu0 0.0
    %2426 = vmatprep.subr.mxu0 0.0
    %2427 = vmatpush1.msra.mxu0 0.0
    %2428 = vmatprep.subr.mxu0 0.0
    %2429 = vmatpush1.msra.mxu0 0.0
    %2430 = vmatprep.subr.mxu0 0.0
    %2431 = vmatpush1.msra.mxu0 0.0
    %2432 = vmatprep.subr.mxu0 0.0
    %2433 = vmatpush1.msra.mxu0 0.0
    %2434 = vmatprep.subr.mxu0 0.0
    %2435 = vmatpush1.msra.mxu0 0.0
    %2436 = vmatprep.subr.mxu0 0.0
    %2437 = vmatpush1.msra.mxu0 0.0
    %2438 = vmatprep.subr.mxu0 0.0
    %2439 = vmatpush1.msra.mxu0 0.0
    %2440 = vmatprep.subr.mxu0 0.0
    %2441 = vmatpush1.msra.mxu0 0.0
    %2442 = vmatprep.subr.mxu0 0.0
    %2443 = vmatpush1.msra.mxu0 %v1224
    %2444 = vmatprep.subr.mxu0 0.0
    %2445 = vmatpush2.msra.mxu0 0.0
    %2446 = vmatprep.subr.mxu0 0.0
    %2447 = vmatpush2.msra.mxu0 0.0
    %2448 = vmatprep.subr.mxu0 0.0
    %2449 = vmatpush2.msra.mxu0 0.0
    %2450 = vmatprep.subr.mxu0 0.0
    %2451 = vmatpush2.msra.mxu0 0.0
    %2452 = vmatprep.subr.mxu0 0.0
    %2453 = vmatpush2.msra.mxu0 0.0
    %2454 = vmatprep.subr.mxu0 0.0
    %2455 = vmatpush2.msra.mxu0 0.0
    %2456 = vmatprep.subr.mxu0 0.0
    %2457 = vmatpush2.msra.mxu0 0.0
    %2458 = vmatprep.subr.mxu0 0.0
    %2459 = vmatpush2.msra.mxu0 0.0
    %2460 = vmatprep.subr.mxu0 0.0
    %2461 = vmatpush2.msra.mxu0 0.0
    %2462 = vmatprep.subr.mxu0 0.0
    %2463 = vmatpush2.msra.mxu0 0.0
    %2464 = vmatprep.subr.mxu0 0.0
    %2465 = vmatpush2.msra.mxu0 0.0
    %2466 = vmatprep.subr.mxu0 0.0
    %2467 = vmatpush2.msra.mxu0 0.0
    %2468 = vmatprep.subr.mxu0 0.0
    %2469 = vmatpush2.msra.mxu0 0.0
    %2470 = vmatprep.subr.mxu0 0.0
    %2471 = vmatpush2.msra.mxu0 0.0
    %2472 = vmatprep.subr.mxu0 0.0
    %2473 = vmatpush2.msra.mxu0 0.0
    %2474 = vmatprep.subr.mxu0 0.0
    %2475 = vmatpush2.msra.mxu0 0.0
    %2476 = vmatprep.mubr.f32.mxu0 0.0
    %2477 = vmatmul.mubr.f32.gmra.mxu0 %v2410
    %v2478 = vpop.f32.mrf.mxu0
    %v2479 = vadd.f32 %v2406, %v2478
    %v2480 = vpop.f32.mrf.mxu0
    %2481 = vdwg.mxu0
    %v2483 = vsel %vm1057, %v289, 0
    %v2486 = vsel %vm1057, %v629, 0
    %2488 = vmatprep.subr.mxu0 0.0
    %2489 = vmatpush1.xpose.msra.mxu0 0.0
    %2490 = vmatprep.subr.mxu0 0.0
    %2491 = vmatpush1.xpose.msra.mxu0 0.0
    %2492 = vmatprep.subr.mxu0 0.0
    %2493 = vmatpush1.xpose.msra.mxu0 0.0
    %2494 = vmatprep.subr.mxu0 0.0
    %2495 = vmatpush1.xpose.msra.mxu0 0.0
    %2496 = vmatprep.subr.mxu0 0.0
    %2497 = vmatpush1.xpose.msra.mxu0 0.0
    %2498 = vmatprep.subr.mxu0 0.0
    %2499 = vmatpush1.xpose.msra.mxu0 0.0
    %2500 = vmatprep.subr.mxu0 0.0
    %2501 = vmatpush1.xpose.msra.mxu0 0.0
    %2502 = vmatprep.subr.mxu0 0.0
    %2503 = vmatpush1.xpose.msra.mxu0 0.0
    %2504 = vmatprep.subr.mxu0 0.0
    %2505 = vmatpush1.xpose.msra.mxu0 0.0
    %2506 = vmatprep.subr.mxu0 0.0
    %2507 = vmatpush1.xpose.msra.mxu0 0.0
    %2508 = vmatprep.subr.mxu0 0.0
    %2509 = vmatpush1.xpose.msra.mxu0 0.0
    %2510 = vmatprep.subr.mxu0 0.0
    %2511 = vmatpush1.xpose.msra.mxu0 0.0
    %2512 = vmatprep.subr.mxu0 0.0
    %2513 = vmatpush1.xpose.msra.mxu0 0.0
    %2514 = vmatprep.subr.mxu0 0.0
    %2515 = vmatpush1.xpose.msra.mxu0 0.0
    %2516 = vmatprep.subr.mxu0 0.0
    %2517 = vmatpush1.xpose.msra.mxu0 0.0
    %2518 = vmatprep.subr.mxu0 0.0
    %2519 = vmatpush1.xpose.msra.mxu0 %v2486
    %2520 = vmatprep.subr.mxu0 0.0
    %2521 = vmatpush2.xpose.msra.mxu0 0.0
    %2522 = vmatprep.subr.mxu0 0.0
    %2523 = vmatpush2.xpose.msra.mxu0 0.0
    %2524 = vmatprep.subr.mxu0 0.0
    %2525 = vmatpush2.xpose.msra.mxu0 0.0
    %2526 = vmatprep.subr.mxu0 0.0
    %2527 = vmatpush2.xpose.msra.mxu0 0.0
    %2528 = vmatprep.subr.mxu0 0.0
    %2529 = vmatpush2.xpose.msra.mxu0 0.0
    %2530 = vmatprep.subr.mxu0 0.0
    %2531 = vmatpush2.xpose.msra.mxu0 0.0
    %2532 = vmatprep.subr.mxu0 0.0
    %2533 = vmatpush2.xpose.msra.mxu0 0.0
    %2534 = vmatprep.subr.mxu0 0.0
    %2535 = vmatpush2.xpose.msra.mxu0 0.0
    %2536 = vmatprep.subr.mxu0 0.0
    %2537 = vmatpush2.xpose.msra.mxu0 0.0
    %2538 = vmatprep.subr.mxu0 0.0
    %2539 = vmatpush2.xpose.msra.mxu0 0.0
    %2540 = vmatprep.subr.mxu0 0.0
    %2541 = vmatpush2.xpose.msra.mxu0 0.0
    %2542 = vmatprep.subr.mxu0 0.0
    %2543 = vmatpush2.xpose.msra.mxu0 0.0
    %2544 = vmatprep.subr.mxu0 0.0
    %2545 = vmatpush2.xpose.msra.mxu0 0.0
    %2546 = vmatprep.subr.mxu0 0.0
    %2547 = vmatpush2.xpose.msra.mxu0 0.0
    %2548 = vmatprep.subr.mxu0 0.0
    %2549 = vmatpush2.xpose.msra.mxu0 0.0
    %2550 = vmatprep.subr.mxu0 0.0
    %2551 = vmatpush2.xpose.msra.mxu0 0.0
    %2552 = vmatprep.mubr.f32.mxu0 0.0
    %2553 = vmatmul.mubr.f32.gmra.mxu0 %v2483
    %v2554 = vpop.f32.mrf.mxu0
    %v2555 = vadd.f32 0.0, %v2554
    %v2556 = vpop.f32.mrf.mxu0
    %2557 = vdwg.mxu0
    %v2558 = vmul.f32 %v2555, 0.35355338
    %v2559 = vadd.f32 %v2558, %v2088
    %v2560 = vsel %vm1057, %v2559, -inf
    %2561 = vmax.xlane.f32.xlu0 %v2560
    %v2562 = vpop.xlane.xlu0 %2561
    %v2563 = vsub.f32 %v2559, %v2562
    %v2564 = vmul.f32 %v2563, 1.442695
    %v2565 = vpow.pop %v2564
    %v2566 = vsel %vm1057, %v2565, 0.0
    %2567 = vadd.xlane.f32.xlu0 %v2566
    %v2568 = vpop.xlane.xlu0 %2567
    %v2569 = vrcp.pop %v2568
    %v2570 = vmul.f32 %v2565, %v2569
    %v2572 = vsel %vm1057, %v2570, 0
    %2574 = vmatprep.subr.mxu0 0.0
    %2575 = vmatpush1.msra.mxu0 0.0
    %2576 = vmatprep.subr.mxu0 0.0
    %2577 = vmatpush1.msra.mxu0 0.0
    %2578 = vmatprep.subr.mxu0 0.0
    %2579 = vmatpush1.msra.mxu0 0.0
    %2580 = vmatprep.subr.mxu0 0.0
    %2581 = vmatpush1.msra.mxu0 0.0
    %2582 = vmatprep.subr.mxu0 0.0
    %2583 = vmatpush1.msra.mxu0 0.0
    %2584 = vmatprep.subr.mxu0 0.0
    %2585 = vmatpush1.msra.mxu0 0.0
    %2586 = vmatprep.subr.mxu0 0.0
    %2587 = vmatpush1.msra.mxu0 0.0
    %2588 = vmatprep.subr.mxu0 0.0
    %2589 = vmatpush1.msra.mxu0 0.0
    %2590 = vmatprep.subr.mxu0 0.0
    %2591 = vmatpush1.msra.mxu0 0.0
    %2592 = vmatprep.subr.mxu0 0.0
    %2593 = vmatpush1.msra.mxu0 0.0
    %2594 = vmatprep.subr.mxu0 0.0
    %2595 = vmatpush1.msra.mxu0 0.0
    %2596 = vmatprep.subr.mxu0 0.0
    %2597 = vmatpush1.msra.mxu0 0.0
    %2598 = vmatprep.subr.mxu0 0.0
    %2599 = vmatpush1.msra.mxu0 0.0
    %2600 = vmatprep.subr.mxu0 0.0
    %2601 = vmatpush1.msra.mxu0 0.0
    %2602 = vmatprep.subr.mxu0 0.0
    %2603 = vmatpush1.msra.mxu0 0.0
    %2604 = vmatprep.subr.mxu0 0.0
    %2605 = vmatpush1.msra.mxu0 %v969
    %2606 = vmatprep.subr.mxu0 0.0
    %2607 = vmatpush2.msra.mxu0 0.0
    %2608 = vmatprep.subr.mxu0 0.0
    %2609 = vmatpush2.msra.mxu0 0.0
    %2610 = vmatprep.subr.mxu0 0.0
    %2611 = vmatpush2.msra.mxu0 0.0
    %2612 = vmatprep.subr.mxu0 0.0
    %2613 = vmatpush2.msra.mxu0 0.0
    %2614 = vmatprep.subr.mxu0 0.0
    %2615 = vmatpush2.msra.mxu0 0.0
    %2616 = vmatprep.subr.mxu0 0.0
    %2617 = vmatpush2.msra.mxu0 0.0
    %2618 = vmatprep.subr.mxu0 0.0
    %2619 = vmatpush2.msra.mxu0 0.0
    %2620 = vmatprep.subr.mxu0 0.0
    %2621 = vmatpush2.msra.mxu0 0.0
    %2622 = vmatprep.subr.mxu0 0.0
    %2623 = vmatpush2.msra.mxu0 0.0
    %2624 = vmatprep.subr.mxu0 0.0
    %2625 = vmatpush2.msra.mxu0 0.0
    %2626 = vmatprep.subr.mxu0 0.0
    %2627 = vmatpush2.msra.mxu0 0.0
    %2628 = vmatprep.subr.mxu0 0.0
    %2629 = vmatpush2.msra.mxu0 0.0
    %2630 = vmatprep.subr.mxu0 0.0
    %2631 = vmatpush2.msra.mxu0 0.0
    %2632 = vmatprep.subr.mxu0 0.0
    %2633 = vmatpush2.msra.mxu0 0.0
    %2634 = vmatprep.subr.mxu0 0.0
    %2635 = vmatpush2.msra.mxu0 0.0
    %2636 = vmatprep.subr.mxu0 0.0
    %2637 = vmatpush2.msra.mxu0 0.0
    %2638 = vmatprep.mubr.f32.mxu0 0.0
    %2639 = vmatmul.mubr.f32.gmra.mxu0 %v2572
    %v2640 = vpop.f32.mrf.mxu0
    %v2641 = vadd.f32 0.0, %v2640
    %v2642 = vpop.f32.mrf.mxu0
    %2643 = vdwg.mxu0
    %v2645 = vsel %vm1057, %v2641, 0
    %2647 = vmatprep.subr.mxu0 0.0
    %2648 = vmatpush1.msra.mxu0 0.0
    %2649 = vmatprep.subr.mxu0 0.0
    %2650 = vmatpush1.msra.mxu0 0.0
    %2651 = vmatprep.subr.mxu0 0.0
    %2652 = vmatpush1.msra.mxu0 0.0
    %2653 = vmatprep.subr.mxu0 0.0
    %2654 = vmatpush1.msra.mxu0 0.0
    %2655 = vmatprep.subr.mxu0 0.0
    %2656 = vmatpush1.msra.mxu0 0.0
    %2657 = vmatprep.subr.mxu0 0.0
    %2658 = vmatpush1.msra.mxu0 0.0
    %2659 = vmatprep.subr.mxu0 0.0
    %2660 = vmatpush1.msra.mxu0 0.0
    %2661 = vmatprep.subr.mxu0 0.0
    %2662 = vmatpush1.msra.mxu0 0.0
    %2663 = vmatprep.subr.mxu0 0.0
    %2664 = vmatpush1.msra.mxu0 0.0
    %2665 = vmatprep.subr.mxu0 0.0
    %2666 = vmatpush1.msra.mxu0 0.0
    %2667 = vmatprep.subr.mxu0 0.0
    %2668 = vmatpush1.msra.mxu0 0.0
    %2669 = vmatprep.subr.mxu0 0.0
    %2670 = vmatpush1.msra.mxu0 0.0
    %2671 = vmatprep.subr.mxu0 0.0
    %2672 = vmatpush1.msra.mxu0 0.0
    %2673 = vmatprep.subr.mxu0 0.0
    %2674 = vmatpush1.msra.mxu0 0.0
    %2675 = vmatprep.subr.mxu0 0.0
    %2676 = vmatpush1.msra.mxu0 0.0
    %2677 = vmatprep.subr.mxu0 0.0
    %2678 = vmatpush1.msra.mxu0 %v1696
    %2679 = vmatprep.subr.mxu0 0.0
    %2680 = vmatpush2.msra.mxu0 0.0
    %2681 = vmatprep.subr.mxu0 0.0
    %2682 = vmatpush2.msra.mxu0 0.0
    %2683 = vmatprep.subr.mxu0 0.0
    %2684 = vmatpush2.msra.mxu0 0.0
    %2685 = vmatprep.subr.mxu0 0.0
    %2686 = vmatpush2.msra.mxu0 0.0
    %2687 = vmatprep.subr.mxu0 0.0
    %2688 = vmatpush2.msra.mxu0 0.0
    %2689 = vmatprep.subr.mxu0 0.0
    %2690 = vmatpush2.msra.mxu0 0.0
    %2691 = vmatprep.subr.mxu0 0.0
    %2692 = vmatpush2.msra.mxu0 0.0
    %2693 = vmatprep.subr.mxu0 0.0
    %2694 = vmatpush2.msra.mxu0 0.0
    %2695 = vmatprep.subr.mxu0 0.0
    %2696 = vmatpush2.msra.mxu0 0.0
    %2697 = vmatprep.subr.mxu0 0.0
    %2698 = vmatpush2.msra.mxu0 0.0
    %2699 = vmatprep.subr.mxu0 0.0
    %2700 = vmatpush2.msra.mxu0 0.0
    %2701 = vmatprep.subr.mxu0 0.0
    %2702 = vmatpush2.msra.mxu0 0.0
    %2703 = vmatprep.subr.mxu0 0.0
    %2704 = vmatpush2.msra.mxu0 0.0
    %2705 = vmatprep.subr.mxu0 0.0
    %2706 = vmatpush2.msra.mxu0 0.0
    %2707 = vmatprep.subr.mxu0 0.0
    %2708 = vmatpush2.msra.mxu0 0.0
    %2709 = vmatprep.subr.mxu0 0.0
    %2710 = vmatpush2.msra.mxu0 0.0
    %2711 = vmatprep.mubr.f32.mxu0 0.0
    %2712 = vmatmul.mubr.f32.gmra.mxu0 %v2645
    %v2713 = vpop.f32.mrf.mxu0
    %v2714 = vadd.f32 0.0, %v2713
    %v2715 = vpop.f32.mrf.mxu0
    %2716 = vdwg.mxu0
    %v2717 = vadd.f32 %v2479, %v2714
    %v2719 = vsel %vm1057, %v374, 0
    %v2722 = vsel %vm1057, %v714, 0
    %2724 = vmatprep.subr.mxu0 0.0
    %2725 = vmatpush1.xpose.msra.mxu0 0.0
    %2726 = vmatprep.subr.mxu0 0.0
    %2727 = vmatpush1.xpose.msra.mxu0 0.0
    %2728 = vmatprep.subr.mxu0 0.0
    %2729 = vmatpush1.xpose.msra.mxu0 0.0
    %2730 = vmatprep.subr.mxu0 0.0
    %2731 = vmatpush1.xpose.msra.mxu0 0.0
    %2732 = vmatprep.subr.mxu0 0.0
    %2733 = vmatpush1.xpose.msra.mxu0 0.0
    %2734 = vmatprep.subr.mxu0 0.0
    %2735 = vmatpush1.xpose.msra.mxu0 0.0
    %2736 = vmatprep.subr.mxu0 0.0
    %2737 = vmatpush1.xpose.msra.mxu0 0.0
    %2738 = vmatprep.subr.mxu0 0.0
    %2739 = vmatpush1.xpose.msra.mxu0 0.0
    %2740 = vmatprep.subr.mxu0 0.0
    %2741 = vmatpush1.xpose.msra.mxu0 0.0
    %2742 = vmatprep.subr.mxu0 0.0
    %2743 = vmatpush1.xpose.msra.mxu0 0.0
    %2744 = vmatprep.subr.mxu0 0.0
    %2745 = vmatpush1.xpose.msra.mxu0 0.0
    %2746 = vmatprep.subr.mxu0 0.0
    %2747 = vmatpush1.xpose.msra.mxu0 0.0
    %2748 = vmatprep.subr.mxu0 0.0
    %2749 = vmatpush1.xpose.msra.mxu0 0.0
    %2750 = vmatprep.subr.mxu0 0.0
    %2751 = vmatpush1.xpose.msra.mxu0 0.0
    %2752 = vmatprep.subr.mxu0 0.0
    %2753 = vmatpush1.xpose.msra.mxu0 0.0
    %2754 = vmatprep.subr.mxu0 0.0
    %2755 = vmatpush1.xpose.msra.mxu0 %v2722
    %2756 = vmatprep.subr.mxu0 0.0
    %2757 = vmatpush2.xpose.msra.mxu0 0.0
    %2758 = vmatprep.subr.mxu0 0.0
    %2759 = vmatpush2.xpose.msra.mxu0 0.0
    %2760 = vmatprep.subr.mxu0 0.0
    %2761 = vmatpush2.xpose.msra.mxu0 0.0
    %2762 = vmatprep.subr.mxu0 0.0
    %2763 = vmatpush2.xpose.msra.mxu0 0.0
    %2764 = vmatprep.subr.mxu0 0.0
    %2765 = vmatpush2.xpose.msra.mxu0 0.0
    %2766 = vmatprep.subr.mxu0 0.0
    %2767 = vmatpush2.xpose.msra.mxu0 0.0
    %2768 = vmatprep.subr.mxu0 0.0
    %2769 = vmatpush2.xpose.msra.mxu0 0.0
    %2770 = vmatprep.subr.mxu0 0.0
    %2771 = vmatpush2.xpose.msra.mxu0 0.0
    %2772 = vmatprep.subr.mxu0 0.0
    %2773 = vmatpush2.xpose.msra.mxu0 0.0
    %2774 = vmatprep.subr.mxu0 0.0
    %2775 = vmatpush2.xpose.msra.mxu0 0.0
    %2776 = vmatprep.subr.mxu0 0.0
    %2777 = vmatpush2.xpose.msra.mxu0 0.0
    %2778 = vmatprep.subr.mxu0 0.0
    %2779 = vmatpush2.xpose.msra.mxu0 0.0
    %2780 = vmatprep.subr.mxu0 0.0
    %2781 = vmatpush2.xpose.msra.mxu0 0.0
    %2782 = vmatprep.subr.mxu0 0.0
    %2783 = vmatpush2.xpose.msra.mxu0 0.0
    %2784 = vmatprep.subr.mxu0 0.0
    %2785 = vmatpush2.xpose.msra.mxu0 0.0
    %2786 = vmatprep.subr.mxu0 0.0
    %2787 = vmatpush2.xpose.msra.mxu0 0.0
    %2788 = vmatprep.mubr.f32.mxu0 0.0
    %2789 = vmatmul.mubr.f32.gmra.mxu0 %v2719
    %v2790 = vpop.f32.mrf.mxu0
    %v2791 = vadd.f32 0.0, %v2790
    %v2792 = vpop.f32.mrf.mxu0
    %2793 = vdwg.mxu0
    %v2794 = vmul.f32 %v2791, 0.35355338
    %v2795 = vadd.f32 %v2794, %v2088
    %v2796 = vsel %vm1057, %v2795, -inf
    %2797 = vmax.xlane.f32.xlu0 %v2796
    %v2798 = vpop.xlane.xlu0 %2797
    %v2799 = vsub.f32 %v2795, %v2798
    %v2800 = vmul.f32 %v2799, 1.442695
    %v2801 = vpow.pop %v2800
    %v2802 = vsel %vm1057, %v2801, 0.0
    %2803 = vadd.xlane.f32.xlu0 %v2802
    %v2804 = vpop.xlane.xlu0 %2803
    %v2805 = vrcp.pop %v2804
    %v2806 = vmul.f32 %v2801, %v2805
    %v2808 = vsel %vm1057, %v2806, 0
    %2810 = vmatprep.subr.mxu0 0.0
    %2811 = vmatpush1.msra.mxu0 0.0
    %2812 = vmatprep.subr.mxu0 0.0
    %2813 = vmatpush1.msra.mxu0 0.0
    %2814 = vmatprep.subr.mxu0 0.0
    %2815 = vmatpush1.msra.mxu0 0.0
    %2816 = vmatprep.subr.mxu0 0.0
    %2817 = vmatpush1.msra.mxu0 0.0
    %2818 = vmatprep.subr.mxu0 0.0
    %2819 = vmatpush1.msra.mxu0 0.0
    %2820 = vmatprep.subr.mxu0 0.0
    %2821 = vmatpush1.msra.mxu0 0.0
    %2822 = vmatprep.subr.mxu0 0.0
    %2823 = vmatpush1.msra.mxu0 0.0
    %2824 = vmatprep.subr.mxu0 0.0
    %2825 = vmatpush1.msra.mxu0 0.0
    %2826 = vmatprep.subr.mxu0 0.0
    %2827 = vmatpush1.msra.mxu0 0.0
    %2828 = vmatprep.subr.mxu0 0.0
    %2829 = vmatpush1.msra.mxu0 0.0
    %2830 = vmatprep.subr.mxu0 0.0
    %2831 = vmatpush1.msra.mxu0 0.0
    %2832 = vmatprep.subr.mxu0 0.0
    %2833 = vmatpush1.msra.mxu0 0.0
    %2834 = vmatprep.subr.mxu0 0.0
    %2835 = vmatpush1.msra.mxu0 0.0
    %2836 = vmatprep.subr.mxu0 0.0
    %2837 = vmatpush1.msra.mxu0 0.0
    %2838 = vmatprep.subr.mxu0 0.0
    %2839 = vmatpush1.msra.mxu0 0.0
    %2840 = vmatprep.subr.mxu0 0.0
    %2841 = vmatpush1.msra.mxu0 %v1054
    %2842 = vmatprep.subr.mxu0 0.0
    %2843 = vmatpush2.msra.mxu0 0.0
    %2844 = vmatprep.subr.mxu0 0.0
    %2845 = vmatpush2.msra.mxu0 0.0
    %2846 = vmatprep.subr.mxu0 0.0
    %2847 = vmatpush2.msra.mxu0 0.0
    %2848 = vmatprep.subr.mxu0 0.0
    %2849 = vmatpush2.msra.mxu0 0.0
    %2850 = vmatprep.subr.mxu0 0.0
    %2851 = vmatpush2.msra.mxu0 0.0
    %2852 = vmatprep.subr.mxu0 0.0
    %2853 = vmatpush2.msra.mxu0 0.0
    %2854 = vmatprep.subr.mxu0 0.0
    %2855 = vmatpush2.msra.mxu0 0.0
    %2856 = vmatprep.subr.mxu0 0.0
    %2857 = vmatpush2.msra.mxu0 0.0
    %2858 = vmatprep.subr.mxu0 0.0
    %2859 = vmatpush2.msra.mxu0 0.0
    %2860 = vmatprep.subr.mxu0 0.0
    %2861 = vmatpush2.msra.mxu0 0.0
    %2862 = vmatprep.subr.mxu0 0.0
    %2863 = vmatpush2.msra.mxu0 0.0
    %2864 = vmatprep.subr.mxu0 0.0
    %2865 = vmatpush2.msra.mxu0 0.0
    %2866 = vmatprep.subr.mxu0 0.0
    %2867 = vmatpush2.msra.mxu0 0.0
    %2868 = vmatprep.subr.mxu0 0.0
    %2869 = vmatpush2.msra.mxu0 0.0
    %2870 = vmatprep.subr.mxu0 0.0
    %2871 = vmatpush2.msra.mxu0 0.0
    %2872 = vmatprep.subr.mxu0 0.0
    %2873 = vmatpush2.msra.mxu0 0.0
    %2874 = vmatprep.mubr.f32.mxu0 0.0
    %2875 = vmatmul.mubr.f32.gmra.mxu0 %v2808
    %v2876 = vpop.f32.mrf.mxu0
    %v2877 = vadd.f32 0.0, %v2876
    %v2878 = vpop.f32.mrf.mxu0
    %2879 = vdwg.mxu0
    %v2881 = vsel %vm1057, %v2877, 0
    %2883 = vmatprep.subr.mxu0 0.0
    %2884 = vmatpush1.msra.mxu0 0.0
    %2885 = vmatprep.subr.mxu0 0.0
    %2886 = vmatpush1.msra.mxu0 0.0
    %2887 = vmatprep.subr.mxu0 0.0
    %2888 = vmatpush1.msra.mxu0 0.0
    %2889 = vmatprep.subr.mxu0 0.0
    %2890 = vmatpush1.msra.mxu0 0.0
    %2891 = vmatprep.subr.mxu0 0.0
    %2892 = vmatpush1.msra.mxu0 0.0
    %2893 = vmatprep.subr.mxu0 0.0
    %2894 = vmatpush1.msra.mxu0 0.0
    %2895 = vmatprep.subr.mxu0 0.0
    %2896 = vmatpush1.msra.mxu0 0.0
    %2897 = vmatprep.subr.mxu0 0.0
    %2898 = vmatpush1.msra.mxu0 0.0
    %2899 = vmatprep.subr.mxu0 0.0
    %2900 = vmatpush1.msra.mxu0 0.0
    %2901 = vmatprep.subr.mxu0 0.0
    %2902 = vmatpush1.msra.mxu0 0.0
    %2903 = vmatprep.subr.mxu0 0.0
    %2904 = vmatpush1.msra.mxu0 0.0
    %2905 = vmatprep.subr.mxu0 0.0
    %2906 = vmatpush1.msra.mxu0 0.0
    %2907 = vmatprep.subr.mxu0 0.0
    %2908 = vmatpush1.msra.mxu0 0.0
    %2909 = vmatprep.subr.mxu0 0.0
    %2910 = vmatpush1.msra.mxu0 0.0
    %2911 = vmatprep.subr.mxu0 0.0
    %2912 = vmatpush1.msra.mxu0 0.0
    %2913 = vmatprep.subr.mxu0 0.0
    %2914 = vmatpush1.msra.mxu0 %v1933
    %2915 = vmatprep.subr.mxu0 0.0
    %2916 = vmatpush2.msra.mxu0 0.0
    %2917 = vmatprep.subr.mxu0 0.0
    %2918 = vmatpush2.msra.mxu0 0.0
    %2919 = vmatprep.subr.mxu0 0.0
    %2920 = vmatpush2.msra.mxu0 0.0
    %2921 = vmatprep.subr.mxu0 0.0
    %2922 = vmatpush2.msra.mxu0 0.0
    %2923 = vmatprep.subr.mxu0 0.0
    %2924 = vmatpush2.msra.mxu0 0.0
    %2925 = vmatprep.subr.mxu0 0.0
    %2926 = vmatpush2.msra.mxu0 0.0
    %2927 = vmatprep.subr.mxu0 0.0
    %2928 = vmatpush2.msra.mxu0 0.0
    %2929 = vmatprep.subr.mxu0 0.0
    %2930 = vmatpush2.msra.mxu0 0.0
    %2931 = vmatprep.subr.mxu0 0.0
    %2932 = vmatpush2.msra.mxu0 0.0
    %2933 = vmatprep.subr.mxu0 0.0
    %2934 = vmatpush2.msra.mxu0 0.0
    %2935 = vmatprep.subr.mxu0 0.0
    %2936 = vmatpush2.msra.mxu0 0.0
    %2937 = vmatprep.subr.mxu0 0.0
    %2938 = vmatpush2.msra.mxu0 0.0
    %2939 = vmatprep.subr.mxu0 0.0
    %2940 = vmatpush2.msra.mxu0 0.0
    %2941 = vmatprep.subr.mxu0 0.0
    %2942 = vmatpush2.msra.mxu0 0.0
    %2943 = vmatprep.subr.mxu0 0.0
    %2944 = vmatpush2.msra.mxu0 0.0
    %2945 = vmatprep.subr.mxu0 0.0
    %2946 = vmatpush2.msra.mxu0 0.0
    %2947 = vmatprep.mubr.f32.mxu0 0.0
    %2948 = vmatmul.mubr.f32.gmra.mxu0 %v2881
    %v2949 = vpop.f32.mrf.mxu0
    %v2950 = vadd.f32 0.0, %v2949
    %v2951 = vpop.f32.mrf.mxu0
    %2952 = vdwg.mxu0
    %v2953 = vadd.f32 %v2717, %v2950
    %v2954 = vlaneseq
    %v2955 = vshrl.u32 %v2954, 7
    %v2956 = vsub.s32 0, %v2955
    %v2957 = vrot.slane %v25, %v2956
    %v2958 = vadd.f32 %v2007, %v2957
    %v2959 = vadd.f32 %v2953, %v2957
    %v2960 = vadd.f32 %v2958, %v21
    %v2961 = vadd.f32 %v2959, %v22
    %v2962 = vsel %vm40, %v2960, 0.0
    %2963 = vadd.xlane.f32.xlu0 %v2962
    %v2964 = vpop.xlane.xlu0 %2963
    %v2965 = vsel %vm40, %v2961, 0.0
    %2966 = vadd.xlane.f32.xlu0 %v2965
    %v2967 = vpop.xlane.xlu0 %2966
    %v2968 = vrcp.pop 32.0
    %v2969 = vmul.f32 %v2964, %v2968
    %v2970 = vmul.f32 %v2967, %v2968
    %v2971 = vsub.f32 %v2960, %v2969
    %v2972 = vsub.f32 %v2961, %v2970
    %v2973 = vmul.f32 %v2971, %v2971
    %v2974 = vmul.f32 %v2972, %v2972
    %v2975 = vsel %vm40, %v2973, 0.0
    %2976 = vadd.xlane.f32.xlu0 %v2975
    %v2977 = vpop.xlane.xlu0 %2976
    %v2978 = vsel %vm40, %v2974, 0.0
    %2979 = vadd.xlane.f32.xlu0 %v2978
    %v2980 = vpop.xlane.xlu0 %2979
    %v2981 = vmul.f32 %v2977, %v2968
    %v2982 = vmul.f32 %v2980, %v2968
    %v2983 = vadd.f32 %v2981, 1e-12
    %v2984 = vadd.f32 %v2982, 1e-12
    %v2985 = vrsqrt.pop %v2983
    %v2986 = vrsqrt.pop %v2984
    %v2987 = vmul.f32 %v2971, %v2985
    %v2988 = vmul.f32 %v2972, %v2986
    %v2989 = vlaneseq
    %v2990 = vshrl.u32 %v2989, 7
    %v2991 = vsub.s32 0, %v2990
    %v2992 = vrot.slane %v26, %v2991
    %v2993 = vmul.f32 %v2987, %v2992
    %v2994 = vmul.f32 %v2988, %v2992
    %v2995 = vlaneseq
    %v2996 = vshrl.u32 %v2995, 7
    %v2997 = vsub.s32 0, %v2996
    %v2998 = vrot.slane %v27, %v2997
    %v2999 = vadd.f32 %v2993, %v2998
    %v3000 = vadd.f32 %v2994, %v2998
    %s3001 = scalar_lea.vmem %s3, 64
    %v3002 = vld [vmem:[%s3001] sm:$0xff]
    %v3003 = vld [vmem:[%s3001 + $0x8] sm:$0xff]
    %v3004 = vld [vmem:[%s3001 + $0x10] sm:$0xff]
    %v3005 = vld [vmem:[%s3001 + $0x18] sm:$0xff]
    %s3006 = scalar_lea.vmem %s3, 128
    %v3007 = vld [vmem:[%s3006] sm:$0xff]
    %v3008 = vld [vmem:[%s3006 + $0x8] sm:$0xff]
    %v3009 = vld [vmem:[%s3006 + $0x10] sm:$0xff]
    %v3010 = vld [vmem:[%s3006 + $0x18] sm:$0xff]
    %v3011 = vld [vmem:[%s3006 + $0x20] sm:$0xff]
    %v3012 = vld [vmem:[%s3006 + $0x28] sm:$0xff]
    %v3013 = vld [vmem:[%s3006 + $0x30] sm:$0xff]
    %v3014 = vld [vmem:[%s3006 + $0x38] sm:$0xff]
    %v3015 = vlaneseq
    %v3016 = vshrl.u32 %v3015, 7
    %v3017 = vsub.s32 0, %v3016
    %v3018 = vrot.slane %v24, %v3017
    %v3020 = vsel %vm40, %v2999, 0
    %v3023 = vsel %vm40, %v3000, 0
    %3025 = vmatprep.subr.mxu0 0.0
    %3026 = vmatpush1.msra.mxu0 0.0
    %3027 = vmatprep.subr.mxu0 0.0
    %3028 = vmatpush1.msra.mxu0 0.0
    %3029 = vmatprep.subr.mxu0 0.0
    %3030 = vmatpush1.msra.mxu0 0.0
    %3031 = vmatprep.subr.mxu0 0.0
    %3032 = vmatpush1.msra.mxu0 0.0
    %3033 = vmatprep.subr.mxu0 0.0
    %3034 = vmatpush1.msra.mxu0 0.0
    %3035 = vmatprep.subr.mxu0 0.0
    %3036 = vmatpush1.msra.mxu0 0.0
    %3037 = vmatprep.subr.mxu0 0.0
    %3038 = vmatpush1.msra.mxu0 0.0
    %3039 = vmatprep.subr.mxu0 0.0
    %3040 = vmatpush1.msra.mxu0 0.0
    %3041 = vmatprep.subr.mxu0 0.0
    %3042 = vmatpush1.msra.mxu0 0.0
    %3043 = vmatprep.subr.mxu0 0.0
    %3044 = vmatpush1.msra.mxu0 0.0
    %3045 = vmatprep.subr.mxu0 0.0
    %3046 = vmatpush1.msra.mxu0 0.0
    %3047 = vmatprep.subr.mxu0 0.0
    %3048 = vmatpush1.msra.mxu0 0.0
    %3049 = vmatprep.subr.mxu0 0.0
    %3050 = vmatpush1.msra.mxu0 %v3005
    %3051 = vmatprep.subr.mxu0 0.0
    %3052 = vmatpush1.msra.mxu0 %v3004
    %3053 = vmatprep.subr.mxu0 0.0
    %3054 = vmatpush1.msra.mxu0 %v3003
    %3055 = vmatprep.subr.mxu0 0.0
    %3056 = vmatpush1.msra.mxu0 %v3002
    %3057 = vmatprep.subr.mxu0 0.0
    %3058 = vmatpush2.msra.mxu0 0.0
    %3059 = vmatprep.subr.mxu0 0.0
    %3060 = vmatpush2.msra.mxu0 0.0
    %3061 = vmatprep.subr.mxu0 0.0
    %3062 = vmatpush2.msra.mxu0 0.0
    %3063 = vmatprep.subr.mxu0 0.0
    %3064 = vmatpush2.msra.mxu0 0.0
    %3065 = vmatprep.subr.mxu0 0.0
    %3066 = vmatpush2.msra.mxu0 0.0
    %3067 = vmatprep.subr.mxu0 0.0
    %3068 = vmatpush2.msra.mxu0 0.0
    %3069 = vmatprep.subr.mxu0 0.0
    %3070 = vmatpush2.msra.mxu0 0.0
    %3071 = vmatprep.subr.mxu0 0.0
    %3072 = vmatpush2.msra.mxu0 0.0
    %3073 = vmatprep.subr.mxu0 0.0
    %3074 = vmatpush2.msra.mxu0 0.0
    %3075 = vmatprep.subr.mxu0 0.0
    %3076 = vmatpush2.msra.mxu0 0.0
    %3077 = vmatprep.subr.mxu0 0.0
    %3078 = vmatpush2.msra.mxu0 0.0
    %3079 = vmatprep.subr.mxu0 0.0
    %3080 = vmatpush2.msra.mxu0 0.0
    %3081 = vmatprep.subr.mxu0 0.0
    %3082 = vmatpush2.msra.mxu0 0.0
    %3083 = vmatprep.subr.mxu0 0.0
    %3084 = vmatpush2.msra.mxu0 0.0
    %3085 = vmatprep.subr.mxu0 0.0
    %3086 = vmatpush2.msra.mxu0 0.0
    %3087 = vmatprep.subr.mxu0 0.0
    %3088 = vmatpush2.msra.mxu0 0.0
    %3089 = vmatprep.mubr.f32.mxu0 0.0
    %3090 = vmatmul.mubr.f32.gmra.mxu0 %v3020
    %v3091 = vpop.f32.mrf.mxu0
    %v3092 = vadd.f32 %v3018, %v3091
    %v3093 = vpop.f32.mrf.mxu0
    %3094 = vmatprep.mubr.f32.mxu0 0.0
    %3095 = vmatmul.mubr.f32.gmra.mxu0 %v3023
    %v3096 = vpop.f32.mrf.mxu0
    %v3097 = vadd.f32 %v3018, %v3096
    %v3098 = vpop.f32.mrf.mxu0
    %3099 = vdwg.mxu0
    %v3100 = vmul.f32 %v3092, 0.5
    %v3101 = vmul.f32 %v3097, 0.5
    %v3102 = vmul.f32 %v3092, 0.70710677
    %v3103 = vmul.f32 %v3097, 0.70710677
    %v3104 = verf.f32.pop %v3102
    %v3105 = verf.f32.pop %v3103
    %v3106 = vadd.f32 %v3104, 1.0
    %v3107 = vadd.f32 %v3105, 1.0
    %v3108 = vmul.f32 %v3100, %v3106
    %v3109 = vmul.f32 %v3101, %v3107
    %v3110 = vlaneseq
    %v3111 = vshrl.u32 %v3110, 7
    %v3112 = vsub.s32 0, %v3111
    %v3113 = vrot.slane %v28, %v3112
    %vm3114 = vcmask 523264
    %v3116 = vsel %vm3114, %v3108, 0
    %v3119 = vsel %vm3114, %v3109, 0
    %3121 = vmatprep.subr.mxu0 0.0
    %3122 = vmatpush1.msra.mxu0 0.0
    %3123 = vmatprep.subr.mxu0 0.0
    %3124 = vmatpush1.msra.mxu0 0.0
    %3125 = vmatprep.subr.mxu0 0.0
    %3126 = vmatpush1.msra.mxu0 0.0
    %3127 = vmatprep.subr.mxu0 0.0
    %3128 = vmatpush1.msra.mxu0 0.0
    %3129 = vmatprep.subr.mxu0 0.0
    %3130 = vmatpush1.msra.mxu0 0.0
    %3131 = vmatprep.subr.mxu0 0.0
    %3132 = vmatpush1.msra.mxu0 0.0
    %3133 = vmatprep.subr.mxu0 0.0
    %3134 = vmatpush1.msra.mxu0 0.0
    %3135 = vmatprep.subr.mxu0 0.0
    %3136 = vmatpush1.msra.mxu0 0.0
    %3137 = vmatprep.subr.mxu0 0.0
    %3138 = vmatpush1.msra.mxu0 %v3014
    %3139 = vmatprep.subr.mxu0 0.0
    %3140 = vmatpush1.msra.mxu0 %v3013
    %3141 = vmatprep.subr.mxu0 0.0
    %3142 = vmatpush1.msra.mxu0 %v3012
    %3143 = vmatprep.subr.mxu0 0.0
    %3144 = vmatpush1.msra.mxu0 %v3011
    %3145 = vmatprep.subr.mxu0 0.0
    %3146 = vmatpush1.msra.mxu0 %v3010
    %3147 = vmatprep.subr.mxu0 0.0
    %3148 = vmatpush1.msra.mxu0 %v3009
    %3149 = vmatprep.subr.mxu0 0.0
    %3150 = vmatpush1.msra.mxu0 %v3008
    %3151 = vmatprep.subr.mxu0 0.0
    %3152 = vmatpush1.msra.mxu0 %v3007
    %3153 = vmatprep.subr.mxu0 0.0
    %3154 = vmatpush2.msra.mxu0 0.0
    %3155 = vmatprep.subr.mxu0 0.0
    %3156 = vmatpush2.msra.mxu0 0.0
    %3157 = vmatprep.subr.mxu0 0.0
    %3158 = vmatpush2.msra.mxu0 0.0
    %3159 = vmatprep.subr.mxu0 0.0
    %3160 = vmatpush2.msra.mxu0 0.0
    %3161 = vmatprep.subr.mxu0 0.0
    %3162 = vmatpush2.msra.mxu0 0.0
    %3163 = vmatprep.subr.mxu0 0.0
    %3164 = vmatpush2.msra.mxu0 0.0
    %3165 = vmatprep.subr.mxu0 0.0
    %3166 = vmatpush2.msra.mxu0 0.0
    %3167 = vmatprep.subr.mxu0 0.0
    %3168 = vmatpush2.msra.mxu0 0.0
    %3169 = vmatprep.subr.mxu0 0.0
    %3170 = vmatpush2.msra.mxu0 0.0
    %3171 = vmatprep.subr.mxu0 0.0
    %3172 = vmatpush2.msra.mxu0 0.0
    %3173 = vmatprep.subr.mxu0 0.0
    %3174 = vmatpush2.msra.mxu0 0.0
    %3175 = vmatprep.subr.mxu0 0.0
    %3176 = vmatpush2.msra.mxu0 0.0
    %3177 = vmatprep.subr.mxu0 0.0
    %3178 = vmatpush2.msra.mxu0 0.0
    %3179 = vmatprep.subr.mxu0 0.0
    %3180 = vmatpush2.msra.mxu0 0.0
    %3181 = vmatprep.subr.mxu0 0.0
    %3182 = vmatpush2.msra.mxu0 0.0
    %3183 = vmatprep.subr.mxu0 0.0
    %3184 = vmatpush2.msra.mxu0 0.0
    %3185 = vmatprep.mubr.f32.mxu0 0.0
    %3186 = vmatmul.mubr.f32.gmra.mxu0 %v3116
    %v3187 = vpop.f32.mrf.mxu0
    %v3188 = vadd.f32 %v3113, %v3187
    %v3189 = vpop.f32.mrf.mxu0
    %3190 = vmatprep.mubr.f32.mxu0 0.0
    %3191 = vmatmul.mubr.f32.gmra.mxu0 %v3119
    %v3192 = vpop.f32.mrf.mxu0
    %v3193 = vadd.f32 %v3113, %v3192
    %v3194 = vpop.f32.mrf.mxu0
    %3195 = vdwg.mxu0
    %v3196 = vadd.f32 %v3188, %v2999
    %v3197 = vadd.f32 %v3193, %v3000
    %v3198 = vsel %vm40, %v3196, 0.0
    %3199 = vadd.xlane.f32.xlu0 %v3198
    %v3200 = vpop.xlane.xlu0 %3199
    %v3201 = vsel %vm40, %v3197, 0.0
    %3202 = vadd.xlane.f32.xlu0 %v3201
    %v3203 = vpop.xlane.xlu0 %3202
    %v3204 = vmul.f32 %v3200, %v2968
    %v3205 = vmul.f32 %v3203, %v2968
    %v3206 = vsub.f32 %v3196, %v3204
    %v3207 = vsub.f32 %v3197, %v3205
    %v3208 = vmul.f32 %v3206, %v3206
    %v3209 = vmul.f32 %v3207, %v3207
    %v3210 = vsel %vm40, %v3208, 0.0
    %3211 = vadd.xlane.f32.xlu0 %v3210
    %v3212 = vpop.xlane.xlu0 %3211
    %v3213 = vsel %vm40, %v3209, 0.0
    %3214 = vadd.xlane.f32.xlu0 %v3213
    %v3215 = vpop.xlane.xlu0 %3214
    %v3216 = vmul.f32 %v3212, %v2968
    %v3217 = vmul.f32 %v3215, %v2968
    %v3218 = vadd.f32 %v3216, 1e-12
    %v3219 = vadd.f32 %v3217, 1e-12
    %v3220 = vrsqrt.pop %v3218
    %v3221 = vrsqrt.pop %v3219
    %v3222 = vmul.f32 %v3206, %v3220
    %v3223 = vmul.f32 %v3207, %v3221
    %v3224 = vlaneseq
    %v3225 = vshrl.u32 %v3224, 7
    %v3226 = vsub.s32 0, %v3225
    %v3227 = vrot.slane %v29, %v3226
    %v3228 = vmul.f32 %v3222, %v3227
    %v3229 = vmul.f32 %v3223, %v3227
    %v3230 = vlaneseq
    %v3231 = vshrl.u32 %v3230, 7
    %v3232 = vsub.s32 0, %v3231
    %v3233 = vrot.slane %v30, %v3232
    %v3234 = vadd.f32 %v3228, %v3233
    %v3235 = vadd.f32 %v3229, %v3233
    %3236 = vst.msk [vmem:[#allocation2] sm:$0xff] %vm40, %v3234
    %3237 = vst.msk [vmem:[#allocation2 + $0x8] sm:$0xff] %vm40, %v3235
    // Predicated region
    $region22: #{tpu_custom_call.1} parent=1 // pred_check
      _
    $region23: #{tpu_custom_call.1} parent=1 // pred_check_branch
      %3239 = sbr.rel (0) target = $region25
    $region24: #{tpu_custom_call.1} parent=1 // pred_region
      %s3241 = ssub.s32 256, 256
      %3242 = vsyncadd [#allocation3], %s3241
      %s3243 = sshll.u32 [#allocation2], 4
      %s3244 = int_to_ptr.vmem [resolvable:$true] %s3243
      %3249 = dma.vmem_to_hbm [thread:$0]  %s3244, 256, %s5, [#allocation3], 128, 128, 8
    $region25: #{tpu_custom_call.1} parent=1 // pred_fallthru
      _
    // Predicated region
    $region26: #{tpu_custom_call.1} parent=1 // pred_check
      _
    $region27: #{tpu_custom_call.1} parent=1 // pred_check_branch
      %3251 = sbr.rel (0) target = $region29
    $region28: #{tpu_custom_call.1} parent=1 // pred_region
      %3252 = dma.done [#allocation3], 256
    $region29: #{tpu_custom_call.1} parent=1 // pred_fallthru
      _
    %3253 = vsyncpa [#allocation3], 1

</llo_original>
